<compile_context>
chip_gen: v7x
topology: tpu7x:2x2x1
jax: 0.10.0
libtpu: 0.0.40
codegen_flags: <defaults>
</compile_context>

<pallas_src>
import functools
import math

import jax
import jax.numpy as jnp
import numpy as np
from jax.experimental import pallas as pl
from jax.experimental.pallas import tpu as pltpu

LN_EPS = 1e-5  # PyTorch nn.LayerNorm default


def _erf(x):
    # Abramowitz & Stegun 7.1.26, |err| <= 1.5e-7 (float32 precision).
    a1, a2, a3, a4, a5 = (0.254829592, -0.284496736, 1.421413741,
                          -1.453152027, 1.061405429)
    p = 0.3275911
    s = jnp.where(x >= 0.0, 1.0, -1.0)
    ax = jnp.abs(x)
    t = 1.0 / (1.0 + p * ax)
    poly = ((((a5 * t + a4) * t + a3) * t + a2) * t + a1) * t
    return s * (1.0 - poly * jnp.exp(-ax * ax))


def _gelu(x, tanh_approx):
    if tanh_approx:
        # tanh-GELU: bulk of the work moves to the EUP slot.
        c = math.sqrt(2.0 / math.pi)
        return 0.5 * x * (1.0 + jnp.tanh(c * (x + 0.044715 * (x * x * x))))
    # exact erf-GELU (matches nn.GELU() default)
    return 0.5 * x * (1.0 + _erf(x * (1.0 / math.sqrt(2.0))))


def _layernorm(x, w, b):
    mu = jnp.mean(x, axis=-1, keepdims=True)
    var = jnp.mean((x - mu) ** 2, axis=-1, keepdims=True)
    return (x - mu) * jax.lax.rsqrt(var + LN_EPS) * w + b


def block_kernel(x_ref,
                 ln1w_ref, ln1b_ref,
                 wq_ref, qb_ref, wkv_ref, kvb_ref,
                 projw_ref, projb_ref,
                 ln2w_ref, ln2b_ref,
                 fc1w_ref, fc1b_ref, fc2w_ref, fc2b_ref,
                 o_ref,
                 kT_sc, v_sc,
                 *, num_heads, q_tile, compute_dtype, fast_math):
    qi = pl.program_id(1)
    _, N, D = x_ref.shape
    nh = num_heads
    hd = D // nh
    TQ = q_tile
    NT = N // TQ
    scale = hd ** (-0.5)
    cdt = compute_dtype

    # ---- per-batch K / V: built once on the first q-tile, kept in scratch ----
    # Chunked over q_tile-sized row blocks (static slices) so the peak f32
    # transient is only (TQ, 2D) instead of (N, 2D).
    @pl.when(qi == 0)
    def _():
        for c in range(NT):  # NT is a Python int -> static slices
            xc = x_ref[0, c * TQ:(c + 1) * TQ, :].astype(jnp.float32)      # (TQ, D)
            xn = _layernorm(xc, ln1w_ref[...], ln1b_ref[...]).astype(cdt)
            kv = jnp.dot(xn, wkv_ref[...],
                         preferred_element_type=jnp.float32) + kvb_ref[...]  # (TQ, 2D)
            k = kv[:, :D]
            v = kv[:, D:]
            # K stored transposed per head (nh, hd, N): lane-dense scores, no
            # per-step relayout. Transposes done in f32 (robust), then cast.
            kT_sc[:, :, c * TQ:(c + 1) * TQ] = (
                k.reshape(TQ, nh, hd).transpose(1, 2, 0).astype(cdt))
            v_sc[:, c * TQ:(c + 1) * TQ, :] = (
                v.reshape(TQ, nh, hd).transpose(1, 0, 2).astype(cdt))

    # ---- attention for this q-tile ----
    row0 = pl.multiple_of(qi * TQ, TQ)
    x_t = x_ref[0, pl.ds(row0, TQ), :].astype(jnp.float32)                 # (TQ, D)
    xn_q = _layernorm(x_t, ln1w_ref[...], ln1b_ref[...]).astype(cdt)
    q = jnp.dot(xn_q, wq_ref[...], preferred_element_type=jnp.float32)
    q = (q + qb_ref[...]) * scale
    qh = q.astype(cdt).reshape(TQ, nh, hd).transpose(1, 0, 2)              # (nh,TQ,hd)

    # batched, transpose-free scores against the resident K^T: (nh, TQ, N)
    s = jnp.einsum('hqd,hdk->hqk', qh, kT_sc[...],
                   preferred_element_type=jnp.float32)
    s = s - jnp.max(s, axis=-1, keepdims=True)
    p = jnp.exp(s)
    denom = jnp.sum(p, axis=-1, keepdims=True)
    o_h = jnp.einsum('hqk,hkd->hqd', p.astype(cdt), v_sc[...],
                     preferred_element_type=jnp.float32)                   # (nh,TQ,hd)
    o_h = o_h * pl.reciprocal(denom, approx=fast_math)
    # merge heads once (minor dim unchanged -> cheap), ONE deep (TQ,D)@(D,D) proj
    merged = o_h.transpose(1, 0, 2).reshape(TQ, D).astype(cdt)
    attn = jnp.dot(merged, projw_ref[...],
                   preferred_element_type=jnp.float32) + projb_ref[...]
    x_t = x_t + attn

    # ---- MLP ----
    xn2 = _layernorm(x_t, ln2w_ref[...], ln2b_ref[...]).astype(cdt)
    h1 = jnp.dot(xn2, fc1w_ref[...],
                 preferred_element_type=jnp.float32) + fc1b_ref[...]
    h1 = _gelu(h1, fast_math)
    h2 = jnp.dot(h1.astype(cdt), fc2w_ref[...],
                 preferred_element_type=jnp.float32) + fc2b_ref[...]

    o_ref[0] = (x_t + h2).astype(o_ref.dtype)


def pack_params(params, compute_dtype=jnp.bfloat16):
    """One-time weight packing (transpose / cast / fuse) — do this at init,
    NOT per forward call."""
    D = params["proj_w"].shape[0]
    H = params["fc1_w"].shape[0]
    cdt = compute_dtype
    f32 = jnp.float32
    qkv_w = params["qkv_w"]                                   # (3D, D) torch layout
    wq = qkv_w[:D, :].T.astype(cdt)                           # (D, D) as (in, out)
    wkv = jnp.concatenate([qkv_w[D:2 * D, :].T,
                           qkv_w[2 * D:, :].T], axis=1).astype(cdt)   # (D, 2D)
    kv_b = jnp.concatenate([jnp.zeros((D,), f32),
                            params["v_bias"].astype(f32)]).reshape(1, 2 * D)
    return {
        "ln1_w": params["ln1_w"].reshape(1, D).astype(f32),
        "ln1_b": params["ln1_b"].reshape(1, D).astype(f32),
        "wq": wq,
        "q_b": params["q_bias"].reshape(1, D).astype(f32),
        "wkv": wkv,
        "kv_b": kv_b,
        "proj_w": params["proj_w"].T.astype(cdt),
        "proj_b": params["proj_b"].reshape(1, D).astype(f32),
        "ln2_w": params["ln2_w"].reshape(1, D).astype(f32),
        "ln2_b": params["ln2_b"].reshape(1, D).astype(f32),
        "fc1_w": params["fc1_w"].T.astype(cdt),
        "fc1_b": params["fc1_b"].reshape(1, H).astype(f32),
        "fc2_w": params["fc2_w"].T.astype(cdt),
        "fc2_b": params["fc2_b"].reshape(1, D).astype(f32),
    }


def _tpu_defaults():
    """Generation-aware (vmem_limit_bytes, prefer_256_row_tiles)."""
    vmem_limit = 48 * 1024 * 1024            # conservative fallback (fits v7x 64 MiB)
    try:
        info = pltpu.get_tpu_info()
        cap = int(getattr(info, "vmem_capacity_bytes"))
        vmem_limit = int(cap * 0.8)          # ~102 MiB on v5e/v6e, ~51 MiB on v7x
    except Exception:
        pass
    prefer_256 = True
    try:
        kind = jax.devices()[0].device_kind.lower()
        if ("v5e" in kind) or ("v5 lite" in kind) or ("v5lite" in kind):
            prefer_256 = False               # v5e has a 128x128 MXU: keep 128-row tiles
    except Exception:
        pass
    return vmem_limit, prefer_256


def block_forward(x, packed, num_heads, *, q_tile=None, fast_math=True):
    """x: (B, N, D).  packed: output of pack_params() (weights already laid out
    as (in, out) and cast to the compute dtype).  Accumulation is always f32."""
    B, N, D = x.shape
    H = packed["fc1_w"].shape[1]
    nh = num_heads
    hd = D // nh
    assert nh * hd == D
    cdt = packed["wq"].dtype

    vmem_limit, prefer_256 = _tpu_defaults()

    if q_tile is None:
        if N <= 128:
            q_tile = N
        elif prefer_256 and N % 256 == 0:
            q_tile = 256                      # v6e / v7x: 256-wide MXU
        elif N % 128 == 0:
            q_tile = 128                      # v5e: 128x128 MXU
        else:
            q_tile = N
    assert N % q_tile == 0
    NT = N // q_tile

    args = (
        x,
        packed["ln1_w"], packed["ln1_b"],
        packed["wq"], packed["q_b"],
        packed["wkv"], packed["kv_b"],
        packed["proj_w"], packed["proj_b"],
        packed["ln2_w"], packed["ln2_b"],
        packed["fc1_w"], packed["fc1_b"],
        packed["fc2_w"], packed["fc2_b"],
    )

    def rep(shape):
        # Replicated (constant index map) weight/bias: single-buffered — the
        # block never changes, so double-buffering only wastes VMEM.
        idx = lambda b, qi: tuple(0 for _ in shape)
        try:
            return pl.BlockSpec(shape, idx, pipeline_mode=pl.Buffered(1))
        except TypeError:  # older jax without pipeline_mode on BlockSpec
            return pl.BlockSpec(shape, idx)

    in_specs = [
        # x: full sequence of one batch element; constant over qi, so it is
        # only re-DMA'd when the batch index changes.
        pl.BlockSpec((1, N, D), lambda b, qi: (b, 0, 0)),
        rep((1, D)), rep((1, D)),                  # ln1
        rep((D, D)), rep((1, D)),                  # wq, q_bias
        rep((D, 2 * D)), rep((1, 2 * D)),          # fused wkv, [0|v_bias]
        rep((D, D)), rep((1, D)),                  # proj
        rep((1, D)), rep((1, D)),                  # ln2
        rep((D, H)), rep((1, H)),                  # fc1
        rep((H, D)), rep((1, D)),                  # fc2
    ]

    flops = 2 * B * N * D * (4 * D + 2 * N + 2 * H)
    transcendentals = B * N * (N * nh + H)
    bytes_accessed = 8 * B * N * D + int(
        sum(int(np.prod(a.shape)) * a.dtype.itemsize for a in args[1:]))

    return pl.pallas_call(
        functools.partial(block_kernel, num_heads=nh, q_tile=q_tile,
                          compute_dtype=cdt, fast_math=fast_math),
        out_shape=jax.ShapeDtypeStruct((B, N, D), x.dtype),
        grid_spec=pltpu.PrefetchScalarGridSpec(
            num_scalar_prefetch=0,
            grid=(B, NT),
            in_specs=in_specs,
            out_specs=pl.BlockSpec((1, q_tile, D), lambda b, qi: (b, qi, 0)),
            scratch_shapes=[pltpu.VMEM((nh, hd, N), cdt),   # K^T (head-major)
                            pltpu.VMEM((nh, N, hd), cdt)],  # V   (head-major)
        ),
        compiler_params=pltpu.CompilerParams(
            dimension_semantics=("parallel", "arbitrary"),
            vmem_limit_bytes=int(vmem_limit)),
        cost_estimate=pl.CostEstimate(flops=flops,
                                      transcendentals=transcendentals,
                                      bytes_accessed=bytes_accessed),
    )(*args)


def block_reference(x, p, num_heads):
    """Pure-JAX replica of the PyTorch forward (for verification)."""
    def ln(x, w, b):
        mu = x.mean(-1, keepdims=True)
        var = ((x - mu) ** 2).mean(-1, keepdims=True)
        return (x - mu) / jnp.sqrt(var + LN_EPS) * w + b

    B, N, D = x.shape
    hd = D // num_heads
    xn = ln(x, p["ln1_w"], p["ln1_b"])
    qkv_b = jnp.concatenate(
        [p["q_bias"], jnp.zeros_like(p["v_bias"]), p["v_bias"]])
    qkv = xn @ p["qkv_w"].T + qkv_b
    qkv = qkv.reshape(B, N, 3, num_heads, hd).transpose(2, 0, 3, 1, 4)
    q, k, v = qkv[0] * hd ** (-0.5), qkv[1], qkv[2]
    attn = jax.nn.softmax(q @ jnp.swapaxes(k, -2, -1), axis=-1)
    o = (attn @ v).transpose(0, 2, 1, 3).reshape(B, N, D)
    o = o @ p["proj_w"].T + p["proj_b"]
    x = x + o
    xn2 = ln(x, p["ln2_w"], p["ln2_b"])
    h = jax.nn.gelu(xn2 @ p["fc1_w"].T + p["fc1_b"], approximate=False)
    h = h @ p["fc2_w"].T + p["fc2_b"]
    return x + h


def make_params(key, dim, num_heads, mlp_ratio=4.0):
    hidden = int(dim * mlp_ratio)
    ks = jax.random.split(key, 12)
    f = jnp.float32
    return {
        "ln1_w": 1.0 + 0.1 * jax.random.normal(ks[0], (dim,), f),
        "ln1_b": 0.1 * jax.random.normal(ks[1], (dim,), f),
        "qkv_w": 0.05 * jax.random.normal(ks[2], (3 * dim, dim), f),
        "q_bias": 0.1 * jax.random.normal(ks[3], (dim,), f),
        "v_bias": 0.1 * jax.random.normal(ks[4], (dim,), f),
        "proj_w": 0.05 * jax.random.normal(ks[5], (dim, dim), f),
        "proj_b": 0.1 * jax.random.normal(ks[6], (dim,), f),
        "ln2_w": 1.0 + 0.1 * jax.random.normal(ks[7], (dim,), f),
        "ln2_b": 0.1 * jax.random.normal(ks[8], (dim,), f),
        "fc1_w": 0.05 * jax.random.normal(ks[9], (hidden, dim), f),
        "fc1_b": 0.1 * jax.random.normal(ks[10], (hidden,), f),
        "fc2_w": 0.05 * jax.random.normal(ks[11], (dim, hidden), f),
        "fc2_b": jnp.zeros((dim,), f),
    }


if __name__ == "__main__":
    B, N, D, NUM_HEADS = 2, 16, 32, 4   # q_tile=8 -> 2 sequence tiles per batch
    key = jax.random.PRNGKey(0)
    kx, kp = jax.random.split(key)
    x = jax.random.normal(kx, (B, N, D), jnp.float32)
    params = make_params(kp, D, NUM_HEADS)

    ref = block_reference(x, params, NUM_HEADS)

    # Strict path: f32 matmul operands, exact GELU / exact reciprocal.
    packed_f32 = pack_params(params, compute_dtype=jnp.float32)
    out_f32 = jax.block_until_ready(
        block_forward(x, packed_f32, NUM_HEADS, q_tile=8, fast_math=False))
    np.testing.assert_allclose(np.asarray(out_f32), np.asarray(ref),
                               rtol=1e-4, atol=1e-4)

    # Perf path: bf16 operands (f32 accumulation), tanh-GELU, EUP reciprocal.
    packed_bf16 = pack_params(params, compute_dtype=jnp.bfloat16)
    out_bf16 = jax.block_until_ready(
        block_forward(x, packed_bf16, NUM_HEADS, q_tile=8, fast_math=True))
    np.testing.assert_allclose(np.asarray(out_bf16), np.asarray(ref),
                               rtol=3e-2, atol=3e-2)

    print("KERNEL_OK")
</pallas_src>

<mosaic_0001>
module attributes {stable_mosaic.version = 11 : i64} {
  func.func @block_kernel(%arg0: i32, %arg1: i32, %arg2: memref<1x16x32xf32, #tpu.memory_space<vmem>>, %arg3: memref<1x32xf32, #tpu.memory_space<vmem>>, %arg4: memref<1x32xf32, #tpu.memory_space<vmem>>, %arg5: memref<32x32xf32, #tpu.memory_space<vmem>>, %arg6: memref<1x32xf32, #tpu.memory_space<vmem>>, %arg7: memref<32x64xf32, #tpu.memory_space<vmem>>, %arg8: memref<1x64xf32, #tpu.memory_space<vmem>>, %arg9: memref<32x32xf32, #tpu.memory_space<vmem>>, %arg10: memref<1x32xf32, #tpu.memory_space<vmem>>, %arg11: memref<1x32xf32, #tpu.memory_space<vmem>>, %arg12: memref<1x32xf32, #tpu.memory_space<vmem>>, %arg13: memref<32x128xf32, #tpu.memory_space<vmem>>, %arg14: memref<1x128xf32, #tpu.memory_space<vmem>>, %arg15: memref<128x32xf32, #tpu.memory_space<vmem>>, %arg16: memref<1x32xf32, #tpu.memory_space<vmem>>, %arg17: memref<1x8x32xf32, #tpu.memory_space<vmem>>, %arg18: memref<4x8x16xf32, #tpu.memory_space<vmem>>, %arg19: memref<4x16x8xf32, #tpu.memory_space<vmem>>) attributes {dimension_semantics = [#tpu.dimension_semantics<parallel>, #tpu.dimension_semantics<arbitrary>], iteration_bounds = array<i64: 2, 2>, scalar_prefetch = 0 : i64, scratch_operands = 2 : i64, tpu.core_type = #tpu.core_type<tc>, window_params = [{transform_indices = @transform_0, window_bounds = array<i64: 1, 16, 32>}, {pipeline_mode = #tpu.pipeline_mode<synchronous>, transform_indices = @transform_1, window_bounds = array<i64: 1, 32>}, {pipeline_mode = #tpu.pipeline_mode<synchronous>, transform_indices = @transform_2, window_bounds = array<i64: 1, 32>}, {pipeline_mode = #tpu.pipeline_mode<synchronous>, transform_indices = @transform_3, window_bounds = array<i64: 32, 32>}, {pipeline_mode = #tpu.pipeline_mode<synchronous>, transform_indices = @transform_4, window_bounds = array<i64: 1, 32>}, {pipeline_mode = #tpu.pipeline_mode<synchronous>, transform_indices = @transform_5, window_bounds = array<i64: 32, 64>}, {pipeline_mode = #tpu.pipeline_mode<synchronous>, transform_indices = @transform_6, window_bounds = array<i64: 1, 64>}, {pipeline_mode = #tpu.pipeline_mode<synchronous>, transform_indices = @transform_7, window_bounds = array<i64: 32, 32>}, {pipeline_mode = #tpu.pipeline_mode<synchronous>, transform_indices = @transform_8, window_bounds = array<i64: 1, 32>}, {pipeline_mode = #tpu.pipeline_mode<synchronous>, transform_indices = @transform_9, window_bounds = array<i64: 1, 32>}, {pipeline_mode = #tpu.pipeline_mode<synchronous>, transform_indices = @transform_10, window_bounds = array<i64: 1, 32>}, {pipeline_mode = #tpu.pipeline_mode<synchronous>, transform_indices = @transform_11, window_bounds = array<i64: 32, 128>}, {pipeline_mode = #tpu.pipeline_mode<synchronous>, transform_indices = @transform_12, window_bounds = array<i64: 1, 128>}, {pipeline_mode = #tpu.pipeline_mode<synchronous>, transform_indices = @transform_13, window_bounds = array<i64: 128, 32>}, {pipeline_mode = #tpu.pipeline_mode<synchronous>, transform_indices = @transform_14, window_bounds = array<i64: 1, 32>}, {transform_indices = @transform_15, window_bounds = array<i64: 1, 8, 32>}]} {
    %c0_i32 = arith.constant 0 : i32
    %0 = arith.cmpi eq, %arg1, %c0_i32 : i32
    %1 = arith.extui %0 : i1 to i32
    %c0_i32_0 = arith.constant 0 : i32
    %2 = arith.cmpi ne, %1, %c0_i32_0 : i32
    scf.if %2 {
      %c0_69 = arith.constant 0 : index
      %c0_70 = arith.constant 0 : index
      %c0_71 = arith.constant 0 : index
      %142 = vector.load %arg2[%c0_69, %c0_70, %c0_71] : memref<1x16x32xf32, #tpu.memory_space<vmem>>, vector<1x8x32xf32>
      %143 = vector.shape_cast %142 : vector<1x8x32xf32> to vector<8x32xf32>
      %c0_72 = arith.constant 0 : index
      %c0_73 = arith.constant 0 : index
      %144 = vector.load %arg3[%c0_72, %c0_73] : memref<1x32xf32, #tpu.memory_space<vmem>>, vector<1x32xf32>
      %c0_74 = arith.constant 0 : index
      %c0_75 = arith.constant 0 : index
      %145 = vector.load %arg4[%c0_74, %c0_75] : memref<1x32xf32, #tpu.memory_space<vmem>>, vector<1x32xf32>
      %cst_76 = arith.constant dense<0.000000e+00> : vector<8xf32>
      %146 = vector.multi_reduction <add>, %143, %cst_76 [1] : vector<8x32xf32> to vector<8xf32>
      %147 = vector.shape_cast %146 : vector<8xf32> to vector<8x1xf32>
      %cst_77 = arith.constant 3.200000e+01 : f32
      %148 = vector.broadcast %cst_77 : f32 to vector<8x1xf32>
      %149 = arith.divf %147, %148 : vector<8x1xf32>
      %150 = vector.broadcast %149 : vector<8x1xf32> to vector<8x32xf32>
      %151 = arith.subf %143, %150 : vector<8x32xf32>
      %152 = arith.mulf %151, %151 : vector<8x32xf32>
      %cst_78 = arith.constant dense<0.000000e+00> : vector<8xf32>
      %153 = vector.multi_reduction <add>, %152, %cst_78 [1] : vector<8x32xf32> to vector<8xf32>
      %154 = vector.shape_cast %153 : vector<8xf32> to vector<8x1xf32>
      %cst_79 = arith.constant 3.200000e+01 : f32
      %155 = vector.broadcast %cst_79 : f32 to vector<8x1xf32>
      %156 = arith.divf %154, %155 : vector<8x1xf32>
      %157 = vector.broadcast %149 : vector<8x1xf32> to vector<8x32xf32>
      %158 = arith.subf %143, %157 : vector<8x32xf32>
      %cst_80 = arith.constant 9.99999974E-6 : f32
      %159 = vector.broadcast %cst_80 : f32 to vector<8x1xf32>
      %160 = arith.addf %156, %159 : vector<8x1xf32>
      %161 = math.rsqrt %160 : vector<8x1xf32>
      %162 = vector.broadcast %161 : vector<8x1xf32> to vector<8x32xf32>
      %163 = arith.mulf %158, %162 : vector<8x32xf32>
      %164 = vector.broadcast %144 : vector<1x32xf32> to vector<8x32xf32>
      %165 = arith.mulf %163, %164 : vector<8x32xf32>
      %166 = vector.broadcast %145 : vector<1x32xf32> to vector<8x32xf32>
      %167 = arith.addf %165, %166 : vector<8x32xf32>
      %c0_81 = arith.constant 0 : index
      %c0_82 = arith.constant 0 : index
      %168 = vector.load %arg7[%c0_81, %c0_82] : memref<32x64xf32, #tpu.memory_space<vmem>>, vector<32x64xf32>
      %cst_83 = arith.constant dense<0.000000e+00> : vector<8x64xf32>
      %169 = tpu.matmul %167, %168, %cst_83 {dimension_numbers = #tpu.dot_dimension_numbers<[1], [0], [0], [1], [0, 0, 1, 1], [], []>} : vector<8x32xf32>, vector<32x64xf32>, vector<8x64xf32> -> vector<8x64xf32>
      %c0_84 = arith.constant 0 : index
      %c0_85 = arith.constant 0 : index
      %170 = vector.load %arg8[%c0_84, %c0_85] : memref<1x64xf32, #tpu.memory_space<vmem>>, vector<1x64xf32>
      %171 = vector.broadcast %170 : vector<1x64xf32> to vector<8x64xf32>
      %172 = arith.addf %169, %171 : vector<8x64xf32>
      %173 = vector.extract_strided_slice %172 {offsets = [0, 0], sizes = [8, 32], strides = [1, 1]} : vector<8x64xf32> to vector<8x32xf32>
      %174 = vector.extract_strided_slice %172 {offsets = [0, 32], sizes = [8, 32], strides = [1, 1]} : vector<8x64xf32> to vector<8x32xf32>
      %175 = vector.shape_cast %173 : vector<8x32xf32> to vector<8x4x8xf32>
      %176 = tpu.transpose %175, [1, 2, 0] : vector<8x4x8xf32> -> vector<4x8x8xf32>
      %c0_86 = arith.constant 0 : index
      %c0_87 = arith.constant 0 : index
      %c0_88 = arith.constant 0 : index
      %177 = vector.load %arg18[%c0_86, %c0_87, %c0_88] : memref<4x8x16xf32, #tpu.memory_space<vmem>>, vector<4x8x8xf32>
      tpu.vector_store %arg18[%c0_86, %c0_87, %c0_88], %176 {strides = array<i32>} : memref<4x8x16xf32, #tpu.memory_space<vmem>>, vector<4x8x8xf32>,
      %178 = vector.shape_cast %174 : vector<8x32xf32> to vector<8x4x8xf32>
      %179 = tpu.transpose %178, [1, 0, 2] : vector<8x4x8xf32> -> vector<4x8x8xf32>
      %c0_89 = arith.constant 0 : index
      %c0_90 = arith.constant 0 : index
      %c0_91 = arith.constant 0 : index
      %180 = vector.load %arg19[%c0_89, %c0_90, %c0_91] : memref<4x16x8xf32, #tpu.memory_space<vmem>>, vector<4x8x8xf32>
      tpu.vector_store %arg19[%c0_89, %c0_90, %c0_91], %179 {strides = array<i32>} : memref<4x16x8xf32, #tpu.memory_space<vmem>>, vector<4x8x8xf32>,
      %c0_92 = arith.constant 0 : index
      %c8 = arith.constant 8 : index
      %c0_93 = arith.constant 0 : index
      %181 = vector.load %arg2[%c0_92, %c8, %c0_93] : memref<1x16x32xf32, #tpu.memory_space<vmem>>, vector<1x8x32xf32>
      %182 = vector.shape_cast %181 : vector<1x8x32xf32> to vector<8x32xf32>
      %c0_94 = arith.constant 0 : index
      %c0_95 = arith.constant 0 : index
      %183 = vector.load %arg3[%c0_94, %c0_95] : memref<1x32xf32, #tpu.memory_space<vmem>>, vector<1x32xf32>
      %c0_96 = arith.constant 0 : index
      %c0_97 = arith.constant 0 : index
      %184 = vector.load %arg4[%c0_96, %c0_97] : memref<1x32xf32, #tpu.memory_space<vmem>>, vector<1x32xf32>
      %cst_98 = arith.constant dense<0.000000e+00> : vector<8xf32>
      %185 = vector.multi_reduction <add>, %182, %cst_98 [1] : vector<8x32xf32> to vector<8xf32>
      %186 = vector.shape_cast %185 : vector<8xf32> to vector<8x1xf32>
      %cst_99 = arith.constant 3.200000e+01 : f32
      %187 = vector.broadcast %cst_99 : f32 to vector<8x1xf32>
      %188 = arith.divf %186, %187 : vector<8x1xf32>
      %189 = vector.broadcast %188 : vector<8x1xf32> to vector<8x32xf32>
      %190 = arith.subf %182, %189 : vector<8x32xf32>
      %191 = arith.mulf %190, %190 : vector<8x32xf32>
      %cst_100 = arith.constant dense<0.000000e+00> : vector<8xf32>
      %192 = vector.multi_reduction <add>, %191, %cst_100 [1] : vector<8x32xf32> to vector<8xf32>
      %193 = vector.shape_cast %192 : vector<8xf32> to vector<8x1xf32>
      %cst_101 = arith.constant 3.200000e+01 : f32
      %194 = vector.broadcast %cst_101 : f32 to vector<8x1xf32>
      %195 = arith.divf %193, %194 : vector<8x1xf32>
      %196 = vector.broadcast %188 : vector<8x1xf32> to vector<8x32xf32>
      %197 = arith.subf %182, %196 : vector<8x32xf32>
      %cst_102 = arith.constant 9.99999974E-6 : f32
      %198 = vector.broadcast %cst_102 : f32 to vector<8x1xf32>
      %199 = arith.addf %195, %198 : vector<8x1xf32>
      %200 = math.rsqrt %199 : vector<8x1xf32>
      %201 = vector.broadcast %200 : vector<8x1xf32> to vector<8x32xf32>
      %202 = arith.mulf %197, %201 : vector<8x32xf32>
      %203 = vector.broadcast %183 : vector<1x32xf32> to vector<8x32xf32>
      %204 = arith.mulf %202, %203 : vector<8x32xf32>
      %205 = vector.broadcast %184 : vector<1x32xf32> to vector<8x32xf32>
      %206 = arith.addf %204, %205 : vector<8x32xf32>
      %c0_103 = arith.constant 0 : index
      %c0_104 = arith.constant 0 : index
      %207 = vector.load %arg7[%c0_103, %c0_104] : memref<32x64xf32, #tpu.memory_space<vmem>>, vector<32x64xf32>
      %cst_105 = arith.constant dense<0.000000e+00> : vector<8x64xf32>
      %208 = tpu.matmul %206, %207, %cst_105 {dimension_numbers = #tpu.dot_dimension_numbers<[1], [0], [0], [1], [0, 0, 1, 1], [], []>} : vector<8x32xf32>, vector<32x64xf32>, vector<8x64xf32> -> vector<8x64xf32>
      %c0_106 = arith.constant 0 : index
      %c0_107 = arith.constant 0 : index
      %209 = vector.load %arg8[%c0_106, %c0_107] : memref<1x64xf32, #tpu.memory_space<vmem>>, vector<1x64xf32>
      %210 = vector.broadcast %209 : vector<1x64xf32> to vector<8x64xf32>
      %211 = arith.addf %208, %210 : vector<8x64xf32>
      %212 = vector.extract_strided_slice %211 {offsets = [0, 0], sizes = [8, 32], strides = [1, 1]} : vector<8x64xf32> to vector<8x32xf32>
      %213 = vector.extract_strided_slice %211 {offsets = [0, 32], sizes = [8, 32], strides = [1, 1]} : vector<8x64xf32> to vector<8x32xf32>
      %214 = vector.shape_cast %212 : vector<8x32xf32> to vector<8x4x8xf32>
      %215 = tpu.transpose %214, [1, 2, 0] : vector<8x4x8xf32> -> vector<4x8x8xf32>
      %c0_108 = arith.constant 0 : index
      %c0_109 = arith.constant 0 : index
      %c8_110 = arith.constant 8 : index
      %216 = vector.load %arg18[%c0_108, %c0_109, %c8_110] : memref<4x8x16xf32, #tpu.memory_space<vmem>>, vector<4x8x8xf32>
      tpu.vector_store %arg18[%c0_108, %c0_109, %c8_110], %215 {strides = array<i32>} : memref<4x8x16xf32, #tpu.memory_space<vmem>>, vector<4x8x8xf32>,
      %217 = vector.shape_cast %213 : vector<8x32xf32> to vector<8x4x8xf32>
      %218 = tpu.transpose %217, [1, 0, 2] : vector<8x4x8xf32> -> vector<4x8x8xf32>
      %c0_111 = arith.constant 0 : index
      %c8_112 = arith.constant 8 : index
      %c0_113 = arith.constant 0 : index
      %219 = vector.load %arg19[%c0_111, %c8_112, %c0_113] : memref<4x16x8xf32, #tpu.memory_space<vmem>>, vector<4x8x8xf32>
      tpu.vector_store %arg19[%c0_111, %c8_112, %c0_113], %218 {strides = array<i32>} : memref<4x16x8xf32, #tpu.memory_space<vmem>>, vector<4x8x8xf32>,
    } else {
    }
    %c8_i32 = arith.constant 8 : i32
    %3 = arith.muli %arg1, %c8_i32 : i32
    %4 = tpu.assume_multiple %3, 8 : i32
    %c0 = arith.constant 0 : index
    %5 = arith.index_cast %4 : i32 to index
    %c0_1 = arith.constant 0 : index
    %6 = vector.load %arg2[%c0, %5, %c0_1] : memref<1x16x32xf32, #tpu.memory_space<vmem>>, vector<1x8x32xf32>
    %7 = vector.shape_cast %6 : vector<1x8x32xf32> to vector<8x32xf32>
    %c0_2 = arith.constant 0 : index
    %c0_3 = arith.constant 0 : index
    %8 = vector.load %arg3[%c0_2, %c0_3] : memref<1x32xf32, #tpu.memory_space<vmem>>, vector<1x32xf32>
    %c0_4 = arith.constant 0 : index
    %c0_5 = arith.constant 0 : index
    %9 = vector.load %arg4[%c0_4, %c0_5] : memref<1x32xf32, #tpu.memory_space<vmem>>, vector<1x32xf32>
    %cst = arith.constant dense<0.000000e+00> : vector<8xf32>
    %10 = vector.multi_reduction <add>, %7, %cst [1] : vector<8x32xf32> to vector<8xf32>
    %11 = vector.shape_cast %10 : vector<8xf32> to vector<8x1xf32>
    %cst_6 = arith.constant 3.200000e+01 : f32
    %12 = vector.broadcast %cst_6 : f32 to vector<8x1xf32>
    %13 = arith.divf %11, %12 : vector<8x1xf32>
    %14 = vector.broadcast %13 : vector<8x1xf32> to vector<8x32xf32>
    %15 = arith.subf %7, %14 : vector<8x32xf32>
    %16 = arith.mulf %15, %15 : vector<8x32xf32>
    %cst_7 = arith.constant dense<0.000000e+00> : vector<8xf32>
    %17 = vector.multi_reduction <add>, %16, %cst_7 [1] : vector<8x32xf32> to vector<8xf32>
    %18 = vector.shape_cast %17 : vector<8xf32> to vector<8x1xf32>
    %cst_8 = arith.constant 3.200000e+01 : f32
    %19 = vector.broadcast %cst_8 : f32 to vector<8x1xf32>
    %20 = arith.divf %18, %19 : vector<8x1xf32>
    %21 = vector.broadcast %13 : vector<8x1xf32> to vector<8x32xf32>
    %22 = arith.subf %7, %21 : vector<8x32xf32>
    %cst_9 = arith.constant 9.99999974E-6 : f32
    %23 = vector.broadcast %cst_9 : f32 to vector<8x1xf32>
    %24 = arith.addf %20, %23 : vector<8x1xf32>
    %25 = math.rsqrt %24 : vector<8x1xf32>
    %26 = vector.broadcast %25 : vector<8x1xf32> to vector<8x32xf32>
    %27 = arith.mulf %22, %26 : vector<8x32xf32>
    %28 = vector.broadcast %8 : vector<1x32xf32> to vector<8x32xf32>
    %29 = arith.mulf %27, %28 : vector<8x32xf32>
    %30 = vector.broadcast %9 : vector<1x32xf32> to vector<8x32xf32>
    %31 = arith.addf %29, %30 : vector<8x32xf32>
    %c0_10 = arith.constant 0 : index
    %c0_11 = arith.constant 0 : index
    %32 = vector.load %arg5[%c0_10, %c0_11] : memref<32x32xf32, #tpu.memory_space<vmem>>, vector<32x32xf32>
    %cst_12 = arith.constant dense<0.000000e+00> : vector<8x32xf32>
    %33 = tpu.matmul %31, %32, %cst_12 {dimension_numbers = #tpu.dot_dimension_numbers<[1], [0], [0], [1], [0, 0, 1, 1], [], []>} : vector<8x32xf32>, vector<32x32xf32>, vector<8x32xf32> -> vector<8x32xf32>
    %c0_13 = arith.constant 0 : index
    %c0_14 = arith.constant 0 : index
    %34 = vector.load %arg6[%c0_13, %c0_14] : memref<1x32xf32, #tpu.memory_space<vmem>>, vector<1x32xf32>
    %35 = vector.broadcast %34 : vector<1x32xf32> to vector<8x32xf32>
    %36 = arith.addf %33, %35 : vector<8x32xf32>
    %cst_15 = arith.constant 0.353553385 : f32
    %37 = vector.broadcast %cst_15 : f32 to vector<8x32xf32>
    %38 = arith.mulf %36, %37 : vector<8x32xf32>
    %39 = vector.shape_cast %38 : vector<8x32xf32> to vector<8x4x8xf32>
    %40 = tpu.transpose %39, [1, 0, 2] : vector<8x4x8xf32> -> vector<4x8x8xf32>
    %c0_16 = arith.constant 0 : index
    %c0_17 = arith.constant 0 : index
    %c0_18 = arith.constant 0 : index
    %41 = vector.load %arg18[%c0_16, %c0_17, %c0_18] : memref<4x8x16xf32, #tpu.memory_space<vmem>>, vector<4x8x16xf32>
    "tpu.trace_start"() <{level = 10 : i32, message = "hqd,hdk->hqk"}> : () -> ()
    %cst_19 = arith.constant dense<0.000000e+00> : vector<4x8x16xf32>
    %42 = tpu.matmul %40, %41, %cst_19 {dimension_numbers = #tpu.dot_dimension_numbers<[2], [1], [1], [2], [0, 0, 0, 1, 1, 2], [0], [0]>} : vector<4x8x8xf32>, vector<4x8x16xf32>, vector<4x8x16xf32> -> vector<4x8x16xf32>
    "tpu.trace_stop"() : () -> ()
    %cst_20 = arith.constant dense<0xFF800000> : vector<4x8xf32>
    %43 = vector.multi_reduction <maximumf>, %42, %cst_20 [2] : vector<4x8x16xf32> to vector<4x8xf32>
    %44 = vector.shape_cast %43 : vector<4x8xf32> to vector<4x8x1xf32>
    %45 = vector.broadcast %44 : vector<4x8x1xf32> to vector<4x8x16xf32>
    %46 = arith.subf %42, %45 : vector<4x8x16xf32>
    %47 = math.exp %46 : vector<4x8x16xf32>
    %cst_21 = arith.constant dense<0.000000e+00> : vector<4x8xf32>
    %48 = vector.multi_reduction <add>, %47, %cst_21 [2] : vector<4x8x16xf32> to vector<4x8xf32>
    %49 = vector.shape_cast %48 : vector<4x8xf32> to vector<4x8x1xf32>
    %c0_22 = arith.constant 0 : index
    %c0_23 = arith.constant 0 : index
    %c0_24 = arith.constant 0 : index
    %50 = vector.load %arg19[%c0_22, %c0_23, %c0_24] : memref<4x16x8xf32, #tpu.memory_space<vmem>>, vector<4x16x8xf32>
    "tpu.trace_start"() <{level = 10 : i32, message = "hqk,hkd->hqd"}> : () -> ()
    %cst_25 = arith.constant dense<0.000000e+00> : vector<4x8x8xf32>
    %51 = tpu.matmul %47, %50, %cst_25 {dimension_numbers = #tpu.dot_dimension_numbers<[2], [1], [1], [2], [0, 0, 0, 1, 1, 2], [0], [0]>} : vector<4x8x16xf32>, vector<4x16x8xf32>, vector<4x8x8xf32> -> vector<4x8x8xf32>
    "tpu.trace_stop"() : () -> ()
    %52 = tpu.reciprocal %49 : vector<4x8x1xf32> -> vector<4x8x1xf32>
    %53 = vector.broadcast %52 : vector<4x8x1xf32> to vector<4x8x8xf32>
    %54 = arith.mulf %51, %53 : vector<4x8x8xf32>
    %55 = tpu.transpose %54, [1, 0, 2] : vector<4x8x8xf32> -> vector<8x4x8xf32>
    %56 = vector.shape_cast %55 : vector<8x4x8xf32> to vector<8x32xf32>
    %c0_26 = arith.constant 0 : index
    %c0_27 = arith.constant 0 : index
    %57 = vector.load %arg9[%c0_26, %c0_27] : memref<32x32xf32, #tpu.memory_space<vmem>>, vector<32x32xf32>
    %cst_28 = arith.constant dense<0.000000e+00> : vector<8x32xf32>
    %58 = tpu.matmul %56, %57, %cst_28 {dimension_numbers = #tpu.dot_dimension_numbers<[1], [0], [0], [1], [0, 0, 1, 1], [], []>} : vector<8x32xf32>, vector<32x32xf32>, vector<8x32xf32> -> vector<8x32xf32>
    %c0_29 = arith.constant 0 : index
    %c0_30 = arith.constant 0 : index
    %59 = vector.load %arg10[%c0_29, %c0_30] : memref<1x32xf32, #tpu.memory_space<vmem>>, vector<1x32xf32>
    %60 = vector.broadcast %59 : vector<1x32xf32> to vector<8x32xf32>
    %61 = arith.addf %58, %60 : vector<8x32xf32>
    %62 = arith.addf %7, %61 : vector<8x32xf32>
    %c0_31 = arith.constant 0 : index
    %c0_32 = arith.constant 0 : index
    %63 = vector.load %arg11[%c0_31, %c0_32] : memref<1x32xf32, #tpu.memory_space<vmem>>, vector<1x32xf32>
    %c0_33 = arith.constant 0 : index
    %c0_34 = arith.constant 0 : index
    %64 = vector.load %arg12[%c0_33, %c0_34] : memref<1x32xf32, #tpu.memory_space<vmem>>, vector<1x32xf32>
    %cst_35 = arith.constant dense<0.000000e+00> : vector<8xf32>
    %65 = vector.multi_reduction <add>, %62, %cst_35 [1] : vector<8x32xf32> to vector<8xf32>
    %66 = vector.shape_cast %65 : vector<8xf32> to vector<8x1xf32>
    %cst_36 = arith.constant 3.200000e+01 : f32
    %67 = vector.broadcast %cst_36 : f32 to vector<8x1xf32>
    %68 = arith.divf %66, %67 : vector<8x1xf32>
    %69 = vector.broadcast %68 : vector<8x1xf32> to vector<8x32xf32>
    %70 = arith.subf %62, %69 : vector<8x32xf32>
    %71 = arith.mulf %70, %70 : vector<8x32xf32>
    %cst_37 = arith.constant dense<0.000000e+00> : vector<8xf32>
    %72 = vector.multi_reduction <add>, %71, %cst_37 [1] : vector<8x32xf32> to vector<8xf32>
    %73 = vector.shape_cast %72 : vector<8xf32> to vector<8x1xf32>
    %cst_38 = arith.constant 3.200000e+01 : f32
    %74 = vector.broadcast %cst_38 : f32 to vector<8x1xf32>
    %75 = arith.divf %73, %74 : vector<8x1xf32>
    %76 = vector.broadcast %68 : vector<8x1xf32> to vector<8x32xf32>
    %77 = arith.subf %62, %76 : vector<8x32xf32>
    %cst_39 = arith.constant 9.99999974E-6 : f32
    %78 = vector.broadcast %cst_39 : f32 to vector<8x1xf32>
    %79 = arith.addf %75, %78 : vector<8x1xf32>
    %80 = math.rsqrt %79 : vector<8x1xf32>
    %81 = vector.broadcast %80 : vector<8x1xf32> to vector<8x32xf32>
    %82 = arith.mulf %77, %81 : vector<8x32xf32>
    %83 = vector.broadcast %63 : vector<1x32xf32> to vector<8x32xf32>
    %84 = arith.mulf %82, %83 : vector<8x32xf32>
    %85 = vector.broadcast %64 : vector<1x32xf32> to vector<8x32xf32>
    %86 = arith.addf %84, %85 : vector<8x32xf32>
    %c0_40 = arith.constant 0 : index
    %c0_41 = arith.constant 0 : index
    %87 = vector.load %arg13[%c0_40, %c0_41] : memref<32x128xf32, #tpu.memory_space<vmem>>, vector<32x128xf32>
    %cst_42 = arith.constant dense<0.000000e+00> : vector<8x128xf32>
    %88 = tpu.matmul %86, %87, %cst_42 {dimension_numbers = #tpu.dot_dimension_numbers<[1], [0], [0], [1], [0, 0, 1, 1], [], []>} : vector<8x32xf32>, vector<32x128xf32>, vector<8x128xf32> -> vector<8x128xf32>
    %c0_43 = arith.constant 0 : index
    %c0_44 = arith.constant 0 : index
    %89 = vector.load %arg14[%c0_43, %c0_44] : memref<1x128xf32, #tpu.memory_space<vmem>>, vector<1x128xf32>
    %90 = vector.broadcast %89 : vector<1x128xf32> to vector<8x128xf32>
    %91 = arith.addf %88, %90 : vector<8x128xf32>
    %cst_45 = arith.constant 5.000000e-01 : f32
    %92 = vector.broadcast %cst_45 : f32 to vector<8x128xf32>
    %93 = arith.mulf %92, %91 : vector<8x128xf32>
    %cst_46 = arith.constant 0.707106769 : f32
    %94 = vector.broadcast %cst_46 : f32 to vector<8x128xf32>
    %95 = arith.mulf %91, %94 : vector<8x128xf32>
    %cst_47 = arith.constant 0.000000e+00 : f32
    %96 = vector.broadcast %cst_47 : f32 to vector<8x128xf32>
    %97 = arith.cmpf oge, %95, %96 : vector<8x128xf32>
    %cst_48 = arith.constant 1.000000e+00 : f32
    %cst_49 = arith.constant -1.000000e+00 : f32
    %98 = vector.broadcast %cst_48 : f32 to vector<8x128xf32>
    %99 = vector.broadcast %cst_49 : f32 to vector<8x128xf32>
    %100 = arith.select %97, %98, %99 : vector<8x128xi1>, vector<8x128xf32>
    %101 = math.absf %95 : vector<8x128xf32>
    %cst_50 = arith.constant 0.327591091 : f32
    %102 = vector.broadcast %cst_50 : f32 to vector<8x128xf32>
    %103 = arith.mulf %102, %101 : vector<8x128xf32>
    %cst_51 = arith.constant 1.000000e+00 : f32
    %104 = vector.broadcast %cst_51 : f32 to vector<8x128xf32>
    %105 = arith.addf %104, %103 : vector<8x128xf32>
    %cst_52 = arith.constant 1.000000e+00 : f32
    %106 = vector.broadcast %cst_52 : f32 to vector<8x128xf32>
    %107 = arith.divf %106, %105 : vector<8x128xf32>
    %cst_53 = arith.constant 1.06140542 : f32
    %108 = vector.broadcast %cst_53 : f32 to vector<8x128xf32>
    %109 = arith.mulf %108, %107 : vector<8x128xf32>
    %cst_54 = arith.constant -1.45315206 : f32
    %110 = vector.broadcast %cst_54 : f32 to vector<8x128xf32>
    %111 = arith.addf %109, %110 : vector<8x128xf32>
    %112 = arith.mulf %111, %107 : vector<8x128xf32>
    %cst_55 = arith.constant 1.42141378 : f32
    %113 = vector.broadcast %cst_55 : f32 to vector<8x128xf32>
    %114 = arith.addf %112, %113 : vector<8x128xf32>
    %115 = arith.mulf %114, %107 : vector<8x128xf32>
    %cst_56 = arith.constant -0.284496725 : f32
    %116 = vector.broadcast %cst_56 : f32 to vector<8x128xf32>
    %117 = arith.addf %115, %116 : vector<8x128xf32>
    %118 = arith.mulf %117, %107 : vector<8x128xf32>
    %cst_57 = arith.constant 0.254829586 : f32
    %119 = vector.broadcast %cst_57 : f32 to vector<8x128xf32>
    %120 = arith.addf %118, %119 : vector<8x128xf32>
    %121 = arith.mulf %120, %107 : vector<8x128xf32>
    %cst_58 = arith.constant 0.000000e+00 : f32
    %122 = vector.broadcast %cst_58 : f32 to vector<8x128xf32>
    %123 = arith.subf %122, %101 : vector<8x128xf32>
    %124 = arith.mulf %123, %101 : vector<8x128xf32>
    %125 = math.exp %124 : vector<8x128xf32>
    %126 = arith.mulf %121, %125 : vector<8x128xf32>
    %cst_59 = arith.constant 1.000000e+00 : f32
    %127 = vector.broadcast %cst_59 : f32 to vector<8x128xf32>
    %128 = arith.subf %127, %126 : vector<8x128xf32>
    %129 = arith.mulf %100, %128 : vector<8x128xf32>
    %cst_60 = arith.constant 1.000000e+00 : f32
    %130 = vector.broadcast %cst_60 : f32 to vector<8x128xf32>
    %131 = arith.addf %130, %129 : vector<8x128xf32>
    %132 = arith.mulf %93, %131 : vector<8x128xf32>
    %c0_61 = arith.constant 0 : index
    %c0_62 = arith.constant 0 : index
    %133 = vector.load %arg15[%c0_61, %c0_62] : memref<128x32xf32, #tpu.memory_space<vmem>>, vector<128x32xf32>
    %cst_63 = arith.constant dense<0.000000e+00> : vector<8x32xf32>
    %134 = tpu.matmul %132, %133, %cst_63 {dimension_numbers = #tpu.dot_dimension_numbers<[1], [0], [0], [1], [0, 0, 1, 1], [], []>} : vector<8x128xf32>, vector<128x32xf32>, vector<8x32xf32> -> vector<8x32xf32>
    %c0_64 = arith.constant 0 : index
    %c0_65 = arith.constant 0 : index
    %135 = vector.load %arg16[%c0_64, %c0_65] : memref<1x32xf32, #tpu.memory_space<vmem>>, vector<1x32xf32>
    %136 = vector.broadcast %135 : vector<1x32xf32> to vector<8x32xf32>
    %137 = arith.addf %134, %136 : vector<8x32xf32>
    %138 = arith.addf %62, %137 : vector<8x32xf32>
    %c0_66 = arith.constant 0 : index
    %c0_67 = arith.constant 0 : index
    %c0_68 = arith.constant 0 : index
    %139 = vector.load %arg17[%c0_66, %c0_67, %c0_68] : memref<1x8x32xf32, #tpu.memory_space<vmem>>, vector<1x8x32xf32>
    %140 = vector.shape_cast %139 : vector<1x8x32xf32> to vector<8x32xf32>
    %141 = vector.shape_cast %138 : vector<8x32xf32> to vector<1x8x32xf32>
    tpu.vector_store %arg17[%c0_66, %c0_67, %c0_68], %141 {strides = array<i32>} : memref<1x8x32xf32, #tpu.memory_space<vmem>>, vector<1x8x32xf32>,
    return
  }
  func.func @transform_0(%arg0: i32, %arg1: i32) -> (i32, i32, i32) {
    %c0_i32 = arith.constant 0 : i32
    %c0_i32_0 = arith.constant 0 : i32
    %c0_i32_1 = arith.constant 0 : i32
    return %arg0, %c0_i32, %c0_i32_0 : i32, i32, i32
  }
  func.func @transform_1(%arg0: i32, %arg1: i32) -> (i32, i32) {
    %c0_i32 = arith.constant 0 : i32
    %c0_i32_0 = arith.constant 0 : i32
    %c0_i32_1 = arith.constant 0 : i32
    return %c0_i32, %c0_i32_0 : i32, i32
  }
  func.func @transform_2(%arg0: i32, %arg1: i32) -> (i32, i32) {
    %c0_i32 = arith.constant 0 : i32
    %c0_i32_0 = arith.constant 0 : i32
    %c0_i32_1 = arith.constant 0 : i32
    return %c0_i32, %c0_i32_0 : i32, i32
  }
  func.func @transform_3(%arg0: i32, %arg1: i32) -> (i32, i32) {
    %c0_i32 = arith.constant 0 : i32
    %c0_i32_0 = arith.constant 0 : i32
    %c0_i32_1 = arith.constant 0 : i32
    return %c0_i32, %c0_i32_0 : i32, i32
  }
  func.func @transform_4(%arg0: i32, %arg1: i32) -> (i32, i32) {
    %c0_i32 = arith.constant 0 : i32
    %c0_i32_0 = arith.constant 0 : i32
    %c0_i32_1 = arith.constant 0 : i32
    return %c0_i32, %c0_i32_0 : i32, i32
  }
  func.func @transform_5(%arg0: i32, %arg1: i32) -> (i32, i32) {
    %c0_i32 = arith.constant 0 : i32
    %c0_i32_0 = arith.constant 0 : i32
    %c0_i32_1 = arith.constant 0 : i32
    return %c0_i32, %c0_i32_0 : i32, i32
  }
  func.func @transform_6(%arg0: i32, %arg1: i32) -> (i32, i32) {
    %c0_i32 = arith.constant 0 : i32
    %c0_i32_0 = arith.constant 0 : i32
    %c0_i32_1 = arith.constant 0 : i32
    return %c0_i32, %c0_i32_0 : i32, i32
  }
  func.func @transform_7(%arg0: i32, %arg1: i32) -> (i32, i32) {
    %c0_i32 = arith.constant 0 : i32
    %c0_i32_0 = arith.constant 0 : i32
    %c0_i32_1 = arith.constant 0 : i32
    return %c0_i32, %c0_i32_0 : i32, i32
  }
  func.func @transform_8(%arg0: i32, %arg1: i32) -> (i32, i32) {
    %c0_i32 = arith.constant 0 : i32
    %c0_i32_0 = arith.constant 0 : i32
    %c0_i32_1 = arith.constant 0 : i32
    return %c0_i32, %c0_i32_0 : i32, i32
  }
  func.func @transform_9(%arg0: i32, %arg1: i32) -> (i32, i32) {
    %c0_i32 = arith.constant 0 : i32
    %c0_i32_0 = arith.constant 0 : i32
    %c0_i32_1 = arith.constant 0 : i32
    return %c0_i32, %c0_i32_0 : i32, i32
  }
  func.func @transform_10(%arg0: i32, %arg1: i32) -> (i32, i32) {
    %c0_i32 = arith.constant 0 : i32
    %c0_i32_0 = arith.constant 0 : i32
    %c0_i32_1 = arith.constant 0 : i32
    return %c0_i32, %c0_i32_0 : i32, i32
  }
  func.func @transform_11(%arg0: i32, %arg1: i32) -> (i32, i32) {
    %c0_i32 = arith.constant 0 : i32
    %c0_i32_0 = arith.constant 0 : i32
    %c0_i32_1 = arith.constant 0 : i32
    return %c0_i32, %c0_i32_0 : i32, i32
  }
  func.func @transform_12(%arg0: i32, %arg1: i32) -> (i32, i32) {
    %c0_i32 = arith.constant 0 : i32
    %c0_i32_0 = arith.constant 0 : i32
    %c0_i32_1 = arith.constant 0 : i32
    return %c0_i32, %c0_i32_0 : i32, i32
  }
  func.func @transform_13(%arg0: i32, %arg1: i32) -> (i32, i32) {
    %c0_i32 = arith.constant 0 : i32
    %c0_i32_0 = arith.constant 0 : i32
    %c0_i32_1 = arith.constant 0 : i32
    return %c0_i32, %c0_i32_0 : i32, i32
  }
  func.func @transform_14(%arg0: i32, %arg1: i32) -> (i32, i32) {
    %c0_i32 = arith.constant 0 : i32
    %c0_i32_0 = arith.constant 0 : i32
    %c0_i32_1 = arith.constant 0 : i32
    return %c0_i32, %c0_i32_0 : i32, i32
  }
  func.func @transform_15(%arg0: i32, %arg1: i32) -> (i32, i32, i32) {
    %c0_i32 = arith.constant 0 : i32
    %c0_i32_0 = arith.constant 0 : i32
    return %arg0, %arg1, %c0_i32 : i32, i32, i32
  }
}

</mosaic_0001>

<llo_original>
// kernel: tpu_custom_call.1
$region0: #{tpu_custom_call.1}
  #allocation0 [shape = 'u32[]', space=smem, size = 0x4, offset = 0x4, fixed_abs, tag = 'smem constant byte address 0x4 - core index']
  #allocation1 [shape = 'u32[144,128]{1,0:T(1,128)}', space=vmem, size = 0x12000, scoped, tag = 'internal scratch']
  #allocation2 [shape = 'f32[4,8,16]{2,1,0:T(8,128)}', space=vmem, size = 0x4000, scoped, tag = 'scratch operand']
  #allocation3 [shape = 'f32[4,16,8]{2,1,0:T(8,128)}', space=vmem, size = 0x8000, scoped, tag = 'scratch operand']
  %s0 = inlined_call_operand.vmem [shape: f32[2,16,32], index: 0, kind: input, shape index: {}]
  %s1 = inlined_call_operand.vmem [shape: f32[1,32], index: 1, kind: input, shape index: {}]
  %s2 = inlined_call_operand.vmem [shape: f32[1,32], index: 2, kind: input, shape index: {}]
  %s3 = inlined_call_operand.vmem [shape: f32[32,32], index: 3, kind: input, shape index: {}]
  %s4 = inlined_call_operand.vmem [shape: f32[1,32], index: 4, kind: input, shape index: {}]
  %s5 = inlined_call_operand.vmem [shape: f32[32,64], index: 5, kind: input, shape index: {}]
  %s6 = inlined_call_operand.vmem [shape: f32[1,64], index: 6, kind: input, shape index: {}]
  %s7 = inlined_call_operand.vmem [shape: f32[32,32], index: 7, kind: input, shape index: {}]
  %s8 = inlined_call_operand.vmem [shape: f32[1,32], index: 8, kind: input, shape index: {}]
  %s9 = inlined_call_operand.vmem [shape: f32[1,32], index: 9, kind: input, shape index: {}]
  %s10 = inlined_call_operand.vmem [shape: f32[1,32], index: 10, kind: input, shape index: {}]
  %s11 = inlined_call_operand.vmem [shape: f32[32,128], index: 11, kind: input, shape index: {}]
  %s12 = inlined_call_operand.vmem [shape: f32[1,128], index: 12, kind: input, shape index: {}]
  %s13 = inlined_call_operand.vmem [shape: f32[128,32], index: 13, kind: input, shape index: {}]
  %s14 = inlined_call_operand.vmem [shape: f32[1,32], index: 14, kind: input, shape index: {}]
  %s15 = inlined_call_operand.hbm [shape: f32[2,16,32], index: 15, kind: output, shape index: {}]
  %s16 = sld [smem:[#allocation0]]
  $region97: #{tpu_custom_call.1} parent=0
    _
  %s18 = ssub.s32 1, %s16
  %s19 = scalar_select 0, %s18, %s16
  $region1: #{tpu_custom_call.1} parent=0
    #allocation4 [shape = 'u8[8192]{0}', space=vmem, size = 0x2000, scoped, tag = 'output window, operand 0']
    #allocation5 [shape = 's32[2]{0}', space=sflag, size = 0x8, scoped, tag = 'scoped memory for tpu_custom_call.1']
    %20 = vsyncpa [#allocation5], 0
    %s21 = scalar_lea.sflag [#allocation5], 1
    %22 = vsyncpa %s21, 0
    loop: start=0, step=1, limit=6
    $region2: #{tpu_custom_call.1} parent=1 // loop_pre_header
      _
    $region3: #{tpu_custom_call.1} parent=1 // loop_header
      %s24 = sphi 0, %s28
      %p25 = scmp.ge.s32.totalorder %s24, 6
      %s31 = sphi 0, %s43
      %s32 = sphi 0, %s39
      %s33 = sphi 0, %s31
      %s34 = sphi 0, %s32
      %s35 = sphi 0, %s33
      %s36 = sphi 0, %s34
      %s46 = sphi 0, %s48
      %s49 = sphi 0, %s46
      %s50 = sphi 0, %s49
      %s66 = sphi 0, %s50
      %s70 = sphi 0, %s70
      %s72 = sphi 0, %s70
      %s73 = sphi 0, %s72
      %s87 = sphi 0, %s73
      %s91 = sphi 0, %s91
      %s93 = sphi 0, %s91
      %s94 = sphi 0, %s93
      %s108 = sphi 0, %s94
      %s112 = sphi 0, %s112
      %s114 = sphi 0, %s112
      %s115 = sphi 0, %s114
      %s129 = sphi 0, %s115
      %s133 = sphi 0, %s133
      %s135 = sphi 0, %s133
      %s136 = sphi 0, %s135
      %s150 = sphi 0, %s136
      %s154 = sphi 0, %s154
      %s156 = sphi 0, %s154
      %s157 = sphi 0, %s156
      %s171 = sphi 0, %s157
      %s175 = sphi 0, %s175
      %s177 = sphi 0, %s175
      %s178 = sphi 0, %s177
      %s192 = sphi 0, %s178
      %s196 = sphi 0, %s196
      %s198 = sphi 0, %s196
      %s199 = sphi 0, %s198
      %s213 = sphi 0, %s199
      %s217 = sphi 0, %s217
      %s219 = sphi 0, %s217
      %s220 = sphi 0, %s219
      %s234 = sphi 0, %s220
      %s238 = sphi 0, %s238
      %s240 = sphi 0, %s238
      %s241 = sphi 0, %s240
      %s255 = sphi 0, %s241
      %s259 = sphi 0, %s259
      %s261 = sphi 0, %s259
      %s262 = sphi 0, %s261
      %s276 = sphi 0, %s262
      %s280 = sphi 0, %s280
      %s282 = sphi 0, %s280
      %s283 = sphi 0, %s282
      %s297 = sphi 0, %s283
      %s301 = sphi 0, %s301
      %s303 = sphi 0, %s301
      %s304 = sphi 0, %s303
      %s318 = sphi 0, %s304
      %s322 = sphi 0, %s322
      %s324 = sphi 0, %s322
      %s325 = sphi 0, %s324
      %s339 = sphi 0, %s325
      %s343 = sphi 0, %s343
      %s345 = sphi 0, %s343
      %s346 = sphi 0, %s345
      %s360 = sphi 0, %s346
      %s368 = sphi 0, %s370
      %s371 = sphi 0, %s368
      %s372 = sphi 0, %s371
      %s388 = sphi 0, %s372
    $region4: #{tpu_custom_call.1} parent=1 // loop_header_branch
      %27 = sbr.rel (%p25) target = $region8
    $region5: #{tpu_custom_call.1} parent=1 // loop_body
      %s29 = ssub.s32 %s24, 1
      %s30 = ssub.s32 %s24, 2
      %s37 = sadd.s32 1, %s32
      %p38 = scmp.ge.s32.totalorder %s37, 2
      %s39 = scalar_select %p38, 0, %s37
      %s40 = sadd.s32 1, %s31
      %s41 = scalar_select %p38, %s40, %s31
      %p42 = scmp.ge.s32.totalorder %s41, 2
      %s43 = scalar_select %p42, 0, %s41
      %s44 = ssub.s32 %s31, %s43
      %p45 = scmp.eq.s32.totalorder %s44, 0
      %s47 = sadd.s32 %s46, 1
      %s48 = scalar_select %p45, %s46, %s47
      %p51 = pneg %p45
      %p52 = scmp.eq.s32.totalorder %s24, 3
      %p53 = por %p51, %p52
      %p54 = scmp.ne.s32.totalorder %s46, %s49
      %p55 = scmp.eq.s32.totalorder %s24, 0
      %p56 = por %p54, %p55
      %p57 = scmp.ne.s32.totalorder %s46, %s49
      %p58 = scmp.eq.s32.totalorder %s29, 3
      %p59 = por %p57, %p58
      %p60 = scmp.ne.s32.totalorder %s49, %s50
      %p61 = scmp.eq.s32.totalorder %s29, 0
      %p62 = por %p60, %p61
      %p63 = scmp.ne.s32.totalorder %s49, %s50
      %p64 = scmp.eq.s32.totalorder %s30, 3
      %p65 = por %p63, %p64
      %p67 = scmp.ne.s32.totalorder %s50, %s66
      %p68 = scmp.eq.s32.totalorder %s30, 0
      %p69 = por %p67, %p68
      %s71 = sadd.s32 %s70, 1
      %p74 = scmp.eq.s32.totalorder %s24, 3
      %p75 = scmp.ne.s32.totalorder %s70, %s72
      %p76 = scmp.eq.s32.totalorder %s24, 0
      %p77 = por %p75, %p76
      %p78 = scmp.ne.s32.totalorder %s70, %s72
      %p79 = scmp.eq.s32.totalorder %s29, 3
      %p80 = por %p78, %p79
      %p81 = scmp.ne.s32.totalorder %s72, %s73
      %p82 = scmp.eq.s32.totalorder %s29, 0
      %p83 = por %p81, %p82
      %p84 = scmp.ne.s32.totalorder %s72, %s73
      %p85 = scmp.eq.s32.totalorder %s30, 3
      %p86 = por %p84, %p85
      %p88 = scmp.ne.s32.totalorder %s73, %s87
      %p89 = scmp.eq.s32.totalorder %s30, 0
      %p90 = por %p88, %p89
      %s92 = sadd.s32 %s91, 1
      %p95 = scmp.eq.s32.totalorder %s24, 3
      %p96 = scmp.ne.s32.totalorder %s91, %s93
      %p97 = scmp.eq.s32.totalorder %s24, 0
      %p98 = por %p96, %p97
      %p99 = scmp.ne.s32.totalorder %s91, %s93
      %p100 = scmp.eq.s32.totalorder %s29, 3
      %p101 = por %p99, %p100
      %p102 = scmp.ne.s32.totalorder %s93, %s94
      %p103 = scmp.eq.s32.totalorder %s29, 0
      %p104 = por %p102, %p103
      %p105 = scmp.ne.s32.totalorder %s93, %s94
      %p106 = scmp.eq.s32.totalorder %s30, 3
      %p107 = por %p105, %p106
      %p109 = scmp.ne.s32.totalorder %s94, %s108
      %p110 = scmp.eq.s32.totalorder %s30, 0
      %p111 = por %p109, %p110
      %s113 = sadd.s32 %s112, 1
      %p116 = scmp.eq.s32.totalorder %s24, 3
      %p117 = scmp.ne.s32.totalorder %s112, %s114
      %p118 = scmp.eq.s32.totalorder %s24, 0
      %p119 = por %p117, %p118
      %p120 = scmp.ne.s32.totalorder %s112, %s114
      %p121 = scmp.eq.s32.totalorder %s29, 3
      %p122 = por %p120, %p121
      %p123 = scmp.ne.s32.totalorder %s114, %s115
      %p124 = scmp.eq.s32.totalorder %s29, 0
      %p125 = por %p123, %p124
      %p126 = scmp.ne.s32.totalorder %s114, %s115
      %p127 = scmp.eq.s32.totalorder %s30, 3
      %p128 = por %p126, %p127
      %p130 = scmp.ne.s32.totalorder %s115, %s129
      %p131 = scmp.eq.s32.totalorder %s30, 0
      %p132 = por %p130, %p131
      %s134 = sadd.s32 %s133, 1
      %p137 = scmp.eq.s32.totalorder %s24, 3
      %p138 = scmp.ne.s32.totalorder %s133, %s135
      %p139 = scmp.eq.s32.totalorder %s24, 0
      %p140 = por %p138, %p139
      %p141 = scmp.ne.s32.totalorder %s133, %s135
      %p142 = scmp.eq.s32.totalorder %s29, 3
      %p143 = por %p141, %p142
      %p144 = scmp.ne.s32.totalorder %s135, %s136
      %p145 = scmp.eq.s32.totalorder %s29, 0
      %p146 = por %p144, %p145
      %p147 = scmp.ne.s32.totalorder %s135, %s136
      %p148 = scmp.eq.s32.totalorder %s30, 3
      %p149 = por %p147, %p148
      %p151 = scmp.ne.s32.totalorder %s136, %s150
      %p152 = scmp.eq.s32.totalorder %s30, 0
      %p153 = por %p151, %p152
      %s155 = sadd.s32 %s154, 1
      %p158 = scmp.eq.s32.totalorder %s24, 3
      %p159 = scmp.ne.s32.totalorder %s154, %s156
      %p160 = scmp.eq.s32.totalorder %s24, 0
      %p161 = por %p159, %p160
      %p162 = scmp.ne.s32.totalorder %s154, %s156
      %p163 = scmp.eq.s32.totalorder %s29, 3
      %p164 = por %p162, %p163
      %p165 = scmp.ne.s32.totalorder %s156, %s157
      %p166 = scmp.eq.s32.totalorder %s29, 0
      %p167 = por %p165, %p166
      %p168 = scmp.ne.s32.totalorder %s156, %s157
      %p169 = scmp.eq.s32.totalorder %s30, 3
      %p170 = por %p168, %p169
      %p172 = scmp.ne.s32.totalorder %s157, %s171
      %p173 = scmp.eq.s32.totalorder %s30, 0
      %p174 = por %p172, %p173
      %s176 = sadd.s32 %s175, 1
      %p179 = scmp.eq.s32.totalorder %s24, 3
      %p180 = scmp.ne.s32.totalorder %s175, %s177
      %p181 = scmp.eq.s32.totalorder %s24, 0
      %p182 = por %p180, %p181
      %p183 = scmp.ne.s32.totalorder %s175, %s177
      %p184 = scmp.eq.s32.totalorder %s29, 3
      %p185 = por %p183, %p184
      %p186 = scmp.ne.s32.totalorder %s177, %s178
      %p187 = scmp.eq.s32.totalorder %s29, 0
      %p188 = por %p186, %p187
      %p189 = scmp.ne.s32.totalorder %s177, %s178
      %p190 = scmp.eq.s32.totalorder %s30, 3
      %p191 = por %p189, %p190
      %p193 = scmp.ne.s32.totalorder %s178, %s192
      %p194 = scmp.eq.s32.totalorder %s30, 0
      %p195 = por %p193, %p194
      %s197 = sadd.s32 %s196, 1
      %p200 = scmp.eq.s32.totalorder %s24, 3
      %p201 = scmp.ne.s32.totalorder %s196, %s198
      %p202 = scmp.eq.s32.totalorder %s24, 0
      %p203 = por %p201, %p202
      %p204 = scmp.ne.s32.totalorder %s196, %s198
      %p205 = scmp.eq.s32.totalorder %s29, 3
      %p206 = por %p204, %p205
      %p207 = scmp.ne.s32.totalorder %s198, %s199
      %p208 = scmp.eq.s32.totalorder %s29, 0
      %p209 = por %p207, %p208
      %p210 = scmp.ne.s32.totalorder %s198, %s199
      %p211 = scmp.eq.s32.totalorder %s30, 3
      %p212 = por %p210, %p211
      %p214 = scmp.ne.s32.totalorder %s199, %s213
      %p215 = scmp.eq.s32.totalorder %s30, 0
      %p216 = por %p214, %p215
      %s218 = sadd.s32 %s217, 1
      %p221 = scmp.eq.s32.totalorder %s24, 3
      %p222 = scmp.ne.s32.totalorder %s217, %s219
      %p223 = scmp.eq.s32.totalorder %s24, 0
      %p224 = por %p222, %p223
      %p225 = scmp.ne.s32.totalorder %s217, %s219
      %p226 = scmp.eq.s32.totalorder %s29, 3
      %p227 = por %p225, %p226
      %p228 = scmp.ne.s32.totalorder %s219, %s220
      %p229 = scmp.eq.s32.totalorder %s29, 0
      %p230 = por %p228, %p229
      %p231 = scmp.ne.s32.totalorder %s219, %s220
      %p232 = scmp.eq.s32.totalorder %s30, 3
      %p233 = por %p231, %p232
      %p235 = scmp.ne.s32.totalorder %s220, %s234
      %p236 = scmp.eq.s32.totalorder %s30, 0
      %p237 = por %p235, %p236
      %s239 = sadd.s32 %s238, 1
      %p242 = scmp.eq.s32.totalorder %s24, 3
      %p243 = scmp.ne.s32.totalorder %s238, %s240
      %p244 = scmp.eq.s32.totalorder %s24, 0
      %p245 = por %p243, %p244
      %p246 = scmp.ne.s32.totalorder %s238, %s240
      %p247 = scmp.eq.s32.totalorder %s29, 3
      %p248 = por %p246, %p247
      %p249 = scmp.ne.s32.totalorder %s240, %s241
      %p250 = scmp.eq.s32.totalorder %s29, 0
      %p251 = por %p249, %p250
      %p252 = scmp.ne.s32.totalorder %s240, %s241
      %p253 = scmp.eq.s32.totalorder %s30, 3
      %p254 = por %p252, %p253
      %p256 = scmp.ne.s32.totalorder %s241, %s255
      %p257 = scmp.eq.s32.totalorder %s30, 0
      %p258 = por %p256, %p257
      %s260 = sadd.s32 %s259, 1
      %p263 = scmp.eq.s32.totalorder %s24, 3
      %p264 = scmp.ne.s32.totalorder %s259, %s261
      %p265 = scmp.eq.s32.totalorder %s24, 0
      %p266 = por %p264, %p265
      %p267 = scmp.ne.s32.totalorder %s259, %s261
      %p268 = scmp.eq.s32.totalorder %s29, 3
      %p269 = por %p267, %p268
      %p270 = scmp.ne.s32.totalorder %s261, %s262
      %p271 = scmp.eq.s32.totalorder %s29, 0
      %p272 = por %p270, %p271
      %p273 = scmp.ne.s32.totalorder %s261, %s262
      %p274 = scmp.eq.s32.totalorder %s30, 3
      %p275 = por %p273, %p274
      %p277 = scmp.ne.s32.totalorder %s262, %s276
      %p278 = scmp.eq.s32.totalorder %s30, 0
      %p279 = por %p277, %p278
      %s281 = sadd.s32 %s280, 1
      %p284 = scmp.eq.s32.totalorder %s24, 3
      %p285 = scmp.ne.s32.totalorder %s280, %s282
      %p286 = scmp.eq.s32.totalorder %s24, 0
      %p287 = por %p285, %p286
      %p288 = scmp.ne.s32.totalorder %s280, %s282
      %p289 = scmp.eq.s32.totalorder %s29, 3
      %p290 = por %p288, %p289
      %p291 = scmp.ne.s32.totalorder %s282, %s283
      %p292 = scmp.eq.s32.totalorder %s29, 0
      %p293 = por %p291, %p292
      %p294 = scmp.ne.s32.totalorder %s282, %s283
      %p295 = scmp.eq.s32.totalorder %s30, 3
      %p296 = por %p294, %p295
      %p298 = scmp.ne.s32.totalorder %s283, %s297
      %p299 = scmp.eq.s32.totalorder %s30, 0
      %p300 = por %p298, %p299
      %s302 = sadd.s32 %s301, 1
      %p305 = scmp.eq.s32.totalorder %s24, 3
      %p306 = scmp.ne.s32.totalorder %s301, %s303
      %p307 = scmp.eq.s32.totalorder %s24, 0
      %p308 = por %p306, %p307
      %p309 = scmp.ne.s32.totalorder %s301, %s303
      %p310 = scmp.eq.s32.totalorder %s29, 3
      %p311 = por %p309, %p310
      %p312 = scmp.ne.s32.totalorder %s303, %s304
      %p313 = scmp.eq.s32.totalorder %s29, 0
      %p314 = por %p312, %p313
      %p315 = scmp.ne.s32.totalorder %s303, %s304
      %p316 = scmp.eq.s32.totalorder %s30, 3
      %p317 = por %p315, %p316
      %p319 = scmp.ne.s32.totalorder %s304, %s318
      %p320 = scmp.eq.s32.totalorder %s30, 0
      %p321 = por %p319, %p320
      %s323 = sadd.s32 %s322, 1
      %p326 = scmp.eq.s32.totalorder %s24, 3
      %p327 = scmp.ne.s32.totalorder %s322, %s324
      %p328 = scmp.eq.s32.totalorder %s24, 0
      %p329 = por %p327, %p328
      %p330 = scmp.ne.s32.totalorder %s322, %s324
      %p331 = scmp.eq.s32.totalorder %s29, 3
      %p332 = por %p330, %p331
      %p333 = scmp.ne.s32.totalorder %s324, %s325
      %p334 = scmp.eq.s32.totalorder %s29, 0
      %p335 = por %p333, %p334
      %p336 = scmp.ne.s32.totalorder %s324, %s325
      %p337 = scmp.eq.s32.totalorder %s30, 3
      %p338 = por %p336, %p337
      %p340 = scmp.ne.s32.totalorder %s325, %s339
      %p341 = scmp.eq.s32.totalorder %s30, 0
      %p342 = por %p340, %p341
      %s344 = sadd.s32 %s343, 1
      %p347 = scmp.eq.s32.totalorder %s24, 3
      %p348 = scmp.ne.s32.totalorder %s343, %s345
      %p349 = scmp.eq.s32.totalorder %s24, 0
      %p350 = por %p348, %p349
      %p351 = scmp.ne.s32.totalorder %s343, %s345
      %p352 = scmp.eq.s32.totalorder %s29, 3
      %p353 = por %p351, %p352
      %p354 = scmp.ne.s32.totalorder %s345, %s346
      %p355 = scmp.eq.s32.totalorder %s29, 0
      %p356 = por %p354, %p355
      %p357 = scmp.ne.s32.totalorder %s345, %s346
      %p358 = scmp.eq.s32.totalorder %s30, 3
      %p359 = por %p357, %p358
      %p361 = scmp.ne.s32.totalorder %s346, %s360
      %p362 = scmp.eq.s32.totalorder %s30, 0
      %p363 = por %p361, %p362
      %s364 = ssub.s32 %s31, %s43
      %s365 = ssub.s32 %s32, %s39
      %s366 = sor.u32 %s364, %s365
      %p367 = scmp.eq.s32.totalorder %s366, 0
      %s369 = sadd.s32 %s368, 1
      %s370 = scalar_select %p367, %s368, %s369
      %p373 = pneg %p367
      %p374 = scmp.eq.s32.totalorder %s24, 3
      %p375 = por %p373, %p374
      %p376 = scmp.ne.s32.totalorder %s368, %s371
      %p377 = scmp.eq.s32.totalorder %s24, 0
      %p378 = por %p376, %p377
      %p379 = scmp.ne.s32.totalorder %s368, %s371
      %p380 = scmp.eq.s32.totalorder %s29, 3
      %p381 = por %p379, %p380
      %p382 = scmp.ne.s32.totalorder %s371, %s372
      %p383 = scmp.eq.s32.totalorder %s29, 0
      %p384 = por %p382, %p383
      %p385 = scmp.ne.s32.totalorder %s371, %s372
      %p386 = scmp.eq.s32.totalorder %s30, 3
      %p387 = por %p385, %p386
      %p389 = scmp.ne.s32.totalorder %s372, %s388
      %p390 = scmp.eq.s32.totalorder %s30, 0
      %p391 = por %p389, %p390
      %p392 = scmp.le.s32.totalorder 1, %s24
      %p393 = scmp.lt.s32.totalorder %s24, 5
      %p394 = pnand %p392, %p393
      %p395 = pneg %p394
      // Predicated region
      $region9: #{tpu_custom_call.1} parent=5 // pred_check
        _
      $region10: #{tpu_custom_call.1} parent=5 // pred_check_branch
        %397 = sbr.rel (%p394) target = $region12
      $region11: #{tpu_custom_call.1} parent=5 // pred_region
        %s398 = ssub.s32 %s24, 1
        // Predicated region
        $region13: #{tpu_custom_call.1} parent=11 // pred_check
          %p399 = pneg %p83
        $region14: #{tpu_custom_call.1} parent=11 // pred_check_branch
          %401 = sbr.rel (%p399) target = $region16
        $region15: #{tpu_custom_call.1} parent=11 // pred_region
          _
        $region16: #{tpu_custom_call.1} parent=11 // pred_fallthru
          _
        // Predicated region
        $region17: #{tpu_custom_call.1} parent=11 // pred_check
          %p402 = pneg %p104
        $region18: #{tpu_custom_call.1} parent=11 // pred_check_branch
          %404 = sbr.rel (%p402) target = $region20
        $region19: #{tpu_custom_call.1} parent=11 // pred_region
          _
        $region20: #{tpu_custom_call.1} parent=11 // pred_fallthru
          _
        // Predicated region
        $region21: #{tpu_custom_call.1} parent=11 // pred_check
          %p405 = pneg %p125
        $region22: #{tpu_custom_call.1} parent=11 // pred_check_branch
          %407 = sbr.rel (%p405) target = $region24
        $region23: #{tpu_custom_call.1} parent=11 // pred_region
          _
        $region24: #{tpu_custom_call.1} parent=11 // pred_fallthru
          _
        // Predicated region
        $region25: #{tpu_custom_call.1} parent=11 // pred_check
          %p408 = pneg %p146
        $region26: #{tpu_custom_call.1} parent=11 // pred_check_branch
          %410 = sbr.rel (%p408) target = $region28
        $region27: #{tpu_custom_call.1} parent=11 // pred_region
          _
        $region28: #{tpu_custom_call.1} parent=11 // pred_fallthru
          _
        // Predicated region
        $region29: #{tpu_custom_call.1} parent=11 // pred_check
          %p411 = pneg %p167
        $region30: #{tpu_custom_call.1} parent=11 // pred_check_branch
          %413 = sbr.rel (%p411) target = $region32
        $region31: #{tpu_custom_call.1} parent=11 // pred_region
          _
        $region32: #{tpu_custom_call.1} parent=11 // pred_fallthru
          _
        // Predicated region
        $region33: #{tpu_custom_call.1} parent=11 // pred_check
          %p414 = pneg %p188
        $region34: #{tpu_custom_call.1} parent=11 // pred_check_branch
          %416 = sbr.rel (%p414) target = $region36
        $region35: #{tpu_custom_call.1} parent=11 // pred_region
          _
        $region36: #{tpu_custom_call.1} parent=11 // pred_fallthru
          _
        // Predicated region
        $region37: #{tpu_custom_call.1} parent=11 // pred_check
          %p417 = pneg %p209
        $region38: #{tpu_custom_call.1} parent=11 // pred_check_branch
          %419 = sbr.rel (%p417) target = $region40
        $region39: #{tpu_custom_call.1} parent=11 // pred_region
          _
        $region40: #{tpu_custom_call.1} parent=11 // pred_fallthru
          _
        // Predicated region
        $region41: #{tpu_custom_call.1} parent=11 // pred_check
          %p420 = pneg %p230
        $region42: #{tpu_custom_call.1} parent=11 // pred_check_branch
          %422 = sbr.rel (%p420) target = $region44
        $region43: #{tpu_custom_call.1} parent=11 // pred_region
          _
        $region44: #{tpu_custom_call.1} parent=11 // pred_fallthru
          _
        // Predicated region
        $region45: #{tpu_custom_call.1} parent=11 // pred_check
          %p423 = pneg %p251
        $region46: #{tpu_custom_call.1} parent=11 // pred_check_branch
          %425 = sbr.rel (%p423) target = $region48
        $region47: #{tpu_custom_call.1} parent=11 // pred_region
          _
        $region48: #{tpu_custom_call.1} parent=11 // pred_fallthru
          _
        // Predicated region
        $region49: #{tpu_custom_call.1} parent=11 // pred_check
          %p426 = pneg %p272
        $region50: #{tpu_custom_call.1} parent=11 // pred_check_branch
          %428 = sbr.rel (%p426) target = $region52
        $region51: #{tpu_custom_call.1} parent=11 // pred_region
          _
        $region52: #{tpu_custom_call.1} parent=11 // pred_fallthru
          _
        // Predicated region
        $region53: #{tpu_custom_call.1} parent=11 // pred_check
          %p429 = pneg %p293
        $region54: #{tpu_custom_call.1} parent=11 // pred_check_branch
          %431 = sbr.rel (%p429) target = $region56
        $region55: #{tpu_custom_call.1} parent=11 // pred_region
          _
        $region56: #{tpu_custom_call.1} parent=11 // pred_fallthru
          _
        // Predicated region
        $region57: #{tpu_custom_call.1} parent=11 // pred_check
          %p432 = pneg %p314
        $region58: #{tpu_custom_call.1} parent=11 // pred_check_branch
          %434 = sbr.rel (%p432) target = $region60
        $region59: #{tpu_custom_call.1} parent=11 // pred_region
          _
        $region60: #{tpu_custom_call.1} parent=11 // pred_fallthru
          _
        // Predicated region
        $region61: #{tpu_custom_call.1} parent=11 // pred_check
          %p435 = pneg %p335
        $region62: #{tpu_custom_call.1} parent=11 // pred_check_branch
          %437 = sbr.rel (%p435) target = $region64
        $region63: #{tpu_custom_call.1} parent=11 // pred_region
          _
        $region64: #{tpu_custom_call.1} parent=11 // pred_fallthru
          _
        // Predicated region
        $region65: #{tpu_custom_call.1} parent=11 // pred_check
          %p438 = pneg %p356
        $region66: #{tpu_custom_call.1} parent=11 // pred_check_branch
          %440 = sbr.rel (%p438) target = $region68
        $region67: #{tpu_custom_call.1} parent=11 // pred_region
          _
        $region68: #{tpu_custom_call.1} parent=11 // pred_fallthru
          _
      $region12: #{tpu_custom_call.1} parent=5 // pred_fallthru
        _
      %p441 = scmp.lt.s32.totalorder %s24, 4
      // Predicated region
      $region69: #{tpu_custom_call.1} parent=5 // pred_check
        %p442 = pneg %p441
      $region70: #{tpu_custom_call.1} parent=5 // pred_check_branch
        %444 = sbr.rel (%p442) target = $region72
      $region71: #{tpu_custom_call.1} parent=5 // pred_region
        // Predicated region
        $region73: #{tpu_custom_call.1} parent=71 // pred_check
          %p445 = pneg %p56
        $region74: #{tpu_custom_call.1} parent=71 // pred_check_branch
          %447 = sbr.rel (%p445) target = $region76
        $region75: #{tpu_custom_call.1} parent=71 // pred_region
          %p448 = scmp.lt.s32.totalorder %s31, 1
          %s449 = scalar_select %p448, %s31, 1
          %s450 = smul.addr %s449, 2
          %s451 = smul.addr %s450, 8
          %s452 = scalar_lea.vmem %s0, %s451
        $region76: #{tpu_custom_call.1} parent=71 // pred_fallthru
          _
      $region72: #{tpu_custom_call.1} parent=5 // pred_fallthru
        _
      %p453 = scmp.le.s32.totalorder 1, %s24
      %p454 = scmp.lt.s32.totalorder %s24, 5
      %p455 = pnand %p453, %p454
      %p456 = pneg %p455
      // Predicated region
      $region77: #{tpu_custom_call.1} parent=5 // pred_check
        _
      $region78: #{tpu_custom_call.1} parent=5 // pred_check_branch
        %458 = sbr.rel (%p455) target = $region80
      $region79: #{tpu_custom_call.1} parent=5 // pred_region
        %s459 = ssub.s32 %s24, 1
        %p460 = scmp.lt.s32.totalorder %s33, 1
        %s461 = scalar_select %p460, %s33, 1
        %s462 = smul.addr %s461, 2
        %s463 = smul.addr %s462, 8
        %s464 = scalar_lea.vmem %s0, %s463
        %p465 = pneg %p62
        %p466 = pneg %p59
        %p467 = pneg %p83
        %p468 = pneg %p80
        %p469 = pneg %p104
        %p470 = pneg %p101
        %p471 = pneg %p125
        %p472 = pneg %p122
        %p473 = pneg %p146
        %p474 = pneg %p143
        %p475 = pneg %p167
        %p476 = pneg %p164
        %p477 = pneg %p188
        %p478 = pneg %p185
        %p479 = pneg %p209
        %p480 = pneg %p206
        %p481 = pneg %p230
        %p482 = pneg %p227
        %p483 = pneg %p251
        %p484 = pneg %p248
        %p485 = pneg %p272
        %p486 = pneg %p269
        %p487 = pneg %p293
        %p488 = pneg %p290
        %p489 = pneg %p314
        %p490 = pneg %p311
        %p491 = pneg %p335
        %p492 = pneg %p332
        %p493 = pneg %p356
        %p494 = pneg %p353
        %p495 = pneg %p384
        %p496 = pneg %p381
        %s497 = sand.u32 %s371, 1
        %s498 = scalar_lea.sflag [#allocation5], %s497
        %s499 = sand.u32 %s371, 1
        %s500 = smul.addr %s499, 8
        %s501 = scalar_lea.vmem [#allocation4], %s500
        %p502 = scmp.lt.s32.totalorder %s33, 1
        %s503 = scalar_select %p502, %s33, 1
        %s504 = smul.addr %s503, 2
        %s505 = smul.addr %s504, 8
        %s506 = scalar_lea.vmem %s0, %s505
        %p507 = scmp.eq.s32.totalorder %s34, 0
        // Predicated region
        $region81: #{tpu_custom_call.1} parent=79 // pred_check
          %p508 = pneg %p507
        $region82: #{tpu_custom_call.1} parent=79 // pred_check_branch
          %510 = sbr.rel (%p508) target = $region84
        $region83: #{tpu_custom_call.1} parent=79 // pred_region
          %v511 = vld [vmem:[%s506] sm:$0xff]
          %v512 = vld [vmem:[%s1] sm:$0x1]
          %v513 = vld [vmem:[%s2] sm:$0x1]
          %vm514 = vcmask 261120
          %v515 = vsel %vm514, %v511, 0.0
          %516 = vadd.xlane.f32.xlu0 %v515
          %v517 = vpop.xlane.xlu0 %516
          %v518 = vrcp.pop 32.0
          %v519 = vmul.f32 %v517, %v518
          %v520 = vsub.f32 %v511, %v519
          %v521 = vmul.f32 %v520, %v520
          %v522 = vsel %vm514, %v521, 0.0
          %523 = vadd.xlane.f32.xlu0 %v522
          %v524 = vpop.xlane.xlu0 %523
          %v525 = vmul.f32 %v524, %v518
          %v526 = vadd.f32 %v525, 1e-05
          %v527 = vrsqrt.pop %v526
          %v528 = vmul.f32 %v520, %v527
          %v530 = vlaneseq
          %v531 = vshrl.u32 %v530, 7
          %v532 = vsub.s32 0, %v531
          %v533 = vrot.slane %v512, %v532
          %v535 = vmul.f32 %v528, %v533
          %v537 = vlaneseq
          %v538 = vshrl.u32 %v537, 7
          %v539 = vsub.s32 0, %v538
          %v540 = vrot.slane %v513, %v539
          %v542 = vadd.f32 %v535, %v540
          %v543 = vld [vmem:[%s5] sm:$0xff]
          %v544 = vld [vmem:[%s5 + $0x8] sm:$0xff]
          %v545 = vld [vmem:[%s5 + $0x10] sm:$0xff]
          %v546 = vld [vmem:[%s5 + $0x18] sm:$0xff]
          %v547 = vld [vmem:[%s6] sm:$0x1]
          %v549 = vlaneseq
          %v550 = vshrl.u32 %v549, 7
          %v551 = vsub.s32 0, %v550
          %v552 = vrot.slane %v547, %v551
          %v555 = vsel %vm514, %v542, 0
          %557 = vmatprep.subr.mxu0 0.0
          %558 = vmatpush1.msra.mxu0 %v543
          %559 = vmatprep.subr.mxu0 0.0
          %560 = vmatpush1.msra.mxu0 %v544
          %561 = vmatprep.subr.mxu0 0.0
          %562 = vmatpush1.msra.mxu0 %v545
          %563 = vmatprep.subr.mxu0 0.0
          %564 = vmatpush1.msra.mxu0 %v546
          %565 = vmatprep.subr.mxu0 0.0
          %566 = vmatpush1.msra.mxu0 0.0
          %567 = vmatprep.subr.mxu0 0.0
          %568 = vmatpush1.msra.mxu0 0.0
          %569 = vmatprep.subr.mxu0 0.0
          %570 = vmatpush1.msra.mxu0 0.0
          %571 = vmatprep.subr.mxu0 0.0
          %572 = vmatpush1.msra.mxu0 0.0
          %573 = vmatprep.subr.mxu0 0.0
          %574 = vmatpush1.msra.mxu0 0.0
          %575 = vmatprep.subr.mxu0 0.0
          %576 = vmatpush1.msra.mxu0 0.0
          %577 = vmatprep.subr.mxu0 0.0
          %578 = vmatpush1.msra.mxu0 0.0
          %579 = vmatprep.subr.mxu0 0.0
          %580 = vmatpush1.msra.mxu0 0.0
          %581 = vmatprep.subr.mxu0 0.0
          %582 = vmatpush1.msra.mxu0 0.0
          %583 = vmatprep.subr.mxu0 0.0
          %584 = vmatpush1.msra.mxu0 0.0
          %585 = vmatprep.subr.mxu0 0.0
          %586 = vmatpush1.msra.mxu0 0.0
          %587 = vmatprep.subr.mxu0 0.0
          %588 = vmatpush1.msra.mxu0 0.0
          %589 = vmatprep.subr.mxu0 0.0
          %590 = vmatpush1.msra.mxu0 0.0
          %591 = vmatprep.subr.mxu0 0.0
          %592 = vmatpush1.msra.mxu0 0.0
          %593 = vmatprep.subr.mxu0 0.0
          %594 = vmatpush1.msra.mxu0 0.0
          %595 = vmatprep.subr.mxu0 0.0
          %596 = vmatpush1.msra.mxu0 0.0
          %597 = vmatprep.subr.mxu0 0.0
          %598 = vmatpush1.msra.mxu0 0.0
          %599 = vmatprep.subr.mxu0 0.0
          %600 = vmatpush1.msra.mxu0 0.0
          %601 = vmatprep.subr.mxu0 0.0
          %602 = vmatpush1.msra.mxu0 0.0
          %603 = vmatprep.subr.mxu0 0.0
          %604 = vmatpush1.msra.mxu0 0.0
          %605 = vmatprep.subr.mxu0 0.0
          %606 = vmatpush1.msra.mxu0 0.0
          %607 = vmatprep.subr.mxu0 0.0
          %608 = vmatpush1.msra.mxu0 0.0
          %609 = vmatprep.subr.mxu0 0.0
          %610 = vmatpush1.msra.mxu0 0.0
          %611 = vmatprep.subr.mxu0 0.0
          %612 = vmatpush1.msra.mxu0 0.0
          %613 = vmatprep.subr.mxu0 0.0
          %614 = vmatpush1.msra.mxu0 0.0
          %615 = vmatprep.subr.mxu0 0.0
          %616 = vmatpush1.msra.mxu0 0.0
          %617 = vmatprep.subr.mxu0 0.0
          %618 = vmatpush1.msra.mxu0 0.0
          %619 = vmatprep.subr.mxu0 0.0
          %620 = vmatpush1.msra.mxu0 0.0
          %621 = vmatprep.mubr.f32.mxu0 0.0
          %622 = vmatmul.mubr.f32.gmra.mrb[0].mxu0 %v555
          %v623 = vpop.f32.mrb[0].mxu0
          %v624 = vadd.f32 %v552, %v623
          %v625 = vpop.f32.mrb[0].mxu0
          %626 = vdwg.mxu0
          %628 = vrot.lane.b32.xlu0 %v624, 120
          %v629 = vpop.permute.xlu0 %628
          %631 = vrot.lane.b32.xlu0 %v624, 112
          %v632 = vpop.permute.xlu0 %631
          %634 = vrot.lane.b32.xlu0 %v624, 104
          %v635 = vpop.permute.xlu0 %634
          %v637 = vcombine.low %v624, %v632
          %v638 = vcombine.high %v624, %v632
          %v640 = vunpack.c.l.s4 1983009808
          %v641 = vunpack.c.0.s8 %v640
          %v642 = vlaneseq
          %v643 = vshrl.u32 %v642, 7
          %v644 = vsub.s32 %v641, %v643
          %v645 = vrot.slane %v637, %v644
          %v647 = vunpack.c.l.s4 1983009808
          %v648 = vunpack.c.0.s8 %v647
          %v649 = vlaneseq
          %v650 = vshrl.u32 %v649, 7
          %v651 = vsub.s32 %v648, %v650
          %v652 = vrot.slane %v638, %v651
          %v653 = vcombine.low %v629, %v635
          %v654 = vcombine.high %v629, %v635
          %v656 = vunpack.c.l.s4 1983009808
          %v657 = vunpack.c.0.s8 %v656
          %v658 = vlaneseq
          %v659 = vshrl.u32 %v658, 7
          %v660 = vsub.s32 %v657, %v659
          %v661 = vrot.slane %v653, %v660
          %v663 = vunpack.c.l.s4 1983009808
          %v664 = vunpack.c.0.s8 %v663
          %v665 = vlaneseq
          %v666 = vshrl.u32 %v665, 7
          %v667 = vsub.s32 %v664, %v666
          %v668 = vrot.slane %v654, %v667
          %v669 = vcombine.low %v645, %v661
          %v670 = vcombine.high %v645, %v661
          %v672 = vunpack.c.l.s4 1934713408
          %v673 = vunpack.c.0.s8 %v672
          %v674 = vlaneseq
          %v675 = vshrl.u32 %v674, 7
          %v676 = vsub.s32 %v673, %v675
          %v677 = vrot.slane %v669, %v676
          %v679 = vunpack.c.l.s4 1934713408
          %v680 = vunpack.c.0.s8 %v679
          %v681 = vlaneseq
          %v682 = vshrl.u32 %v681, 7
          %v683 = vsub.s32 %v680, %v682
          %v684 = vrot.slane %v670, %v683
          %v685 = vcombine.low %v652, %v668
          %v686 = vcombine.high %v652, %v668
          %v688 = vunpack.c.l.s4 1934713408
          %v689 = vunpack.c.0.s8 %v688
          %v690 = vlaneseq
          %v691 = vshrl.u32 %v690, 7
          %v692 = vsub.s32 %v689, %v691
          %v693 = vrot.slane %v685, %v692
          %v695 = vunpack.c.l.s4 1934713408
          %v696 = vunpack.c.0.s8 %v695
          %v697 = vlaneseq
          %v698 = vshrl.u32 %v697, 7
          %v699 = vsub.s32 %v696, %v698
          %v700 = vrot.slane %v686, %v699
          %v701 = vcombine.high %v677, 0.0
          %v702 = vcombine.high %v684, 0.0
          %v703 = vcombine.high %v693, 0.0
          %v704 = vcombine.high %v700, 0.0
          %705 = vxpose.xlu0.b32.start [1/16] %v677, 128
          %706 = vxpose.xlu0.b32.cont [2/16] 0.0, 128
          %707 = vxpose.xlu0.b32.cont [3/16] 0.0, 128
          %708 = vxpose.xlu0.b32.cont [4/16] 0.0, 128
          %709 = vxpose.xlu0.b32.cont [5/16] 0.0, 128
          %710 = vxpose.xlu0.b32.cont [6/16] 0.0, 128
          %711 = vxpose.xlu0.b32.cont [7/16] 0.0, 128
          %712 = vxpose.xlu0.b32.cont [8/16] 0.0, 128
          %713 = vxpose.xlu0.b32.cont [9/16] 0.0, 128
          %714 = vxpose.xlu0.b32.cont [10/16] 0.0, 128
          %715 = vxpose.xlu0.b32.cont [11/16] 0.0, 128
          %716 = vxpose.xlu0.b32.cont [12/16] 0.0, 128
          %717 = vxpose.xlu0.b32.cont [13/16] 0.0, 128
          %718 = vxpose.xlu0.b32.cont [14/16] 0.0, 128
          %719 = vxpose.xlu0.b32.cont [15/16] 0.0, 128
          %720 = vxpose.xlu0.b32.end [16/16] 0.0, 128
          %v721 = vpop.trf.xlu0
          %v722 = vpop.trf.xlu0
          %v723 = vpop.trf.xlu0
          %v724 = vpop.trf.xlu0
          %v725 = vpop.trf.xlu0
          %v726 = vpop.trf.xlu0
          %v727 = vpop.trf.xlu0
          %v728 = vpop.trf.xlu0
          %v729 = vpop.trf.xlu0
          %v730 = vpop.trf.xlu0
          %v731 = vpop.trf.xlu0
          %v732 = vpop.trf.xlu0
          %v733 = vpop.trf.xlu0
          %v734 = vpop.trf.xlu0
          %v735 = vpop.trf.xlu0
          %v736 = vpop.trf.xlu0
          %737 = vxpose.xlu0.b32.start [1/16] %v701, 128
          %738 = vxpose.xlu0.b32.cont [2/16] 0.0, 128
          %739 = vxpose.xlu0.b32.cont [3/16] 0.0, 128
          %740 = vxpose.xlu0.b32.cont [4/16] 0.0, 128
          %741 = vxpose.xlu0.b32.cont [5/16] 0.0, 128
          %742 = vxpose.xlu0.b32.cont [6/16] 0.0, 128
          %743 = vxpose.xlu0.b32.cont [7/16] 0.0, 128
          %744 = vxpose.xlu0.b32.cont [8/16] 0.0, 128
          %745 = vxpose.xlu0.b32.cont [9/16] 0.0, 128
          %746 = vxpose.xlu0.b32.cont [10/16] 0.0, 128
          %747 = vxpose.xlu0.b32.cont [11/16] 0.0, 128
          %748 = vxpose.xlu0.b32.cont [12/16] 0.0, 128
          %749 = vxpose.xlu0.b32.cont [13/16] 0.0, 128
          %750 = vxpose.xlu0.b32.cont [14/16] 0.0, 128
          %751 = vxpose.xlu0.b32.cont [15/16] 0.0, 128
          %752 = vxpose.xlu0.b32.end [16/16] 0.0, 128
          %v753 = vpop.trf.xlu0
          %v754 = vpop.trf.xlu0
          %v755 = vpop.trf.xlu0
          %v756 = vpop.trf.xlu0
          %v757 = vpop.trf.xlu0
          %v758 = vpop.trf.xlu0
          %v759 = vpop.trf.xlu0
          %v760 = vpop.trf.xlu0
          %v761 = vpop.trf.xlu0
          %v762 = vpop.trf.xlu0
          %v763 = vpop.trf.xlu0
          %v764 = vpop.trf.xlu0
          %v765 = vpop.trf.xlu0
          %v766 = vpop.trf.xlu0
          %v767 = vpop.trf.xlu0
          %v768 = vpop.trf.xlu0
          %769 = vxpose.xlu0.b32.start [1/16] %v684, 128
          %770 = vxpose.xlu0.b32.cont [2/16] 0.0, 128
          %771 = vxpose.xlu0.b32.cont [3/16] 0.0, 128
          %772 = vxpose.xlu0.b32.cont [4/16] 0.0, 128
          %773 = vxpose.xlu0.b32.cont [5/16] 0.0, 128
          %774 = vxpose.xlu0.b32.cont [6/16] 0.0, 128
          %775 = vxpose.xlu0.b32.cont [7/16] 0.0, 128
          %776 = vxpose.xlu0.b32.cont [8/16] 0.0, 128
          %777 = vxpose.xlu0.b32.cont [9/16] 0.0, 128
          %778 = vxpose.xlu0.b32.cont [10/16] 0.0, 128
          %779 = vxpose.xlu0.b32.cont [11/16] 0.0, 128
          %780 = vxpose.xlu0.b32.cont [12/16] 0.0, 128
          %781 = vxpose.xlu0.b32.cont [13/16] 0.0, 128
          %782 = vxpose.xlu0.b32.cont [14/16] 0.0, 128
          %783 = vxpose.xlu0.b32.cont [15/16] 0.0, 128
          %784 = vxpose.xlu0.b32.end [16/16] 0.0, 128
          %v785 = vpop.trf.xlu0
          %v786 = vpop.trf.xlu0
          %v787 = vpop.trf.xlu0
          %v788 = vpop.trf.xlu0
          %v789 = vpop.trf.xlu0
          %v790 = vpop.trf.xlu0
          %v791 = vpop.trf.xlu0
          %v792 = vpop.trf.xlu0
          %v793 = vpop.trf.xlu0
          %v794 = vpop.trf.xlu0
          %v795 = vpop.trf.xlu0
          %v796 = vpop.trf.xlu0
          %v797 = vpop.trf.xlu0
          %v798 = vpop.trf.xlu0
          %v799 = vpop.trf.xlu0
          %v800 = vpop.trf.xlu0
          %801 = vxpose.xlu0.b32.start [1/16] %v702, 128
          %802 = vxpose.xlu0.b32.cont [2/16] 0.0, 128
          %803 = vxpose.xlu0.b32.cont [3/16] 0.0, 128
          %804 = vxpose.xlu0.b32.cont [4/16] 0.0, 128
          %805 = vxpose.xlu0.b32.cont [5/16] 0.0, 128
          %806 = vxpose.xlu0.b32.cont [6/16] 0.0, 128
          %807 = vxpose.xlu0.b32.cont [7/16] 0.0, 128
          %808 = vxpose.xlu0.b32.cont [8/16] 0.0, 128
          %809 = vxpose.xlu0.b32.cont [9/16] 0.0, 128
          %810 = vxpose.xlu0.b32.cont [10/16] 0.0, 128
          %811 = vxpose.xlu0.b32.cont [11/16] 0.0, 128
          %812 = vxpose.xlu0.b32.cont [12/16] 0.0, 128
          %813 = vxpose.xlu0.b32.cont [13/16] 0.0, 128
          %814 = vxpose.xlu0.b32.cont [14/16] 0.0, 128
          %815 = vxpose.xlu0.b32.cont [15/16] 0.0, 128
          %816 = vxpose.xlu0.b32.end [16/16] 0.0, 128
          %v817 = vpop.trf.xlu0
          %v818 = vpop.trf.xlu0
          %v819 = vpop.trf.xlu0
          %v820 = vpop.trf.xlu0
          %v821 = vpop.trf.xlu0
          %v822 = vpop.trf.xlu0
          %v823 = vpop.trf.xlu0
          %v824 = vpop.trf.xlu0
          %v825 = vpop.trf.xlu0
          %v826 = vpop.trf.xlu0
          %v827 = vpop.trf.xlu0
          %v828 = vpop.trf.xlu0
          %v829 = vpop.trf.xlu0
          %v830 = vpop.trf.xlu0
          %v831 = vpop.trf.xlu0
          %v832 = vpop.trf.xlu0
          %833 = vxpose.xlu0.b32.start [1/16] %v693, 128
          %834 = vxpose.xlu0.b32.cont [2/16] 0.0, 128
          %835 = vxpose.xlu0.b32.cont [3/16] 0.0, 128
          %836 = vxpose.xlu0.b32.cont [4/16] 0.0, 128
          %837 = vxpose.xlu0.b32.cont [5/16] 0.0, 128
          %838 = vxpose.xlu0.b32.cont [6/16] 0.0, 128
          %839 = vxpose.xlu0.b32.cont [7/16] 0.0, 128
          %840 = vxpose.xlu0.b32.cont [8/16] 0.0, 128
          %841 = vxpose.xlu0.b32.cont [9/16] 0.0, 128
          %842 = vxpose.xlu0.b32.cont [10/16] 0.0, 128
          %843 = vxpose.xlu0.b32.cont [11/16] 0.0, 128
          %844 = vxpose.xlu0.b32.cont [12/16] 0.0, 128
          %845 = vxpose.xlu0.b32.cont [13/16] 0.0, 128
          %846 = vxpose.xlu0.b32.cont [14/16] 0.0, 128
          %847 = vxpose.xlu0.b32.cont [15/16] 0.0, 128
          %848 = vxpose.xlu0.b32.end [16/16] 0.0, 128
          %v849 = vpop.trf.xlu0
          %v850 = vpop.trf.xlu0
          %v851 = vpop.trf.xlu0
          %v852 = vpop.trf.xlu0
          %v853 = vpop.trf.xlu0
          %v854 = vpop.trf.xlu0
          %v855 = vpop.trf.xlu0
          %v856 = vpop.trf.xlu0
          %v857 = vpop.trf.xlu0
          %v858 = vpop.trf.xlu0
          %v859 = vpop.trf.xlu0
          %v860 = vpop.trf.xlu0
          %v861 = vpop.trf.xlu0
          %v862 = vpop.trf.xlu0
          %v863 = vpop.trf.xlu0
          %v864 = vpop.trf.xlu0
          %865 = vxpose.xlu0.b32.start [1/16] %v703, 128
          %866 = vxpose.xlu0.b32.cont [2/16] 0.0, 128
          %867 = vxpose.xlu0.b32.cont [3/16] 0.0, 128
          %868 = vxpose.xlu0.b32.cont [4/16] 0.0, 128
          %869 = vxpose.xlu0.b32.cont [5/16] 0.0, 128
          %870 = vxpose.xlu0.b32.cont [6/16] 0.0, 128
          %871 = vxpose.xlu0.b32.cont [7/16] 0.0, 128
          %872 = vxpose.xlu0.b32.cont [8/16] 0.0, 128
          %873 = vxpose.xlu0.b32.cont [9/16] 0.0, 128
          %874 = vxpose.xlu0.b32.cont [10/16] 0.0, 128
          %875 = vxpose.xlu0.b32.cont [11/16] 0.0, 128
          %876 = vxpose.xlu0.b32.cont [12/16] 0.0, 128
          %877 = vxpose.xlu0.b32.cont [13/16] 0.0, 128
          %878 = vxpose.xlu0.b32.cont [14/16] 0.0, 128
          %879 = vxpose.xlu0.b32.cont [15/16] 0.0, 128
          %880 = vxpose.xlu0.b32.end [16/16] 0.0, 128
          %v881 = vpop.trf.xlu0
          %v882 = vpop.trf.xlu0
          %v883 = vpop.trf.xlu0
          %v884 = vpop.trf.xlu0
          %v885 = vpop.trf.xlu0
          %v886 = vpop.trf.xlu0
          %v887 = vpop.trf.xlu0
          %v888 = vpop.trf.xlu0
          %v889 = vpop.trf.xlu0
          %v890 = vpop.trf.xlu0
          %v891 = vpop.trf.xlu0
          %v892 = vpop.trf.xlu0
          %v893 = vpop.trf.xlu0
          %v894 = vpop.trf.xlu0
          %v895 = vpop.trf.xlu0
          %v896 = vpop.trf.xlu0
          %897 = vxpose.xlu0.b32.start [1/16] %v700, 128
          %898 = vxpose.xlu0.b32.cont [2/16] 0.0, 128
          %899 = vxpose.xlu0.b32.cont [3/16] 0.0, 128
          %900 = vxpose.xlu0.b32.cont [4/16] 0.0, 128
          %901 = vxpose.xlu0.b32.cont [5/16] 0.0, 128
          %902 = vxpose.xlu0.b32.cont [6/16] 0.0, 128
          %903 = vxpose.xlu0.b32.cont [7/16] 0.0, 128
          %904 = vxpose.xlu0.b32.cont [8/16] 0.0, 128
          %905 = vxpose.xlu0.b32.cont [9/16] 0.0, 128
          %906 = vxpose.xlu0.b32.cont [10/16] 0.0, 128
          %907 = vxpose.xlu0.b32.cont [11/16] 0.0, 128
          %908 = vxpose.xlu0.b32.cont [12/16] 0.0, 128
          %909 = vxpose.xlu0.b32.cont [13/16] 0.0, 128
          %910 = vxpose.xlu0.b32.cont [14/16] 0.0, 128
          %911 = vxpose.xlu0.b32.cont [15/16] 0.0, 128
          %912 = vxpose.xlu0.b32.end [16/16] 0.0, 128
          %v913 = vpop.trf.xlu0
          %v914 = vpop.trf.xlu0
          %v915 = vpop.trf.xlu0
          %v916 = vpop.trf.xlu0
          %v917 = vpop.trf.xlu0
          %v918 = vpop.trf.xlu0
          %v919 = vpop.trf.xlu0
          %v920 = vpop.trf.xlu0
          %v921 = vpop.trf.xlu0
          %v922 = vpop.trf.xlu0
          %v923 = vpop.trf.xlu0
          %v924 = vpop.trf.xlu0
          %v925 = vpop.trf.xlu0
          %v926 = vpop.trf.xlu0
          %v927 = vpop.trf.xlu0
          %v928 = vpop.trf.xlu0
          %929 = vxpose.xlu0.b32.start [1/16] %v704, 128
          %930 = vxpose.xlu0.b32.cont [2/16] 0.0, 128
          %931 = vxpose.xlu0.b32.cont [3/16] 0.0, 128
          %932 = vxpose.xlu0.b32.cont [4/16] 0.0, 128
          %933 = vxpose.xlu0.b32.cont [5/16] 0.0, 128
          %934 = vxpose.xlu0.b32.cont [6/16] 0.0, 128
          %935 = vxpose.xlu0.b32.cont [7/16] 0.0, 128
          %936 = vxpose.xlu0.b32.cont [8/16] 0.0, 128
          %937 = vxpose.xlu0.b32.cont [9/16] 0.0, 128
          %938 = vxpose.xlu0.b32.cont [10/16] 0.0, 128
          %939 = vxpose.xlu0.b32.cont [11/16] 0.0, 128
          %940 = vxpose.xlu0.b32.cont [12/16] 0.0, 128
          %941 = vxpose.xlu0.b32.cont [13/16] 0.0, 128
          %942 = vxpose.xlu0.b32.cont [14/16] 0.0, 128
          %943 = vxpose.xlu0.b32.cont [15/16] 0.0, 128
          %944 = vxpose.xlu0.b32.end [16/16] 0.0, 128
          %v945 = vpop.trf.xlu0
          %v946 = vpop.trf.xlu0
          %v947 = vpop.trf.xlu0
          %v948 = vpop.trf.xlu0
          %v949 = vpop.trf.xlu0
          %v950 = vpop.trf.xlu0
          %v951 = vpop.trf.xlu0
          %v952 = vpop.trf.xlu0
          %v953 = vpop.trf.xlu0
          %v954 = vpop.trf.xlu0
          %v955 = vpop.trf.xlu0
          %v956 = vpop.trf.xlu0
          %v957 = vpop.trf.xlu0
          %v958 = vpop.trf.xlu0
          %v959 = vpop.trf.xlu0
          %v960 = vpop.trf.xlu0
          %v961 = vcombine.low %v721, %v785
          %v962 = vcombine.high %v721, %v785
          %v964 = vunpack.c.l.s4 1983009808
          %v965 = vunpack.c.0.s8 %v964
          %v966 = vlaneseq
          %v967 = vshrl.u32 %v966, 7
          %v968 = vsub.s32 %v965, %v967
          %v969 = vrot.slane %v961, %v968
          %v971 = vunpack.c.l.s4 1983009808
          %v972 = vunpack.c.0.s8 %v971
          %v973 = vlaneseq
          %v974 = vshrl.u32 %v973, 7
          %v975 = vsub.s32 %v972, %v974
          %v976 = vrot.slane %v962, %v975
          %v977 = vcombine.low %v753, %v817
          %v978 = vcombine.high %v753, %v817
          %v980 = vunpack.c.l.s4 1983009808
          %v981 = vunpack.c.0.s8 %v980
          %v982 = vlaneseq
          %v983 = vshrl.u32 %v982, 7
          %v984 = vsub.s32 %v981, %v983
          %v985 = vrot.slane %v977, %v984
          %v987 = vunpack.c.l.s4 1983009808
          %v988 = vunpack.c.0.s8 %v987
          %v989 = vlaneseq
          %v990 = vshrl.u32 %v989, 7
          %v991 = vsub.s32 %v988, %v990
          %v992 = vrot.slane %v978, %v991
          %v993 = vcombine.low %v849, %v913
          %v994 = vcombine.high %v849, %v913
          %v996 = vunpack.c.l.s4 1983009808
          %v997 = vunpack.c.0.s8 %v996
          %v998 = vlaneseq
          %v999 = vshrl.u32 %v998, 7
          %v1000 = vsub.s32 %v997, %v999
          %v1001 = vrot.slane %v993, %v1000
          %v1003 = vunpack.c.l.s4 1983009808
          %v1004 = vunpack.c.0.s8 %v1003
          %v1005 = vlaneseq
          %v1006 = vshrl.u32 %v1005, 7
          %v1007 = vsub.s32 %v1004, %v1006
          %v1008 = vrot.slane %v994, %v1007
          %v1009 = vcombine.low %v881, %v945
          %v1010 = vcombine.high %v881, %v945
          %v1012 = vunpack.c.l.s4 1983009808
          %v1013 = vunpack.c.0.s8 %v1012
          %v1014 = vlaneseq
          %v1015 = vshrl.u32 %v1014, 7
          %v1016 = vsub.s32 %v1013, %v1015
          %v1017 = vrot.slane %v1009, %v1016
          %v1019 = vunpack.c.l.s4 1983009808
          %v1020 = vunpack.c.0.s8 %v1019
          %v1021 = vlaneseq
          %v1022 = vshrl.u32 %v1021, 7
          %v1023 = vsub.s32 %v1020, %v1022
          %v1024 = vrot.slane %v1010, %v1023
          %v1025 = vcombine.low %v969, %v985
          %v1026 = vcombine.high %v969, %v985
          %v1028 = vunpack.c.l.s4 1934713408
          %v1029 = vunpack.c.0.s8 %v1028
          %v1030 = vlaneseq
          %v1031 = vshrl.u32 %v1030, 7
          %v1032 = vsub.s32 %v1029, %v1031
          %v1033 = vrot.slane %v1025, %v1032
          %v1035 = vunpack.c.l.s4 1934713408
          %v1036 = vunpack.c.0.s8 %v1035
          %v1037 = vlaneseq
          %v1038 = vshrl.u32 %v1037, 7
          %v1039 = vsub.s32 %v1036, %v1038
          %v1040 = vrot.slane %v1026, %v1039
          %v1041 = vcombine.low %v976, %v992
          %v1042 = vcombine.high %v976, %v992
          %v1044 = vunpack.c.l.s4 1934713408
          %v1045 = vunpack.c.0.s8 %v1044
          %v1046 = vlaneseq
          %v1047 = vshrl.u32 %v1046, 7
          %v1048 = vsub.s32 %v1045, %v1047
          %v1049 = vrot.slane %v1041, %v1048
          %v1051 = vunpack.c.l.s4 1934713408
          %v1052 = vunpack.c.0.s8 %v1051
          %v1053 = vlaneseq
          %v1054 = vshrl.u32 %v1053, 7
          %v1055 = vsub.s32 %v1052, %v1054
          %v1056 = vrot.slane %v1042, %v1055
          %v1057 = vcombine.low %v1001, %v1017
          %v1058 = vcombine.high %v1001, %v1017
          %v1060 = vunpack.c.l.s4 1934713408
          %v1061 = vunpack.c.0.s8 %v1060
          %v1062 = vlaneseq
          %v1063 = vshrl.u32 %v1062, 7
          %v1064 = vsub.s32 %v1061, %v1063
          %v1065 = vrot.slane %v1057, %v1064
          %v1067 = vunpack.c.l.s4 1934713408
          %v1068 = vunpack.c.0.s8 %v1067
          %v1069 = vlaneseq
          %v1070 = vshrl.u32 %v1069, 7
          %v1071 = vsub.s32 %v1068, %v1070
          %v1072 = vrot.slane %v1058, %v1071
          %v1073 = vcombine.low %v1008, %v1024
          %v1074 = vcombine.high %v1008, %v1024
          %v1076 = vunpack.c.l.s4 1934713408
          %v1077 = vunpack.c.0.s8 %v1076
          %v1078 = vlaneseq
          %v1079 = vshrl.u32 %v1078, 7
          %v1080 = vsub.s32 %v1077, %v1079
          %v1081 = vrot.slane %v1073, %v1080
          %v1083 = vunpack.c.l.s4 1934713408
          %v1084 = vunpack.c.0.s8 %v1083
          %v1085 = vlaneseq
          %v1086 = vshrl.u32 %v1085, 7
          %v1087 = vsub.s32 %v1084, %v1086
          %v1088 = vrot.slane %v1074, %v1087
          %v1089 = vcombine.low %v1033, %v1065
          %v1090 = vcombine.high %v1033, %v1065
          %v1091 = vcombine.low %v1040, %v1072
          %v1092 = vcombine.high %v1040, %v1072
          %v1093 = vcombine.low %v1049, %v1081
          %v1094 = vcombine.high %v1049, %v1081
          %v1095 = vcombine.low %v1056, %v1088
          %v1096 = vcombine.high %v1056, %v1088
          %1097 = vxpose.xlu0.b32.start [1/16] %v1089, 128
          %1098 = vxpose.xlu0.b32.cont [2/16] 0.0, 128
          %1099 = vxpose.xlu0.b32.cont [3/16] 0.0, 128
          %1100 = vxpose.xlu0.b32.cont [4/16] 0.0, 128
          %1101 = vxpose.xlu0.b32.cont [5/16] 0.0, 128
          %1102 = vxpose.xlu0.b32.cont [6/16] 0.0, 128
          %1103 = vxpose.xlu0.b32.cont [7/16] 0.0, 128
          %1104 = vxpose.xlu0.b32.cont [8/16] 0.0, 128
          %1105 = vxpose.xlu0.b32.cont [9/16] 0.0, 128
          %1106 = vxpose.xlu0.b32.cont [10/16] 0.0, 128
          %1107 = vxpose.xlu0.b32.cont [11/16] 0.0, 128
          %1108 = vxpose.xlu0.b32.cont [12/16] 0.0, 128
          %1109 = vxpose.xlu0.b32.cont [13/16] 0.0, 128
          %1110 = vxpose.xlu0.b32.cont [14/16] 0.0, 128
          %1111 = vxpose.xlu0.b32.cont [15/16] 0.0, 128
          %1112 = vxpose.xlu0.b32.end [16/16] 0.0, 128
          %v1113 = vpop.trf.xlu0
          %v1114 = vpop.trf.xlu0
          %v1115 = vpop.trf.xlu0
          %v1116 = vpop.trf.xlu0
          %v1117 = vpop.trf.xlu0
          %v1118 = vpop.trf.xlu0
          %v1119 = vpop.trf.xlu0
          %v1120 = vpop.trf.xlu0
          %v1121 = vpop.trf.xlu0
          %v1122 = vpop.trf.xlu0
          %v1123 = vpop.trf.xlu0
          %v1124 = vpop.trf.xlu0
          %v1125 = vpop.trf.xlu0
          %v1126 = vpop.trf.xlu0
          %v1127 = vpop.trf.xlu0
          %v1128 = vpop.trf.xlu0
          %1129 = vxpose.xlu0.b32.start [1/16] %v1090, 128
          %1130 = vxpose.xlu0.b32.cont [2/16] 0.0, 128
          %1131 = vxpose.xlu0.b32.cont [3/16] 0.0, 128
          %1132 = vxpose.xlu0.b32.cont [4/16] 0.0, 128
          %1133 = vxpose.xlu0.b32.cont [5/16] 0.0, 128
          %1134 = vxpose.xlu0.b32.cont [6/16] 0.0, 128
          %1135 = vxpose.xlu0.b32.cont [7/16] 0.0, 128
          %1136 = vxpose.xlu0.b32.cont [8/16] 0.0, 128
          %1137 = vxpose.xlu0.b32.cont [9/16] 0.0, 128
          %1138 = vxpose.xlu0.b32.cont [10/16] 0.0, 128
          %1139 = vxpose.xlu0.b32.cont [11/16] 0.0, 128
          %1140 = vxpose.xlu0.b32.cont [12/16] 0.0, 128
          %1141 = vxpose.xlu0.b32.cont [13/16] 0.0, 128
          %1142 = vxpose.xlu0.b32.cont [14/16] 0.0, 128
          %1143 = vxpose.xlu0.b32.cont [15/16] 0.0, 128
          %1144 = vxpose.xlu0.b32.end [16/16] 0.0, 128
          %v1145 = vpop.trf.xlu0
          %v1146 = vpop.trf.xlu0
          %v1147 = vpop.trf.xlu0
          %v1148 = vpop.trf.xlu0
          %v1149 = vpop.trf.xlu0
          %v1150 = vpop.trf.xlu0
          %v1151 = vpop.trf.xlu0
          %v1152 = vpop.trf.xlu0
          %v1153 = vpop.trf.xlu0
          %v1154 = vpop.trf.xlu0
          %v1155 = vpop.trf.xlu0
          %v1156 = vpop.trf.xlu0
          %v1157 = vpop.trf.xlu0
          %v1158 = vpop.trf.xlu0
          %v1159 = vpop.trf.xlu0
          %v1160 = vpop.trf.xlu0
          %1161 = vxpose.xlu0.b32.start [1/16] %v1091, 128
          %1162 = vxpose.xlu0.b32.cont [2/16] 0.0, 128
          %1163 = vxpose.xlu0.b32.cont [3/16] 0.0, 128
          %1164 = vxpose.xlu0.b32.cont [4/16] 0.0, 128
          %1165 = vxpose.xlu0.b32.cont [5/16] 0.0, 128
          %1166 = vxpose.xlu0.b32.cont [6/16] 0.0, 128
          %1167 = vxpose.xlu0.b32.cont [7/16] 0.0, 128
          %1168 = vxpose.xlu0.b32.cont [8/16] 0.0, 128
          %1169 = vxpose.xlu0.b32.cont [9/16] 0.0, 128
          %1170 = vxpose.xlu0.b32.cont [10/16] 0.0, 128
          %1171 = vxpose.xlu0.b32.cont [11/16] 0.0, 128
          %1172 = vxpose.xlu0.b32.cont [12/16] 0.0, 128
          %1173 = vxpose.xlu0.b32.cont [13/16] 0.0, 128
          %1174 = vxpose.xlu0.b32.cont [14/16] 0.0, 128
          %1175 = vxpose.xlu0.b32.cont [15/16] 0.0, 128
          %1176 = vxpose.xlu0.b32.end [16/16] 0.0, 128
          %v1177 = vpop.trf.xlu0
          %v1178 = vpop.trf.xlu0
          %v1179 = vpop.trf.xlu0
          %v1180 = vpop.trf.xlu0
          %v1181 = vpop.trf.xlu0
          %v1182 = vpop.trf.xlu0
          %v1183 = vpop.trf.xlu0
          %v1184 = vpop.trf.xlu0
          %v1185 = vpop.trf.xlu0
          %v1186 = vpop.trf.xlu0
          %v1187 = vpop.trf.xlu0
          %v1188 = vpop.trf.xlu0
          %v1189 = vpop.trf.xlu0
          %v1190 = vpop.trf.xlu0
          %v1191 = vpop.trf.xlu0
          %v1192 = vpop.trf.xlu0
          %1193 = vxpose.xlu0.b32.start [1/16] %v1092, 128
          %1194 = vxpose.xlu0.b32.cont [2/16] 0.0, 128
          %1195 = vxpose.xlu0.b32.cont [3/16] 0.0, 128
          %1196 = vxpose.xlu0.b32.cont [4/16] 0.0, 128
          %1197 = vxpose.xlu0.b32.cont [5/16] 0.0, 128
          %1198 = vxpose.xlu0.b32.cont [6/16] 0.0, 128
          %1199 = vxpose.xlu0.b32.cont [7/16] 0.0, 128
          %1200 = vxpose.xlu0.b32.cont [8/16] 0.0, 128
          %1201 = vxpose.xlu0.b32.cont [9/16] 0.0, 128
          %1202 = vxpose.xlu0.b32.cont [10/16] 0.0, 128
          %1203 = vxpose.xlu0.b32.cont [11/16] 0.0, 128
          %1204 = vxpose.xlu0.b32.cont [12/16] 0.0, 128
          %1205 = vxpose.xlu0.b32.cont [13/16] 0.0, 128
          %1206 = vxpose.xlu0.b32.cont [14/16] 0.0, 128
          %1207 = vxpose.xlu0.b32.cont [15/16] 0.0, 128
          %1208 = vxpose.xlu0.b32.end [16/16] 0.0, 128
          %v1209 = vpop.trf.xlu0
          %v1210 = vpop.trf.xlu0
          %v1211 = vpop.trf.xlu0
          %v1212 = vpop.trf.xlu0
          %v1213 = vpop.trf.xlu0
          %v1214 = vpop.trf.xlu0
          %v1215 = vpop.trf.xlu0
          %v1216 = vpop.trf.xlu0
          %v1217 = vpop.trf.xlu0
          %v1218 = vpop.trf.xlu0
          %v1219 = vpop.trf.xlu0
          %v1220 = vpop.trf.xlu0
          %v1221 = vpop.trf.xlu0
          %v1222 = vpop.trf.xlu0
          %v1223 = vpop.trf.xlu0
          %v1224 = vpop.trf.xlu0
          %1225 = vxpose.xlu0.b32.start [1/16] %v1093, 128
          %1226 = vxpose.xlu0.b32.cont [2/16] 0.0, 128
          %1227 = vxpose.xlu0.b32.cont [3/16] 0.0, 128
          %1228 = vxpose.xlu0.b32.cont [4/16] 0.0, 128
          %1229 = vxpose.xlu0.b32.cont [5/16] 0.0, 128
          %1230 = vxpose.xlu0.b32.cont [6/16] 0.0, 128
          %1231 = vxpose.xlu0.b32.cont [7/16] 0.0, 128
          %1232 = vxpose.xlu0.b32.cont [8/16] 0.0, 128
          %1233 = vxpose.xlu0.b32.cont [9/16] 0.0, 128
          %1234 = vxpose.xlu0.b32.cont [10/16] 0.0, 128
          %1235 = vxpose.xlu0.b32.cont [11/16] 0.0, 128
          %1236 = vxpose.xlu0.b32.cont [12/16] 0.0, 128
          %1237 = vxpose.xlu0.b32.cont [13/16] 0.0, 128
          %1238 = vxpose.xlu0.b32.cont [14/16] 0.0, 128
          %1239 = vxpose.xlu0.b32.cont [15/16] 0.0, 128
          %1240 = vxpose.xlu0.b32.end [16/16] 0.0, 128
          %v1241 = vpop.trf.xlu0
          %v1242 = vpop.trf.xlu0
          %v1243 = vpop.trf.xlu0
          %v1244 = vpop.trf.xlu0
          %v1245 = vpop.trf.xlu0
          %v1246 = vpop.trf.xlu0
          %v1247 = vpop.trf.xlu0
          %v1248 = vpop.trf.xlu0
          %v1249 = vpop.trf.xlu0
          %v1250 = vpop.trf.xlu0
          %v1251 = vpop.trf.xlu0
          %v1252 = vpop.trf.xlu0
          %v1253 = vpop.trf.xlu0
          %v1254 = vpop.trf.xlu0
          %v1255 = vpop.trf.xlu0
          %v1256 = vpop.trf.xlu0
          %1257 = vxpose.xlu0.b32.start [1/16] %v1094, 128
          %1258 = vxpose.xlu0.b32.cont [2/16] 0.0, 128
          %1259 = vxpose.xlu0.b32.cont [3/16] 0.0, 128
          %1260 = vxpose.xlu0.b32.cont [4/16] 0.0, 128
          %1261 = vxpose.xlu0.b32.cont [5/16] 0.0, 128
          %1262 = vxpose.xlu0.b32.cont [6/16] 0.0, 128
          %1263 = vxpose.xlu0.b32.cont [7/16] 0.0, 128
          %1264 = vxpose.xlu0.b32.cont [8/16] 0.0, 128
          %1265 = vxpose.xlu0.b32.cont [9/16] 0.0, 128
          %1266 = vxpose.xlu0.b32.cont [10/16] 0.0, 128
          %1267 = vxpose.xlu0.b32.cont [11/16] 0.0, 128
          %1268 = vxpose.xlu0.b32.cont [12/16] 0.0, 128
          %1269 = vxpose.xlu0.b32.cont [13/16] 0.0, 128
          %1270 = vxpose.xlu0.b32.cont [14/16] 0.0, 128
          %1271 = vxpose.xlu0.b32.cont [15/16] 0.0, 128
          %1272 = vxpose.xlu0.b32.end [16/16] 0.0, 128
          %v1273 = vpop.trf.xlu0
          %v1274 = vpop.trf.xlu0
          %v1275 = vpop.trf.xlu0
          %v1276 = vpop.trf.xlu0
          %v1277 = vpop.trf.xlu0
          %v1278 = vpop.trf.xlu0
          %v1279 = vpop.trf.xlu0
          %v1280 = vpop.trf.xlu0
          %v1281 = vpop.trf.xlu0
          %v1282 = vpop.trf.xlu0
          %v1283 = vpop.trf.xlu0
          %v1284 = vpop.trf.xlu0
          %v1285 = vpop.trf.xlu0
          %v1286 = vpop.trf.xlu0
          %v1287 = vpop.trf.xlu0
          %v1288 = vpop.trf.xlu0
          %1289 = vxpose.xlu0.b32.start [1/16] %v1095, 128
          %1290 = vxpose.xlu0.b32.cont [2/16] 0.0, 128
          %1291 = vxpose.xlu0.b32.cont [3/16] 0.0, 128
          %1292 = vxpose.xlu0.b32.cont [4/16] 0.0, 128
          %1293 = vxpose.xlu0.b32.cont [5/16] 0.0, 128
          %1294 = vxpose.xlu0.b32.cont [6/16] 0.0, 128
          %1295 = vxpose.xlu0.b32.cont [7/16] 0.0, 128
          %1296 = vxpose.xlu0.b32.cont [8/16] 0.0, 128
          %1297 = vxpose.xlu0.b32.cont [9/16] 0.0, 128
          %1298 = vxpose.xlu0.b32.cont [10/16] 0.0, 128
          %1299 = vxpose.xlu0.b32.cont [11/16] 0.0, 128
          %1300 = vxpose.xlu0.b32.cont [12/16] 0.0, 128
          %1301 = vxpose.xlu0.b32.cont [13/16] 0.0, 128
          %1302 = vxpose.xlu0.b32.cont [14/16] 0.0, 128
          %1303 = vxpose.xlu0.b32.cont [15/16] 0.0, 128
          %1304 = vxpose.xlu0.b32.end [16/16] 0.0, 128
          %v1305 = vpop.trf.xlu0
          %v1306 = vpop.trf.xlu0
          %v1307 = vpop.trf.xlu0
          %v1308 = vpop.trf.xlu0
          %v1309 = vpop.trf.xlu0
          %v1310 = vpop.trf.xlu0
          %v1311 = vpop.trf.xlu0
          %v1312 = vpop.trf.xlu0
          %v1313 = vpop.trf.xlu0
          %v1314 = vpop.trf.xlu0
          %v1315 = vpop.trf.xlu0
          %v1316 = vpop.trf.xlu0
          %v1317 = vpop.trf.xlu0
          %v1318 = vpop.trf.xlu0
          %v1319 = vpop.trf.xlu0
          %v1320 = vpop.trf.xlu0
          %1321 = vxpose.xlu0.b32.start [1/16] %v1096, 128
          %1322 = vxpose.xlu0.b32.cont [2/16] 0.0, 128
          %1323 = vxpose.xlu0.b32.cont [3/16] 0.0, 128
          %1324 = vxpose.xlu0.b32.cont [4/16] 0.0, 128
          %1325 = vxpose.xlu0.b32.cont [5/16] 0.0, 128
          %1326 = vxpose.xlu0.b32.cont [6/16] 0.0, 128
          %1327 = vxpose.xlu0.b32.cont [7/16] 0.0, 128
          %1328 = vxpose.xlu0.b32.cont [8/16] 0.0, 128
          %1329 = vxpose.xlu0.b32.cont [9/16] 0.0, 128
          %1330 = vxpose.xlu0.b32.cont [10/16] 0.0, 128
          %1331 = vxpose.xlu0.b32.cont [11/16] 0.0, 128
          %1332 = vxpose.xlu0.b32.cont [12/16] 0.0, 128
          %1333 = vxpose.xlu0.b32.cont [13/16] 0.0, 128
          %1334 = vxpose.xlu0.b32.cont [14/16] 0.0, 128
          %1335 = vxpose.xlu0.b32.cont [15/16] 0.0, 128
          %1336 = vxpose.xlu0.b32.end [16/16] 0.0, 128
          %v1337 = vpop.trf.xlu0
          %v1338 = vpop.trf.xlu0
          %v1339 = vpop.trf.xlu0
          %v1340 = vpop.trf.xlu0
          %v1341 = vpop.trf.xlu0
          %v1342 = vpop.trf.xlu0
          %v1343 = vpop.trf.xlu0
          %v1344 = vpop.trf.xlu0
          %v1345 = vpop.trf.xlu0
          %v1346 = vpop.trf.xlu0
          %v1347 = vpop.trf.xlu0
          %v1348 = vpop.trf.xlu0
          %v1349 = vpop.trf.xlu0
          %v1350 = vpop.trf.xlu0
          %v1351 = vpop.trf.xlu0
          %v1352 = vpop.trf.xlu0
          %v1353 = vcombine.low %v1113, %v1177
          %v1355 = vunpack.c.l.s4 1983009808
          %v1356 = vunpack.c.0.s8 %v1355
          %v1357 = vlaneseq
          %v1358 = vshrl.u32 %v1357, 7
          %v1359 = vsub.s32 %v1356, %v1358
          %v1360 = vrot.slane %v1353, %v1359
          %v1361 = vcombine.low %v1145, %v1209
          %v1363 = vunpack.c.l.s4 1983009808
          %v1364 = vunpack.c.0.s8 %v1363
          %v1365 = vlaneseq
          %v1366 = vshrl.u32 %v1365, 7
          %v1367 = vsub.s32 %v1364, %v1366
          %v1368 = vrot.slane %v1361, %v1367
          %v1369 = vcombine.low %v1241, %v1305
          %v1371 = vunpack.c.l.s4 1983009808
          %v1372 = vunpack.c.0.s8 %v1371
          %v1373 = vlaneseq
          %v1374 = vshrl.u32 %v1373, 7
          %v1375 = vsub.s32 %v1372, %v1374
          %v1376 = vrot.slane %v1369, %v1375
          %v1377 = vcombine.low %v1273, %v1337
          %v1379 = vunpack.c.l.s4 1983009808
          %v1380 = vunpack.c.0.s8 %v1379
          %v1381 = vlaneseq
          %v1382 = vshrl.u32 %v1381, 7
          %v1383 = vsub.s32 %v1380, %v1382
          %v1384 = vrot.slane %v1377, %v1383
          %v1385 = vcombine.low %v1360, %v1368
          %v1386 = vcombine.high %v1360, %v1368
          %v1388 = vunpack.c.l.s4 1934713408
          %v1389 = vunpack.c.0.s8 %v1388
          %v1390 = vlaneseq
          %v1391 = vshrl.u32 %v1390, 7
          %v1392 = vsub.s32 %v1389, %v1391
          %v1393 = vrot.slane %v1385, %v1392
          %v1395 = vunpack.c.l.s4 1934713408
          %v1396 = vunpack.c.0.s8 %v1395
          %v1397 = vlaneseq
          %v1398 = vshrl.u32 %v1397, 7
          %v1399 = vsub.s32 %v1396, %v1398
          %v1400 = vrot.slane %v1386, %v1399
          %v1401 = vcombine.low %v1376, %v1384
          %v1402 = vcombine.high %v1376, %v1384
          %v1404 = vunpack.c.l.s4 1934713408
          %v1405 = vunpack.c.0.s8 %v1404
          %v1406 = vlaneseq
          %v1407 = vshrl.u32 %v1406, 7
          %v1408 = vsub.s32 %v1405, %v1407
          %v1409 = vrot.slane %v1401, %v1408
          %v1411 = vunpack.c.l.s4 1934713408
          %v1412 = vunpack.c.0.s8 %v1411
          %v1413 = vlaneseq
          %v1414 = vshrl.u32 %v1413, 7
          %v1415 = vsub.s32 %v1412, %v1414
          %v1416 = vrot.slane %v1402, %v1415
          %v1417 = vcombine.low %v1393, %v1409
          %v1418 = vcombine.high %v1393, %v1409
          %v1419 = vcombine.low %v1400, %v1416
          %v1420 = vcombine.high %v1400, %v1416
          %vm1421 = vcmask 64512
          %1422 = vst.msk [vmem:[#allocation2] sm:$0xff] %vm1421, %v1417
          %1423 = vst.msk [vmem:[#allocation2 + $0x8] sm:$0xff] %vm1421, %v1418
          %1424 = vst.msk [vmem:[#allocation2 + $0x10] sm:$0xff] %vm1421, %v1419
          %1425 = vst.msk [vmem:[#allocation2 + $0x18] sm:$0xff] %vm1421, %v1420
          %1426 = vrot.lane.b32.xlu0 %v624, 96
          %v1427 = vpop.permute.xlu0 %1426
          %1428 = vrot.lane.b32.xlu0 %v629, 96
          %v1429 = vpop.permute.xlu0 %1428
          %1430 = vrot.lane.b32.xlu0 %v632, 96
          %v1431 = vpop.permute.xlu0 %1430
          %1432 = vrot.lane.b32.xlu0 %v635, 96
          %v1433 = vpop.permute.xlu0 %1432
          %v1438 = vcombine.low %v1427, %v1431
          %v1439 = vcombine.high %v1427, %v1431
          %v1441 = vunpack.c.l.s4 1983009808
          %v1442 = vunpack.c.0.s8 %v1441
          %v1443 = vlaneseq
          %v1444 = vshrl.u32 %v1443, 7
          %v1445 = vsub.s32 %v1442, %v1444
          %v1446 = vrot.slane %v1438, %v1445
          %v1448 = vunpack.c.l.s4 1983009808
          %v1449 = vunpack.c.0.s8 %v1448
          %v1450 = vlaneseq
          %v1451 = vshrl.u32 %v1450, 7
          %v1452 = vsub.s32 %v1449, %v1451
          %v1453 = vrot.slane %v1439, %v1452
          %v1454 = vcombine.low %v1429, %v1433
          %v1455 = vcombine.high %v1429, %v1433
          %v1457 = vunpack.c.l.s4 1983009808
          %v1458 = vunpack.c.0.s8 %v1457
          %v1459 = vlaneseq
          %v1460 = vshrl.u32 %v1459, 7
          %v1461 = vsub.s32 %v1458, %v1460
          %v1462 = vrot.slane %v1454, %v1461
          %v1464 = vunpack.c.l.s4 1983009808
          %v1465 = vunpack.c.0.s8 %v1464
          %v1466 = vlaneseq
          %v1467 = vshrl.u32 %v1466, 7
          %v1468 = vsub.s32 %v1465, %v1467
          %v1469 = vrot.slane %v1455, %v1468
          %v1470 = vcombine.low %v1446, %v1462
          %v1471 = vcombine.high %v1446, %v1462
          %v1473 = vunpack.c.l.s4 1934713408
          %v1474 = vunpack.c.0.s8 %v1473
          %v1475 = vlaneseq
          %v1476 = vshrl.u32 %v1475, 7
          %v1477 = vsub.s32 %v1474, %v1476
          %v1478 = vrot.slane %v1470, %v1477
          %v1480 = vunpack.c.l.s4 1934713408
          %v1481 = vunpack.c.0.s8 %v1480
          %v1482 = vlaneseq
          %v1483 = vshrl.u32 %v1482, 7
          %v1484 = vsub.s32 %v1481, %v1483
          %v1485 = vrot.slane %v1471, %v1484
          %v1486 = vcombine.low %v1453, %v1469
          %v1487 = vcombine.high %v1453, %v1469
          %v1489 = vunpack.c.l.s4 1934713408
          %v1490 = vunpack.c.0.s8 %v1489
          %v1491 = vlaneseq
          %v1492 = vshrl.u32 %v1491, 7
          %v1493 = vsub.s32 %v1490, %v1492
          %v1494 = vrot.slane %v1486, %v1493
          %v1496 = vunpack.c.l.s4 1934713408
          %v1497 = vunpack.c.0.s8 %v1496
          %v1498 = vlaneseq
          %v1499 = vshrl.u32 %v1498, 7
          %v1500 = vsub.s32 %v1497, %v1499
          %v1501 = vrot.slane %v1487, %v1500
          %v1502 = vcombine.high %v1478, 0.0
          %v1503 = vcombine.high %v1485, 0.0
          %v1504 = vcombine.high %v1494, 0.0
          %v1505 = vcombine.high %v1501, 0.0
          %v1506 = vcombine.low %v1478, %v1485
          %v1508 = vunpack.c.l.s4 1983009808
          %v1509 = vunpack.c.0.s8 %v1508
          %v1510 = vlaneseq
          %v1511 = vshrl.u32 %v1510, 7
          %v1512 = vsub.s32 %v1509, %v1511
          %v1513 = vrot.slane %v1506, %v1512
          %v1514 = vcombine.low %v1502, %v1503
          %v1516 = vunpack.c.l.s4 1983009808
          %v1517 = vunpack.c.0.s8 %v1516
          %v1518 = vlaneseq
          %v1519 = vshrl.u32 %v1518, 7
          %v1520 = vsub.s32 %v1517, %v1519
          %v1521 = vrot.slane %v1514, %v1520
          %v1522 = vcombine.low %v1494, %v1501
          %v1524 = vunpack.c.l.s4 1983009808
          %v1525 = vunpack.c.0.s8 %v1524
          %v1526 = vlaneseq
          %v1527 = vshrl.u32 %v1526, 7
          %v1528 = vsub.s32 %v1525, %v1527
          %v1529 = vrot.slane %v1522, %v1528
          %v1530 = vcombine.low %v1504, %v1505
          %v1532 = vunpack.c.l.s4 1983009808
          %v1533 = vunpack.c.0.s8 %v1532
          %v1534 = vlaneseq
          %v1535 = vshrl.u32 %v1534, 7
          %v1536 = vsub.s32 %v1533, %v1535
          %v1537 = vrot.slane %v1530, %v1536
          %v1538 = vcombine.low %v1513, %v1521
          %v1539 = vcombine.high %v1513, %v1521
          %v1541 = vunpack.c.l.s4 1934713408
          %v1542 = vunpack.c.0.s8 %v1541
          %v1543 = vlaneseq
          %v1544 = vshrl.u32 %v1543, 7
          %v1545 = vsub.s32 %v1542, %v1544
          %v1546 = vrot.slane %v1538, %v1545
          %v1548 = vunpack.c.l.s4 1934713408
          %v1549 = vunpack.c.0.s8 %v1548
          %v1550 = vlaneseq
          %v1551 = vshrl.u32 %v1550, 7
          %v1552 = vsub.s32 %v1549, %v1551
          %v1553 = vrot.slane %v1539, %v1552
          %v1554 = vcombine.low %v1529, %v1537
          %v1555 = vcombine.high %v1529, %v1537
          %v1557 = vunpack.c.l.s4 1934713408
          %v1558 = vunpack.c.0.s8 %v1557
          %v1559 = vlaneseq
          %v1560 = vshrl.u32 %v1559, 7
          %v1561 = vsub.s32 %v1558, %v1560
          %v1562 = vrot.slane %v1554, %v1561
          %v1564 = vunpack.c.l.s4 1934713408
          %v1565 = vunpack.c.0.s8 %v1564
          %v1566 = vlaneseq
          %v1567 = vshrl.u32 %v1566, 7
          %v1568 = vsub.s32 %v1565, %v1567
          %v1569 = vrot.slane %v1555, %v1568
          %v1570 = vcombine.low %v1546, %v1562
          %v1571 = vcombine.high %v1546, %v1562
          %v1572 = vcombine.low %v1553, %v1569
          %v1573 = vcombine.high %v1553, %v1569
          %1574 = vst.msk [vmem:[#allocation3] sm:$0xff] %vm1421, %v1570
          %1575 = vst.msk [vmem:[#allocation3 + $0x10] sm:$0xff] %vm1421, %v1571
          %1576 = vst.msk [vmem:[#allocation3 + $0x20] sm:$0xff] %vm1421, %v1572
          %1577 = vst.msk [vmem:[#allocation3 + $0x30] sm:$0xff] %vm1421, %v1573
          %v1578 = vld [vmem:[%s506 + $0x8] sm:$0xff]
          %v1579 = vld [vmem:[%s1] sm:$0x1]
          %v1580 = vld [vmem:[%s2] sm:$0x1]
          %v1581 = vsel %vm514, %v1578, 0.0
          %1582 = vadd.xlane.f32.xlu0 %v1581
          %v1583 = vpop.xlane.xlu0 %1582
          %v1584 = vmul.f32 %v1583, %v518
          %v1585 = vsub.f32 %v1578, %v1584
          %v1586 = vmul.f32 %v1585, %v1585
          %v1587 = vsel %vm514, %v1586, 0.0
          %1588 = vadd.xlane.f32.xlu0 %v1587
          %v1589 = vpop.xlane.xlu0 %1588
          %v1590 = vmul.f32 %v1589, %v518
          %v1591 = vadd.f32 %v1590, 1e-05
          %v1592 = vrsqrt.pop %v1591
          %v1593 = vmul.f32 %v1585, %v1592
          %v1595 = vlaneseq
          %v1596 = vshrl.u32 %v1595, 7
          %v1597 = vsub.s32 0, %v1596
          %v1598 = vrot.slane %v1579, %v1597
          %v1600 = vmul.f32 %v1593, %v1598
          %v1602 = vlaneseq
          %v1603 = vshrl.u32 %v1602, 7
          %v1604 = vsub.s32 0, %v1603
          %v1605 = vrot.slane %v1580, %v1604
          %v1607 = vadd.f32 %v1600, %v1605
          %v1608 = vld [vmem:[%s5] sm:$0xff]
          %v1609 = vld [vmem:[%s5 + $0x8] sm:$0xff]
          %v1610 = vld [vmem:[%s5 + $0x10] sm:$0xff]
          %v1611 = vld [vmem:[%s5 + $0x18] sm:$0xff]
          %v1612 = vld [vmem:[%s6] sm:$0x1]
          %v1614 = vlaneseq
          %v1615 = vshrl.u32 %v1614, 7
          %v1616 = vsub.s32 0, %v1615
          %v1617 = vrot.slane %v1612, %v1616
          %v1620 = vsel %vm514, %v1607, 0
          %1622 = vmatprep.subr.mxu0 0.0
          %1623 = vmatpush1.msra.mxu0 %v1608
          %1624 = vmatprep.subr.mxu0 0.0
          %1625 = vmatpush1.msra.mxu0 %v1609
          %1626 = vmatprep.subr.mxu0 0.0
          %1627 = vmatpush1.msra.mxu0 %v1610
          %1628 = vmatprep.subr.mxu0 0.0
          %1629 = vmatpush1.msra.mxu0 %v1611
          %1630 = vmatprep.subr.mxu0 0.0
          %1631 = vmatpush1.msra.mxu0 0.0
          %1632 = vmatprep.subr.mxu0 0.0
          %1633 = vmatpush1.msra.mxu0 0.0
          %1634 = vmatprep.subr.mxu0 0.0
          %1635 = vmatpush1.msra.mxu0 0.0
          %1636 = vmatprep.subr.mxu0 0.0
          %1637 = vmatpush1.msra.mxu0 0.0
          %1638 = vmatprep.subr.mxu0 0.0
          %1639 = vmatpush1.msra.mxu0 0.0
          %1640 = vmatprep.subr.mxu0 0.0
          %1641 = vmatpush1.msra.mxu0 0.0
          %1642 = vmatprep.subr.mxu0 0.0
          %1643 = vmatpush1.msra.mxu0 0.0
          %1644 = vmatprep.subr.mxu0 0.0
          %1645 = vmatpush1.msra.mxu0 0.0
          %1646 = vmatprep.subr.mxu0 0.0
          %1647 = vmatpush1.msra.mxu0 0.0
          %1648 = vmatprep.subr.mxu0 0.0
          %1649 = vmatpush1.msra.mxu0 0.0
          %1650 = vmatprep.subr.mxu0 0.0
          %1651 = vmatpush1.msra.mxu0 0.0
          %1652 = vmatprep.subr.mxu0 0.0
          %1653 = vmatpush1.msra.mxu0 0.0
          %1654 = vmatprep.subr.mxu0 0.0
          %1655 = vmatpush1.msra.mxu0 0.0
          %1656 = vmatprep.subr.mxu0 0.0
          %1657 = vmatpush1.msra.mxu0 0.0
          %1658 = vmatprep.subr.mxu0 0.0
          %1659 = vmatpush1.msra.mxu0 0.0
          %1660 = vmatprep.subr.mxu0 0.0
          %1661 = vmatpush1.msra.mxu0 0.0
          %1662 = vmatprep.subr.mxu0 0.0
          %1663 = vmatpush1.msra.mxu0 0.0
          %1664 = vmatprep.subr.mxu0 0.0
          %1665 = vmatpush1.msra.mxu0 0.0
          %1666 = vmatprep.subr.mxu0 0.0
          %1667 = vmatpush1.msra.mxu0 0.0
          %1668 = vmatprep.subr.mxu0 0.0
          %1669 = vmatpush1.msra.mxu0 0.0
          %1670 = vmatprep.subr.mxu0 0.0
          %1671 = vmatpush1.msra.mxu0 0.0
          %1672 = vmatprep.subr.mxu0 0.0
          %1673 = vmatpush1.msra.mxu0 0.0
          %1674 = vmatprep.subr.mxu0 0.0
          %1675 = vmatpush1.msra.mxu0 0.0
          %1676 = vmatprep.subr.mxu0 0.0
          %1677 = vmatpush1.msra.mxu0 0.0
          %1678 = vmatprep.subr.mxu0 0.0
          %1679 = vmatpush1.msra.mxu0 0.0
          %1680 = vmatprep.subr.mxu0 0.0
          %1681 = vmatpush1.msra.mxu0 0.0
          %1682 = vmatprep.subr.mxu0 0.0
          %1683 = vmatpush1.msra.mxu0 0.0
          %1684 = vmatprep.subr.mxu0 0.0
          %1685 = vmatpush1.msra.mxu0 0.0
          %1686 = vmatprep.mubr.f32.mxu0 0.0
          %1687 = vmatmul.mubr.f32.gmra.mrb[0].mxu0 %v1620
          %v1688 = vpop.f32.mrb[0].mxu0
          %v1689 = vadd.f32 %v1617, %v1688
          %v1690 = vpop.f32.mrb[0].mxu0
          %1691 = vdwg.mxu0
          %1693 = vrot.lane.b32.xlu0 %v1689, 120
          %v1694 = vpop.permute.xlu0 %1693
          %1696 = vrot.lane.b32.xlu0 %v1689, 112
          %v1697 = vpop.permute.xlu0 %1696
          %1699 = vrot.lane.b32.xlu0 %v1689, 104
          %v1700 = vpop.permute.xlu0 %1699
          %v1702 = vcombine.low %v1689, %v1697
          %v1703 = vcombine.high %v1689, %v1697
          %v1705 = vunpack.c.l.s4 1983009808
          %v1706 = vunpack.c.0.s8 %v1705
          %v1707 = vlaneseq
          %v1708 = vshrl.u32 %v1707, 7
          %v1709 = vsub.s32 %v1706, %v1708
          %v1710 = vrot.slane %v1702, %v1709
          %v1712 = vunpack.c.l.s4 1983009808
          %v1713 = vunpack.c.0.s8 %v1712
          %v1714 = vlaneseq
          %v1715 = vshrl.u32 %v1714, 7
          %v1716 = vsub.s32 %v1713, %v1715
          %v1717 = vrot.slane %v1703, %v1716
          %v1718 = vcombine.low %v1694, %v1700
          %v1719 = vcombine.high %v1694, %v1700
          %v1721 = vunpack.c.l.s4 1983009808
          %v1722 = vunpack.c.0.s8 %v1721
          %v1723 = vlaneseq
          %v1724 = vshrl.u32 %v1723, 7
          %v1725 = vsub.s32 %v1722, %v1724
          %v1726 = vrot.slane %v1718, %v1725
          %v1728 = vunpack.c.l.s4 1983009808
          %v1729 = vunpack.c.0.s8 %v1728
          %v1730 = vlaneseq
          %v1731 = vshrl.u32 %v1730, 7
          %v1732 = vsub.s32 %v1729, %v1731
          %v1733 = vrot.slane %v1719, %v1732
          %v1734 = vcombine.low %v1710, %v1726
          %v1735 = vcombine.high %v1710, %v1726
          %v1737 = vunpack.c.l.s4 1934713408
          %v1738 = vunpack.c.0.s8 %v1737
          %v1739 = vlaneseq
          %v1740 = vshrl.u32 %v1739, 7
          %v1741 = vsub.s32 %v1738, %v1740
          %v1742 = vrot.slane %v1734, %v1741
          %v1744 = vunpack.c.l.s4 1934713408
          %v1745 = vunpack.c.0.s8 %v1744
          %v1746 = vlaneseq
          %v1747 = vshrl.u32 %v1746, 7
          %v1748 = vsub.s32 %v1745, %v1747
          %v1749 = vrot.slane %v1735, %v1748
          %v1750 = vcombine.low %v1717, %v1733
          %v1751 = vcombine.high %v1717, %v1733
          %v1753 = vunpack.c.l.s4 1934713408
          %v1754 = vunpack.c.0.s8 %v1753
          %v1755 = vlaneseq
          %v1756 = vshrl.u32 %v1755, 7
          %v1757 = vsub.s32 %v1754, %v1756
          %v1758 = vrot.slane %v1750, %v1757
          %v1760 = vunpack.c.l.s4 1934713408
          %v1761 = vunpack.c.0.s8 %v1760
          %v1762 = vlaneseq
          %v1763 = vshrl.u32 %v1762, 7
          %v1764 = vsub.s32 %v1761, %v1763
          %v1765 = vrot.slane %v1751, %v1764
          %v1766 = vcombine.high %v1742, 0.0
          %v1767 = vcombine.high %v1749, 0.0
          %v1768 = vcombine.high %v1758, 0.0
          %v1769 = vcombine.high %v1765, 0.0
          %1770 = vxpose.xlu0.b32.start [1/16] %v1742, 128
          %1771 = vxpose.xlu0.b32.cont [2/16] 0.0, 128
          %1772 = vxpose.xlu0.b32.cont [3/16] 0.0, 128
          %1773 = vxpose.xlu0.b32.cont [4/16] 0.0, 128
          %1774 = vxpose.xlu0.b32.cont [5/16] 0.0, 128
          %1775 = vxpose.xlu0.b32.cont [6/16] 0.0, 128
          %1776 = vxpose.xlu0.b32.cont [7/16] 0.0, 128
          %1777 = vxpose.xlu0.b32.cont [8/16] 0.0, 128
          %1778 = vxpose.xlu0.b32.cont [9/16] 0.0, 128
          %1779 = vxpose.xlu0.b32.cont [10/16] 0.0, 128
          %1780 = vxpose.xlu0.b32.cont [11/16] 0.0, 128
          %1781 = vxpose.xlu0.b32.cont [12/16] 0.0, 128
          %1782 = vxpose.xlu0.b32.cont [13/16] 0.0, 128
          %1783 = vxpose.xlu0.b32.cont [14/16] 0.0, 128
          %1784 = vxpose.xlu0.b32.cont [15/16] 0.0, 128
          %1785 = vxpose.xlu0.b32.end [16/16] 0.0, 128
          %v1786 = vpop.trf.xlu0
          %v1787 = vpop.trf.xlu0
          %v1788 = vpop.trf.xlu0
          %v1789 = vpop.trf.xlu0
          %v1790 = vpop.trf.xlu0
          %v1791 = vpop.trf.xlu0
          %v1792 = vpop.trf.xlu0
          %v1793 = vpop.trf.xlu0
          %v1794 = vpop.trf.xlu0
          %v1795 = vpop.trf.xlu0
          %v1796 = vpop.trf.xlu0
          %v1797 = vpop.trf.xlu0
          %v1798 = vpop.trf.xlu0
          %v1799 = vpop.trf.xlu0
          %v1800 = vpop.trf.xlu0
          %v1801 = vpop.trf.xlu0
          %1802 = vxpose.xlu0.b32.start [1/16] %v1766, 128
          %1803 = vxpose.xlu0.b32.cont [2/16] 0.0, 128
          %1804 = vxpose.xlu0.b32.cont [3/16] 0.0, 128
          %1805 = vxpose.xlu0.b32.cont [4/16] 0.0, 128
          %1806 = vxpose.xlu0.b32.cont [5/16] 0.0, 128
          %1807 = vxpose.xlu0.b32.cont [6/16] 0.0, 128
          %1808 = vxpose.xlu0.b32.cont [7/16] 0.0, 128
          %1809 = vxpose.xlu0.b32.cont [8/16] 0.0, 128
          %1810 = vxpose.xlu0.b32.cont [9/16] 0.0, 128
          %1811 = vxpose.xlu0.b32.cont [10/16] 0.0, 128
          %1812 = vxpose.xlu0.b32.cont [11/16] 0.0, 128
          %1813 = vxpose.xlu0.b32.cont [12/16] 0.0, 128
          %1814 = vxpose.xlu0.b32.cont [13/16] 0.0, 128
          %1815 = vxpose.xlu0.b32.cont [14/16] 0.0, 128
          %1816 = vxpose.xlu0.b32.cont [15/16] 0.0, 128
          %1817 = vxpose.xlu0.b32.end [16/16] 0.0, 128
          %v1818 = vpop.trf.xlu0
          %v1819 = vpop.trf.xlu0
          %v1820 = vpop.trf.xlu0
          %v1821 = vpop.trf.xlu0
          %v1822 = vpop.trf.xlu0
          %v1823 = vpop.trf.xlu0
          %v1824 = vpop.trf.xlu0
          %v1825 = vpop.trf.xlu0
          %v1826 = vpop.trf.xlu0
          %v1827 = vpop.trf.xlu0
          %v1828 = vpop.trf.xlu0
          %v1829 = vpop.trf.xlu0
          %v1830 = vpop.trf.xlu0
          %v1831 = vpop.trf.xlu0
          %v1832 = vpop.trf.xlu0
          %v1833 = vpop.trf.xlu0
          %1834 = vxpose.xlu0.b32.start [1/16] %v1749, 128
          %1835 = vxpose.xlu0.b32.cont [2/16] 0.0, 128
          %1836 = vxpose.xlu0.b32.cont [3/16] 0.0, 128
          %1837 = vxpose.xlu0.b32.cont [4/16] 0.0, 128
          %1838 = vxpose.xlu0.b32.cont [5/16] 0.0, 128
          %1839 = vxpose.xlu0.b32.cont [6/16] 0.0, 128
          %1840 = vxpose.xlu0.b32.cont [7/16] 0.0, 128
          %1841 = vxpose.xlu0.b32.cont [8/16] 0.0, 128
          %1842 = vxpose.xlu0.b32.cont [9/16] 0.0, 128
          %1843 = vxpose.xlu0.b32.cont [10/16] 0.0, 128
          %1844 = vxpose.xlu0.b32.cont [11/16] 0.0, 128
          %1845 = vxpose.xlu0.b32.cont [12/16] 0.0, 128
          %1846 = vxpose.xlu0.b32.cont [13/16] 0.0, 128
          %1847 = vxpose.xlu0.b32.cont [14/16] 0.0, 128
          %1848 = vxpose.xlu0.b32.cont [15/16] 0.0, 128
          %1849 = vxpose.xlu0.b32.end [16/16] 0.0, 128
          %v1850 = vpop.trf.xlu0
          %v1851 = vpop.trf.xlu0
          %v1852 = vpop.trf.xlu0
          %v1853 = vpop.trf.xlu0
          %v1854 = vpop.trf.xlu0
          %v1855 = vpop.trf.xlu0
          %v1856 = vpop.trf.xlu0
          %v1857 = vpop.trf.xlu0
          %v1858 = vpop.trf.xlu0
          %v1859 = vpop.trf.xlu0
          %v1860 = vpop.trf.xlu0
          %v1861 = vpop.trf.xlu0
          %v1862 = vpop.trf.xlu0
          %v1863 = vpop.trf.xlu0
          %v1864 = vpop.trf.xlu0
          %v1865 = vpop.trf.xlu0
          %1866 = vxpose.xlu0.b32.start [1/16] %v1767, 128
          %1867 = vxpose.xlu0.b32.cont [2/16] 0.0, 128
          %1868 = vxpose.xlu0.b32.cont [3/16] 0.0, 128
          %1869 = vxpose.xlu0.b32.cont [4/16] 0.0, 128
          %1870 = vxpose.xlu0.b32.cont [5/16] 0.0, 128
          %1871 = vxpose.xlu0.b32.cont [6/16] 0.0, 128
          %1872 = vxpose.xlu0.b32.cont [7/16] 0.0, 128
          %1873 = vxpose.xlu0.b32.cont [8/16] 0.0, 128
          %1874 = vxpose.xlu0.b32.cont [9/16] 0.0, 128
          %1875 = vxpose.xlu0.b32.cont [10/16] 0.0, 128
          %1876 = vxpose.xlu0.b32.cont [11/16] 0.0, 128
          %1877 = vxpose.xlu0.b32.cont [12/16] 0.0, 128
          %1878 = vxpose.xlu0.b32.cont [13/16] 0.0, 128
          %1879 = vxpose.xlu0.b32.cont [14/16] 0.0, 128
          %1880 = vxpose.xlu0.b32.cont [15/16] 0.0, 128
          %1881 = vxpose.xlu0.b32.end [16/16] 0.0, 128
          %v1882 = vpop.trf.xlu0
          %v1883 = vpop.trf.xlu0
          %v1884 = vpop.trf.xlu0
          %v1885 = vpop.trf.xlu0
          %v1886 = vpop.trf.xlu0
          %v1887 = vpop.trf.xlu0
          %v1888 = vpop.trf.xlu0
          %v1889 = vpop.trf.xlu0
          %v1890 = vpop.trf.xlu0
          %v1891 = vpop.trf.xlu0
          %v1892 = vpop.trf.xlu0
          %v1893 = vpop.trf.xlu0
          %v1894 = vpop.trf.xlu0
          %v1895 = vpop.trf.xlu0
          %v1896 = vpop.trf.xlu0
          %v1897 = vpop.trf.xlu0
          %1898 = vxpose.xlu0.b32.start [1/16] %v1758, 128
          %1899 = vxpose.xlu0.b32.cont [2/16] 0.0, 128
          %1900 = vxpose.xlu0.b32.cont [3/16] 0.0, 128
          %1901 = vxpose.xlu0.b32.cont [4/16] 0.0, 128
          %1902 = vxpose.xlu0.b32.cont [5/16] 0.0, 128
          %1903 = vxpose.xlu0.b32.cont [6/16] 0.0, 128
          %1904 = vxpose.xlu0.b32.cont [7/16] 0.0, 128
          %1905 = vxpose.xlu0.b32.cont [8/16] 0.0, 128
          %1906 = vxpose.xlu0.b32.cont [9/16] 0.0, 128
          %1907 = vxpose.xlu0.b32.cont [10/16] 0.0, 128
          %1908 = vxpose.xlu0.b32.cont [11/16] 0.0, 128
          %1909 = vxpose.xlu0.b32.cont [12/16] 0.0, 128
          %1910 = vxpose.xlu0.b32.cont [13/16] 0.0, 128
          %1911 = vxpose.xlu0.b32.cont [14/16] 0.0, 128
          %1912 = vxpose.xlu0.b32.cont [15/16] 0.0, 128
          %1913 = vxpose.xlu0.b32.end [16/16] 0.0, 128
          %v1914 = vpop.trf.xlu0
          %v1915 = vpop.trf.xlu0
          %v1916 = vpop.trf.xlu0
          %v1917 = vpop.trf.xlu0
          %v1918 = vpop.trf.xlu0
          %v1919 = vpop.trf.xlu0
          %v1920 = vpop.trf.xlu0
          %v1921 = vpop.trf.xlu0
          %v1922 = vpop.trf.xlu0
          %v1923 = vpop.trf.xlu0
          %v1924 = vpop.trf.xlu0
          %v1925 = vpop.trf.xlu0
          %v1926 = vpop.trf.xlu0
          %v1927 = vpop.trf.xlu0
          %v1928 = vpop.trf.xlu0
          %v1929 = vpop.trf.xlu0
          %1930 = vxpose.xlu0.b32.start [1/16] %v1768, 128
          %1931 = vxpose.xlu0.b32.cont [2/16] 0.0, 128
          %1932 = vxpose.xlu0.b32.cont [3/16] 0.0, 128
          %1933 = vxpose.xlu0.b32.cont [4/16] 0.0, 128
          %1934 = vxpose.xlu0.b32.cont [5/16] 0.0, 128
          %1935 = vxpose.xlu0.b32.cont [6/16] 0.0, 128
          %1936 = vxpose.xlu0.b32.cont [7/16] 0.0, 128
          %1937 = vxpose.xlu0.b32.cont [8/16] 0.0, 128
          %1938 = vxpose.xlu0.b32.cont [9/16] 0.0, 128
          %1939 = vxpose.xlu0.b32.cont [10/16] 0.0, 128
          %1940 = vxpose.xlu0.b32.cont [11/16] 0.0, 128
          %1941 = vxpose.xlu0.b32.cont [12/16] 0.0, 128
          %1942 = vxpose.xlu0.b32.cont [13/16] 0.0, 128
          %1943 = vxpose.xlu0.b32.cont [14/16] 0.0, 128
          %1944 = vxpose.xlu0.b32.cont [15/16] 0.0, 128
          %1945 = vxpose.xlu0.b32.end [16/16] 0.0, 128
          %v1946 = vpop.trf.xlu0
          %v1947 = vpop.trf.xlu0
          %v1948 = vpop.trf.xlu0
          %v1949 = vpop.trf.xlu0
          %v1950 = vpop.trf.xlu0
          %v1951 = vpop.trf.xlu0
          %v1952 = vpop.trf.xlu0
          %v1953 = vpop.trf.xlu0
          %v1954 = vpop.trf.xlu0
          %v1955 = vpop.trf.xlu0
          %v1956 = vpop.trf.xlu0
          %v1957 = vpop.trf.xlu0
          %v1958 = vpop.trf.xlu0
          %v1959 = vpop.trf.xlu0
          %v1960 = vpop.trf.xlu0
          %v1961 = vpop.trf.xlu0
          %1962 = vxpose.xlu0.b32.start [1/16] %v1765, 128
          %1963 = vxpose.xlu0.b32.cont [2/16] 0.0, 128
          %1964 = vxpose.xlu0.b32.cont [3/16] 0.0, 128
          %1965 = vxpose.xlu0.b32.cont [4/16] 0.0, 128
          %1966 = vxpose.xlu0.b32.cont [5/16] 0.0, 128
          %1967 = vxpose.xlu0.b32.cont [6/16] 0.0, 128
          %1968 = vxpose.xlu0.b32.cont [7/16] 0.0, 128
          %1969 = vxpose.xlu0.b32.cont [8/16] 0.0, 128
          %1970 = vxpose.xlu0.b32.cont [9/16] 0.0, 128
          %1971 = vxpose.xlu0.b32.cont [10/16] 0.0, 128
          %1972 = vxpose.xlu0.b32.cont [11/16] 0.0, 128
          %1973 = vxpose.xlu0.b32.cont [12/16] 0.0, 128
          %1974 = vxpose.xlu0.b32.cont [13/16] 0.0, 128
          %1975 = vxpose.xlu0.b32.cont [14/16] 0.0, 128
          %1976 = vxpose.xlu0.b32.cont [15/16] 0.0, 128
          %1977 = vxpose.xlu0.b32.end [16/16] 0.0, 128
          %v1978 = vpop.trf.xlu0
          %v1979 = vpop.trf.xlu0
          %v1980 = vpop.trf.xlu0
          %v1981 = vpop.trf.xlu0
          %v1982 = vpop.trf.xlu0
          %v1983 = vpop.trf.xlu0
          %v1984 = vpop.trf.xlu0
          %v1985 = vpop.trf.xlu0
          %v1986 = vpop.trf.xlu0
          %v1987 = vpop.trf.xlu0
          %v1988 = vpop.trf.xlu0
          %v1989 = vpop.trf.xlu0
          %v1990 = vpop.trf.xlu0
          %v1991 = vpop.trf.xlu0
          %v1992 = vpop.trf.xlu0
          %v1993 = vpop.trf.xlu0
          %1994 = vxpose.xlu0.b32.start [1/16] %v1769, 128
          %1995 = vxpose.xlu0.b32.cont [2/16] 0.0, 128
          %1996 = vxpose.xlu0.b32.cont [3/16] 0.0, 128
          %1997 = vxpose.xlu0.b32.cont [4/16] 0.0, 128
          %1998 = vxpose.xlu0.b32.cont [5/16] 0.0, 128
          %1999 = vxpose.xlu0.b32.cont [6/16] 0.0, 128
          %2000 = vxpose.xlu0.b32.cont [7/16] 0.0, 128
          %2001 = vxpose.xlu0.b32.cont [8/16] 0.0, 128
          %2002 = vxpose.xlu0.b32.cont [9/16] 0.0, 128
          %2003 = vxpose.xlu0.b32.cont [10/16] 0.0, 128
          %2004 = vxpose.xlu0.b32.cont [11/16] 0.0, 128
          %2005 = vxpose.xlu0.b32.cont [12/16] 0.0, 128
          %2006 = vxpose.xlu0.b32.cont [13/16] 0.0, 128
          %2007 = vxpose.xlu0.b32.cont [14/16] 0.0, 128
          %2008 = vxpose.xlu0.b32.cont [15/16] 0.0, 128
          %2009 = vxpose.xlu0.b32.end [16/16] 0.0, 128
          %v2010 = vpop.trf.xlu0
          %v2011 = vpop.trf.xlu0
          %v2012 = vpop.trf.xlu0
          %v2013 = vpop.trf.xlu0
          %v2014 = vpop.trf.xlu0
          %v2015 = vpop.trf.xlu0
          %v2016 = vpop.trf.xlu0
          %v2017 = vpop.trf.xlu0
          %v2018 = vpop.trf.xlu0
          %v2019 = vpop.trf.xlu0
          %v2020 = vpop.trf.xlu0
          %v2021 = vpop.trf.xlu0
          %v2022 = vpop.trf.xlu0
          %v2023 = vpop.trf.xlu0
          %v2024 = vpop.trf.xlu0
          %v2025 = vpop.trf.xlu0
          %v2026 = vcombine.low %v1786, %v1850
          %v2027 = vcombine.high %v1786, %v1850
          %v2029 = vunpack.c.l.s4 1983009808
          %v2030 = vunpack.c.0.s8 %v2029
          %v2031 = vlaneseq
          %v2032 = vshrl.u32 %v2031, 7
          %v2033 = vsub.s32 %v2030, %v2032
          %v2034 = vrot.slane %v2026, %v2033
          %v2036 = vunpack.c.l.s4 1983009808
          %v2037 = vunpack.c.0.s8 %v2036
          %v2038 = vlaneseq
          %v2039 = vshrl.u32 %v2038, 7
          %v2040 = vsub.s32 %v2037, %v2039
          %v2041 = vrot.slane %v2027, %v2040
          %v2042 = vcombine.low %v1818, %v1882
          %v2043 = vcombine.high %v1818, %v1882
          %v2045 = vunpack.c.l.s4 1983009808
          %v2046 = vunpack.c.0.s8 %v2045
          %v2047 = vlaneseq
          %v2048 = vshrl.u32 %v2047, 7
          %v2049 = vsub.s32 %v2046, %v2048
          %v2050 = vrot.slane %v2042, %v2049
          %v2052 = vunpack.c.l.s4 1983009808
          %v2053 = vunpack.c.0.s8 %v2052
          %v2054 = vlaneseq
          %v2055 = vshrl.u32 %v2054, 7
          %v2056 = vsub.s32 %v2053, %v2055
          %v2057 = vrot.slane %v2043, %v2056
          %v2058 = vcombine.low %v1914, %v1978
          %v2059 = vcombine.high %v1914, %v1978
          %v2061 = vunpack.c.l.s4 1983009808
          %v2062 = vunpack.c.0.s8 %v2061
          %v2063 = vlaneseq
          %v2064 = vshrl.u32 %v2063, 7
          %v2065 = vsub.s32 %v2062, %v2064
          %v2066 = vrot.slane %v2058, %v2065
          %v2068 = vunpack.c.l.s4 1983009808
          %v2069 = vunpack.c.0.s8 %v2068
          %v2070 = vlaneseq
          %v2071 = vshrl.u32 %v2070, 7
          %v2072 = vsub.s32 %v2069, %v2071
          %v2073 = vrot.slane %v2059, %v2072
          %v2074 = vcombine.low %v1946, %v2010
          %v2075 = vcombine.high %v1946, %v2010
          %v2077 = vunpack.c.l.s4 1983009808
          %v2078 = vunpack.c.0.s8 %v2077
          %v2079 = vlaneseq
          %v2080 = vshrl.u32 %v2079, 7
          %v2081 = vsub.s32 %v2078, %v2080
          %v2082 = vrot.slane %v2074, %v2081
          %v2084 = vunpack.c.l.s4 1983009808
          %v2085 = vunpack.c.0.s8 %v2084
          %v2086 = vlaneseq
          %v2087 = vshrl.u32 %v2086, 7
          %v2088 = vsub.s32 %v2085, %v2087
          %v2089 = vrot.slane %v2075, %v2088
          %v2090 = vcombine.low %v2034, %v2050
          %v2091 = vcombine.high %v2034, %v2050
          %v2093 = vunpack.c.l.s4 1934713408
          %v2094 = vunpack.c.0.s8 %v2093
          %v2095 = vlaneseq
          %v2096 = vshrl.u32 %v2095, 7
          %v2097 = vsub.s32 %v2094, %v2096
          %v2098 = vrot.slane %v2090, %v2097
          %v2100 = vunpack.c.l.s4 1934713408
          %v2101 = vunpack.c.0.s8 %v2100
          %v2102 = vlaneseq
          %v2103 = vshrl.u32 %v2102, 7
          %v2104 = vsub.s32 %v2101, %v2103
          %v2105 = vrot.slane %v2091, %v2104
          %v2106 = vcombine.low %v2041, %v2057
          %v2107 = vcombine.high %v2041, %v2057
          %v2109 = vunpack.c.l.s4 1934713408
          %v2110 = vunpack.c.0.s8 %v2109
          %v2111 = vlaneseq
          %v2112 = vshrl.u32 %v2111, 7
          %v2113 = vsub.s32 %v2110, %v2112
          %v2114 = vrot.slane %v2106, %v2113
          %v2116 = vunpack.c.l.s4 1934713408
          %v2117 = vunpack.c.0.s8 %v2116
          %v2118 = vlaneseq
          %v2119 = vshrl.u32 %v2118, 7
          %v2120 = vsub.s32 %v2117, %v2119
          %v2121 = vrot.slane %v2107, %v2120
          %v2122 = vcombine.low %v2066, %v2082
          %v2123 = vcombine.high %v2066, %v2082
          %v2125 = vunpack.c.l.s4 1934713408
          %v2126 = vunpack.c.0.s8 %v2125
          %v2127 = vlaneseq
          %v2128 = vshrl.u32 %v2127, 7
          %v2129 = vsub.s32 %v2126, %v2128
          %v2130 = vrot.slane %v2122, %v2129
          %v2132 = vunpack.c.l.s4 1934713408
          %v2133 = vunpack.c.0.s8 %v2132
          %v2134 = vlaneseq
          %v2135 = vshrl.u32 %v2134, 7
          %v2136 = vsub.s32 %v2133, %v2135
          %v2137 = vrot.slane %v2123, %v2136
          %v2138 = vcombine.low %v2073, %v2089
          %v2139 = vcombine.high %v2073, %v2089
          %v2141 = vunpack.c.l.s4 1934713408
          %v2142 = vunpack.c.0.s8 %v2141
          %v2143 = vlaneseq
          %v2144 = vshrl.u32 %v2143, 7
          %v2145 = vsub.s32 %v2142, %v2144
          %v2146 = vrot.slane %v2138, %v2145
          %v2148 = vunpack.c.l.s4 1934713408
          %v2149 = vunpack.c.0.s8 %v2148
          %v2150 = vlaneseq
          %v2151 = vshrl.u32 %v2150, 7
          %v2152 = vsub.s32 %v2149, %v2151
          %v2153 = vrot.slane %v2139, %v2152
          %v2154 = vcombine.low %v2098, %v2130
          %v2155 = vcombine.high %v2098, %v2130
          %v2156 = vcombine.low %v2105, %v2137
          %v2157 = vcombine.high %v2105, %v2137
          %v2158 = vcombine.low %v2114, %v2146
          %v2159 = vcombine.high %v2114, %v2146
          %v2160 = vcombine.low %v2121, %v2153
          %v2161 = vcombine.high %v2121, %v2153
          %2162 = vxpose.xlu0.b32.start [1/16] %v2154, 128
          %2163 = vxpose.xlu0.b32.cont [2/16] 0.0, 128
          %2164 = vxpose.xlu0.b32.cont [3/16] 0.0, 128
          %2165 = vxpose.xlu0.b32.cont [4/16] 0.0, 128
          %2166 = vxpose.xlu0.b32.cont [5/16] 0.0, 128
          %2167 = vxpose.xlu0.b32.cont [6/16] 0.0, 128
          %2168 = vxpose.xlu0.b32.cont [7/16] 0.0, 128
          %2169 = vxpose.xlu0.b32.cont [8/16] 0.0, 128
          %2170 = vxpose.xlu0.b32.cont [9/16] 0.0, 128
          %2171 = vxpose.xlu0.b32.cont [10/16] 0.0, 128
          %2172 = vxpose.xlu0.b32.cont [11/16] 0.0, 128
          %2173 = vxpose.xlu0.b32.cont [12/16] 0.0, 128
          %2174 = vxpose.xlu0.b32.cont [13/16] 0.0, 128
          %2175 = vxpose.xlu0.b32.cont [14/16] 0.0, 128
          %2176 = vxpose.xlu0.b32.cont [15/16] 0.0, 128
          %2177 = vxpose.xlu0.b32.end [16/16] 0.0, 128
          %v2178 = vpop.trf.xlu0
          %v2179 = vpop.trf.xlu0
          %v2180 = vpop.trf.xlu0
          %v2181 = vpop.trf.xlu0
          %v2182 = vpop.trf.xlu0
          %v2183 = vpop.trf.xlu0
          %v2184 = vpop.trf.xlu0
          %v2185 = vpop.trf.xlu0
          %v2186 = vpop.trf.xlu0
          %v2187 = vpop.trf.xlu0
          %v2188 = vpop.trf.xlu0
          %v2189 = vpop.trf.xlu0
          %v2190 = vpop.trf.xlu0
          %v2191 = vpop.trf.xlu0
          %v2192 = vpop.trf.xlu0
          %v2193 = vpop.trf.xlu0
          %2194 = vxpose.xlu0.b32.start [1/16] %v2155, 128
          %2195 = vxpose.xlu0.b32.cont [2/16] 0.0, 128
          %2196 = vxpose.xlu0.b32.cont [3/16] 0.0, 128
          %2197 = vxpose.xlu0.b32.cont [4/16] 0.0, 128
          %2198 = vxpose.xlu0.b32.cont [5/16] 0.0, 128
          %2199 = vxpose.xlu0.b32.cont [6/16] 0.0, 128
          %2200 = vxpose.xlu0.b32.cont [7/16] 0.0, 128
          %2201 = vxpose.xlu0.b32.cont [8/16] 0.0, 128
          %2202 = vxpose.xlu0.b32.cont [9/16] 0.0, 128
          %2203 = vxpose.xlu0.b32.cont [10/16] 0.0, 128
          %2204 = vxpose.xlu0.b32.cont [11/16] 0.0, 128
          %2205 = vxpose.xlu0.b32.cont [12/16] 0.0, 128
          %2206 = vxpose.xlu0.b32.cont [13/16] 0.0, 128
          %2207 = vxpose.xlu0.b32.cont [14/16] 0.0, 128
          %2208 = vxpose.xlu0.b32.cont [15/16] 0.0, 128
          %2209 = vxpose.xlu0.b32.end [16/16] 0.0, 128
          %v2210 = vpop.trf.xlu0
          %v2211 = vpop.trf.xlu0
          %v2212 = vpop.trf.xlu0
          %v2213 = vpop.trf.xlu0
          %v2214 = vpop.trf.xlu0
          %v2215 = vpop.trf.xlu0
          %v2216 = vpop.trf.xlu0
          %v2217 = vpop.trf.xlu0
          %v2218 = vpop.trf.xlu0
          %v2219 = vpop.trf.xlu0
          %v2220 = vpop.trf.xlu0
          %v2221 = vpop.trf.xlu0
          %v2222 = vpop.trf.xlu0
          %v2223 = vpop.trf.xlu0
          %v2224 = vpop.trf.xlu0
          %v2225 = vpop.trf.xlu0
          %2226 = vxpose.xlu0.b32.start [1/16] %v2156, 128
          %2227 = vxpose.xlu0.b32.cont [2/16] 0.0, 128
          %2228 = vxpose.xlu0.b32.cont [3/16] 0.0, 128
          %2229 = vxpose.xlu0.b32.cont [4/16] 0.0, 128
          %2230 = vxpose.xlu0.b32.cont [5/16] 0.0, 128
          %2231 = vxpose.xlu0.b32.cont [6/16] 0.0, 128
          %2232 = vxpose.xlu0.b32.cont [7/16] 0.0, 128
          %2233 = vxpose.xlu0.b32.cont [8/16] 0.0, 128
          %2234 = vxpose.xlu0.b32.cont [9/16] 0.0, 128
          %2235 = vxpose.xlu0.b32.cont [10/16] 0.0, 128
          %2236 = vxpose.xlu0.b32.cont [11/16] 0.0, 128
          %2237 = vxpose.xlu0.b32.cont [12/16] 0.0, 128
          %2238 = vxpose.xlu0.b32.cont [13/16] 0.0, 128
          %2239 = vxpose.xlu0.b32.cont [14/16] 0.0, 128
          %2240 = vxpose.xlu0.b32.cont [15/16] 0.0, 128
          %2241 = vxpose.xlu0.b32.end [16/16] 0.0, 128
          %v2242 = vpop.trf.xlu0
          %v2243 = vpop.trf.xlu0
          %v2244 = vpop.trf.xlu0
          %v2245 = vpop.trf.xlu0
          %v2246 = vpop.trf.xlu0
          %v2247 = vpop.trf.xlu0
          %v2248 = vpop.trf.xlu0
          %v2249 = vpop.trf.xlu0
          %v2250 = vpop.trf.xlu0
          %v2251 = vpop.trf.xlu0
          %v2252 = vpop.trf.xlu0
          %v2253 = vpop.trf.xlu0
          %v2254 = vpop.trf.xlu0
          %v2255 = vpop.trf.xlu0
          %v2256 = vpop.trf.xlu0
          %v2257 = vpop.trf.xlu0
          %2258 = vxpose.xlu0.b32.start [1/16] %v2157, 128
          %2259 = vxpose.xlu0.b32.cont [2/16] 0.0, 128
          %2260 = vxpose.xlu0.b32.cont [3/16] 0.0, 128
          %2261 = vxpose.xlu0.b32.cont [4/16] 0.0, 128
          %2262 = vxpose.xlu0.b32.cont [5/16] 0.0, 128
          %2263 = vxpose.xlu0.b32.cont [6/16] 0.0, 128
          %2264 = vxpose.xlu0.b32.cont [7/16] 0.0, 128
          %2265 = vxpose.xlu0.b32.cont [8/16] 0.0, 128
          %2266 = vxpose.xlu0.b32.cont [9/16] 0.0, 128
          %2267 = vxpose.xlu0.b32.cont [10/16] 0.0, 128
          %2268 = vxpose.xlu0.b32.cont [11/16] 0.0, 128
          %2269 = vxpose.xlu0.b32.cont [12/16] 0.0, 128
          %2270 = vxpose.xlu0.b32.cont [13/16] 0.0, 128
          %2271 = vxpose.xlu0.b32.cont [14/16] 0.0, 128
          %2272 = vxpose.xlu0.b32.cont [15/16] 0.0, 128
          %2273 = vxpose.xlu0.b32.end [16/16] 0.0, 128
          %v2274 = vpop.trf.xlu0
          %v2275 = vpop.trf.xlu0
          %v2276 = vpop.trf.xlu0
          %v2277 = vpop.trf.xlu0
          %v2278 = vpop.trf.xlu0
          %v2279 = vpop.trf.xlu0
          %v2280 = vpop.trf.xlu0
          %v2281 = vpop.trf.xlu0
          %v2282 = vpop.trf.xlu0
          %v2283 = vpop.trf.xlu0
          %v2284 = vpop.trf.xlu0
          %v2285 = vpop.trf.xlu0
          %v2286 = vpop.trf.xlu0
          %v2287 = vpop.trf.xlu0
          %v2288 = vpop.trf.xlu0
          %v2289 = vpop.trf.xlu0
          %2290 = vxpose.xlu0.b32.start [1/16] %v2158, 128
          %2291 = vxpose.xlu0.b32.cont [2/16] 0.0, 128
          %2292 = vxpose.xlu0.b32.cont [3/16] 0.0, 128
          %2293 = vxpose.xlu0.b32.cont [4/16] 0.0, 128
          %2294 = vxpose.xlu0.b32.cont [5/16] 0.0, 128
          %2295 = vxpose.xlu0.b32.cont [6/16] 0.0, 128
          %2296 = vxpose.xlu0.b32.cont [7/16] 0.0, 128
          %2297 = vxpose.xlu0.b32.cont [8/16] 0.0, 128
          %2298 = vxpose.xlu0.b32.cont [9/16] 0.0, 128
          %2299 = vxpose.xlu0.b32.cont [10/16] 0.0, 128
          %2300 = vxpose.xlu0.b32.cont [11/16] 0.0, 128
          %2301 = vxpose.xlu0.b32.cont [12/16] 0.0, 128
          %2302 = vxpose.xlu0.b32.cont [13/16] 0.0, 128
          %2303 = vxpose.xlu0.b32.cont [14/16] 0.0, 128
          %2304 = vxpose.xlu0.b32.cont [15/16] 0.0, 128
          %2305 = vxpose.xlu0.b32.end [16/16] 0.0, 128
          %v2306 = vpop.trf.xlu0
          %v2307 = vpop.trf.xlu0
          %v2308 = vpop.trf.xlu0
          %v2309 = vpop.trf.xlu0
          %v2310 = vpop.trf.xlu0
          %v2311 = vpop.trf.xlu0
          %v2312 = vpop.trf.xlu0
          %v2313 = vpop.trf.xlu0
          %v2314 = vpop.trf.xlu0
          %v2315 = vpop.trf.xlu0
          %v2316 = vpop.trf.xlu0
          %v2317 = vpop.trf.xlu0
          %v2318 = vpop.trf.xlu0
          %v2319 = vpop.trf.xlu0
          %v2320 = vpop.trf.xlu0
          %v2321 = vpop.trf.xlu0
          %2322 = vxpose.xlu0.b32.start [1/16] %v2159, 128
          %2323 = vxpose.xlu0.b32.cont [2/16] 0.0, 128
          %2324 = vxpose.xlu0.b32.cont [3/16] 0.0, 128
          %2325 = vxpose.xlu0.b32.cont [4/16] 0.0, 128
          %2326 = vxpose.xlu0.b32.cont [5/16] 0.0, 128
          %2327 = vxpose.xlu0.b32.cont [6/16] 0.0, 128
          %2328 = vxpose.xlu0.b32.cont [7/16] 0.0, 128
          %2329 = vxpose.xlu0.b32.cont [8/16] 0.0, 128
          %2330 = vxpose.xlu0.b32.cont [9/16] 0.0, 128
          %2331 = vxpose.xlu0.b32.cont [10/16] 0.0, 128
          %2332 = vxpose.xlu0.b32.cont [11/16] 0.0, 128
          %2333 = vxpose.xlu0.b32.cont [12/16] 0.0, 128
          %2334 = vxpose.xlu0.b32.cont [13/16] 0.0, 128
          %2335 = vxpose.xlu0.b32.cont [14/16] 0.0, 128
          %2336 = vxpose.xlu0.b32.cont [15/16] 0.0, 128
          %2337 = vxpose.xlu0.b32.end [16/16] 0.0, 128
          %v2338 = vpop.trf.xlu0
          %v2339 = vpop.trf.xlu0
          %v2340 = vpop.trf.xlu0
          %v2341 = vpop.trf.xlu0
          %v2342 = vpop.trf.xlu0
          %v2343 = vpop.trf.xlu0
          %v2344 = vpop.trf.xlu0
          %v2345 = vpop.trf.xlu0
          %v2346 = vpop.trf.xlu0
          %v2347 = vpop.trf.xlu0
          %v2348 = vpop.trf.xlu0
          %v2349 = vpop.trf.xlu0
          %v2350 = vpop.trf.xlu0
          %v2351 = vpop.trf.xlu0
          %v2352 = vpop.trf.xlu0
          %v2353 = vpop.trf.xlu0
          %2354 = vxpose.xlu0.b32.start [1/16] %v2160, 128
          %2355 = vxpose.xlu0.b32.cont [2/16] 0.0, 128
          %2356 = vxpose.xlu0.b32.cont [3/16] 0.0, 128
          %2357 = vxpose.xlu0.b32.cont [4/16] 0.0, 128
          %2358 = vxpose.xlu0.b32.cont [5/16] 0.0, 128
          %2359 = vxpose.xlu0.b32.cont [6/16] 0.0, 128
          %2360 = vxpose.xlu0.b32.cont [7/16] 0.0, 128
          %2361 = vxpose.xlu0.b32.cont [8/16] 0.0, 128
          %2362 = vxpose.xlu0.b32.cont [9/16] 0.0, 128
          %2363 = vxpose.xlu0.b32.cont [10/16] 0.0, 128
          %2364 = vxpose.xlu0.b32.cont [11/16] 0.0, 128
          %2365 = vxpose.xlu0.b32.cont [12/16] 0.0, 128
          %2366 = vxpose.xlu0.b32.cont [13/16] 0.0, 128
          %2367 = vxpose.xlu0.b32.cont [14/16] 0.0, 128
          %2368 = vxpose.xlu0.b32.cont [15/16] 0.0, 128
          %2369 = vxpose.xlu0.b32.end [16/16] 0.0, 128
          %v2370 = vpop.trf.xlu0
          %v2371 = vpop.trf.xlu0
          %v2372 = vpop.trf.xlu0
          %v2373 = vpop.trf.xlu0
          %v2374 = vpop.trf.xlu0
          %v2375 = vpop.trf.xlu0
          %v2376 = vpop.trf.xlu0
          %v2377 = vpop.trf.xlu0
          %v2378 = vpop.trf.xlu0
          %v2379 = vpop.trf.xlu0
          %v2380 = vpop.trf.xlu0
          %v2381 = vpop.trf.xlu0
          %v2382 = vpop.trf.xlu0
          %v2383 = vpop.trf.xlu0
          %v2384 = vpop.trf.xlu0
          %v2385 = vpop.trf.xlu0
          %2386 = vxpose.xlu0.b32.start [1/16] %v2161, 128
          %2387 = vxpose.xlu0.b32.cont [2/16] 0.0, 128
          %2388 = vxpose.xlu0.b32.cont [3/16] 0.0, 128
          %2389 = vxpose.xlu0.b32.cont [4/16] 0.0, 128
          %2390 = vxpose.xlu0.b32.cont [5/16] 0.0, 128
          %2391 = vxpose.xlu0.b32.cont [6/16] 0.0, 128
          %2392 = vxpose.xlu0.b32.cont [7/16] 0.0, 128
          %2393 = vxpose.xlu0.b32.cont [8/16] 0.0, 128
          %2394 = vxpose.xlu0.b32.cont [9/16] 0.0, 128
          %2395 = vxpose.xlu0.b32.cont [10/16] 0.0, 128
          %2396 = vxpose.xlu0.b32.cont [11/16] 0.0, 128
          %2397 = vxpose.xlu0.b32.cont [12/16] 0.0, 128
          %2398 = vxpose.xlu0.b32.cont [13/16] 0.0, 128
          %2399 = vxpose.xlu0.b32.cont [14/16] 0.0, 128
          %2400 = vxpose.xlu0.b32.cont [15/16] 0.0, 128
          %2401 = vxpose.xlu0.b32.end [16/16] 0.0, 128
          %v2402 = vpop.trf.xlu0
          %v2403 = vpop.trf.xlu0
          %v2404 = vpop.trf.xlu0
          %v2405 = vpop.trf.xlu0
          %v2406 = vpop.trf.xlu0
          %v2407 = vpop.trf.xlu0
          %v2408 = vpop.trf.xlu0
          %v2409 = vpop.trf.xlu0
          %v2410 = vpop.trf.xlu0
          %v2411 = vpop.trf.xlu0
          %v2412 = vpop.trf.xlu0
          %v2413 = vpop.trf.xlu0
          %v2414 = vpop.trf.xlu0
          %v2415 = vpop.trf.xlu0
          %v2416 = vpop.trf.xlu0
          %v2417 = vpop.trf.xlu0
          %v2418 = vcombine.low %v2178, %v2242
          %v2420 = vunpack.c.l.s4 1983009808
          %v2421 = vunpack.c.0.s8 %v2420
          %v2422 = vlaneseq
          %v2423 = vshrl.u32 %v2422, 7
          %v2424 = vsub.s32 %v2421, %v2423
          %v2425 = vrot.slane %v2418, %v2424
          %v2426 = vcombine.low %v2210, %v2274
          %v2428 = vunpack.c.l.s4 1983009808
          %v2429 = vunpack.c.0.s8 %v2428
          %v2430 = vlaneseq
          %v2431 = vshrl.u32 %v2430, 7
          %v2432 = vsub.s32 %v2429, %v2431
          %v2433 = vrot.slane %v2426, %v2432
          %v2434 = vcombine.low %v2306, %v2370
          %v2436 = vunpack.c.l.s4 1983009808
          %v2437 = vunpack.c.0.s8 %v2436
          %v2438 = vlaneseq
          %v2439 = vshrl.u32 %v2438, 7
          %v2440 = vsub.s32 %v2437, %v2439
          %v2441 = vrot.slane %v2434, %v2440
          %v2442 = vcombine.low %v2338, %v2402
          %v2444 = vunpack.c.l.s4 1983009808
          %v2445 = vunpack.c.0.s8 %v2444
          %v2446 = vlaneseq
          %v2447 = vshrl.u32 %v2446, 7
          %v2448 = vsub.s32 %v2445, %v2447
          %v2449 = vrot.slane %v2442, %v2448
          %v2450 = vcombine.low %v2425, %v2433
          %v2451 = vcombine.high %v2425, %v2433
          %v2453 = vunpack.c.l.s4 1934713408
          %v2454 = vunpack.c.0.s8 %v2453
          %v2455 = vlaneseq
          %v2456 = vshrl.u32 %v2455, 7
          %v2457 = vsub.s32 %v2454, %v2456
          %v2458 = vrot.slane %v2450, %v2457
          %v2460 = vunpack.c.l.s4 1934713408
          %v2461 = vunpack.c.0.s8 %v2460
          %v2462 = vlaneseq
          %v2463 = vshrl.u32 %v2462, 7
          %v2464 = vsub.s32 %v2461, %v2463
          %v2465 = vrot.slane %v2451, %v2464
          %v2466 = vcombine.low %v2441, %v2449
          %v2467 = vcombine.high %v2441, %v2449
          %v2469 = vunpack.c.l.s4 1934713408
          %v2470 = vunpack.c.0.s8 %v2469
          %v2471 = vlaneseq
          %v2472 = vshrl.u32 %v2471, 7
          %v2473 = vsub.s32 %v2470, %v2472
          %v2474 = vrot.slane %v2466, %v2473
          %v2476 = vunpack.c.l.s4 1934713408
          %v2477 = vunpack.c.0.s8 %v2476
          %v2478 = vlaneseq
          %v2479 = vshrl.u32 %v2478, 7
          %v2480 = vsub.s32 %v2477, %v2479
          %v2481 = vrot.slane %v2467, %v2480
          %v2482 = vcombine.low %v2458, %v2474
          %v2483 = vcombine.high %v2458, %v2474
          %v2484 = vcombine.low %v2465, %v2481
          %v2485 = vcombine.high %v2465, %v2481
          %2490 = vrot.lane.b32.xlu0 %v2482, 8
          %v2491 = vpop.permute.xlu0 %2490
          %2492 = vrot.lane.b32.xlu0 %v2483, 8
          %v2493 = vpop.permute.xlu0 %2492
          %2494 = vrot.lane.b32.xlu0 %v2484, 8
          %v2495 = vpop.permute.xlu0 %2494
          %2496 = vrot.lane.b32.xlu0 %v2485, 8
          %v2497 = vpop.permute.xlu0 %2496
          %vm2502 = vcmask 130112
          %2503 = vst.msk [vmem:[#allocation2] sm:$0xff] %vm2502, %v2491
          %2504 = vst.msk [vmem:[#allocation2 + $0x8] sm:$0xff] %vm2502, %v2493
          %2505 = vst.msk [vmem:[#allocation2 + $0x10] sm:$0xff] %vm2502, %v2495
          %2506 = vst.msk [vmem:[#allocation2 + $0x18] sm:$0xff] %vm2502, %v2497
          %2507 = vrot.lane.b32.xlu0 %v1689, 96
          %v2508 = vpop.permute.xlu0 %2507
          %2509 = vrot.lane.b32.xlu0 %v1694, 96
          %v2510 = vpop.permute.xlu0 %2509
          %2511 = vrot.lane.b32.xlu0 %v1697, 96
          %v2512 = vpop.permute.xlu0 %2511
          %2513 = vrot.lane.b32.xlu0 %v1700, 96
          %v2514 = vpop.permute.xlu0 %2513
          %v2519 = vcombine.low %v2508, %v2512
          %v2520 = vcombine.high %v2508, %v2512
          %v2522 = vunpack.c.l.s4 1983009808
          %v2523 = vunpack.c.0.s8 %v2522
          %v2524 = vlaneseq
          %v2525 = vshrl.u32 %v2524, 7
          %v2526 = vsub.s32 %v2523, %v2525
          %v2527 = vrot.slane %v2519, %v2526
          %v2529 = vunpack.c.l.s4 1983009808
          %v2530 = vunpack.c.0.s8 %v2529
          %v2531 = vlaneseq
          %v2532 = vshrl.u32 %v2531, 7
          %v2533 = vsub.s32 %v2530, %v2532
          %v2534 = vrot.slane %v2520, %v2533
          %v2535 = vcombine.low %v2510, %v2514
          %v2536 = vcombine.high %v2510, %v2514
          %v2538 = vunpack.c.l.s4 1983009808
          %v2539 = vunpack.c.0.s8 %v2538
          %v2540 = vlaneseq
          %v2541 = vshrl.u32 %v2540, 7
          %v2542 = vsub.s32 %v2539, %v2541
          %v2543 = vrot.slane %v2535, %v2542
          %v2545 = vunpack.c.l.s4 1983009808
          %v2546 = vunpack.c.0.s8 %v2545
          %v2547 = vlaneseq
          %v2548 = vshrl.u32 %v2547, 7
          %v2549 = vsub.s32 %v2546, %v2548
          %v2550 = vrot.slane %v2536, %v2549
          %v2551 = vcombine.low %v2527, %v2543
          %v2552 = vcombine.high %v2527, %v2543
          %v2554 = vunpack.c.l.s4 1934713408
          %v2555 = vunpack.c.0.s8 %v2554
          %v2556 = vlaneseq
          %v2557 = vshrl.u32 %v2556, 7
          %v2558 = vsub.s32 %v2555, %v2557
          %v2559 = vrot.slane %v2551, %v2558
          %v2561 = vunpack.c.l.s4 1934713408
          %v2562 = vunpack.c.0.s8 %v2561
          %v2563 = vlaneseq
          %v2564 = vshrl.u32 %v2563, 7
          %v2565 = vsub.s32 %v2562, %v2564
          %v2566 = vrot.slane %v2552, %v2565
          %v2567 = vcombine.low %v2534, %v2550
          %v2568 = vcombine.high %v2534, %v2550
          %v2570 = vunpack.c.l.s4 1934713408
          %v2571 = vunpack.c.0.s8 %v2570
          %v2572 = vlaneseq
          %v2573 = vshrl.u32 %v2572, 7
          %v2574 = vsub.s32 %v2571, %v2573
          %v2575 = vrot.slane %v2567, %v2574
          %v2577 = vunpack.c.l.s4 1934713408
          %v2578 = vunpack.c.0.s8 %v2577
          %v2579 = vlaneseq
          %v2580 = vshrl.u32 %v2579, 7
          %v2581 = vsub.s32 %v2578, %v2580
          %v2582 = vrot.slane %v2568, %v2581
          %v2583 = vcombine.high %v2559, 0.0
          %v2584 = vcombine.high %v2566, 0.0
          %v2585 = vcombine.high %v2575, 0.0
          %v2586 = vcombine.high %v2582, 0.0
          %v2587 = vcombine.low %v2559, %v2566
          %v2589 = vunpack.c.l.s4 1983009808
          %v2590 = vunpack.c.0.s8 %v2589
          %v2591 = vlaneseq
          %v2592 = vshrl.u32 %v2591, 7
          %v2593 = vsub.s32 %v2590, %v2592
          %v2594 = vrot.slane %v2587, %v2593
          %v2595 = vcombine.low %v2583, %v2584
          %v2597 = vunpack.c.l.s4 1983009808
          %v2598 = vunpack.c.0.s8 %v2597
          %v2599 = vlaneseq
          %v2600 = vshrl.u32 %v2599, 7
          %v2601 = vsub.s32 %v2598, %v2600
          %v2602 = vrot.slane %v2595, %v2601
          %v2603 = vcombine.low %v2575, %v2582
          %v2605 = vunpack.c.l.s4 1983009808
          %v2606 = vunpack.c.0.s8 %v2605
          %v2607 = vlaneseq
          %v2608 = vshrl.u32 %v2607, 7
          %v2609 = vsub.s32 %v2606, %v2608
          %v2610 = vrot.slane %v2603, %v2609
          %v2611 = vcombine.low %v2585, %v2586
          %v2613 = vunpack.c.l.s4 1983009808
          %v2614 = vunpack.c.0.s8 %v2613
          %v2615 = vlaneseq
          %v2616 = vshrl.u32 %v2615, 7
          %v2617 = vsub.s32 %v2614, %v2616
          %v2618 = vrot.slane %v2611, %v2617
          %v2619 = vcombine.low %v2594, %v2602
          %v2620 = vcombine.high %v2594, %v2602
          %v2622 = vunpack.c.l.s4 1934713408
          %v2623 = vunpack.c.0.s8 %v2622
          %v2624 = vlaneseq
          %v2625 = vshrl.u32 %v2624, 7
          %v2626 = vsub.s32 %v2623, %v2625
          %v2627 = vrot.slane %v2619, %v2626
          %v2629 = vunpack.c.l.s4 1934713408
          %v2630 = vunpack.c.0.s8 %v2629
          %v2631 = vlaneseq
          %v2632 = vshrl.u32 %v2631, 7
          %v2633 = vsub.s32 %v2630, %v2632
          %v2634 = vrot.slane %v2620, %v2633
          %v2635 = vcombine.low %v2610, %v2618
          %v2636 = vcombine.high %v2610, %v2618
          %v2638 = vunpack.c.l.s4 1934713408
          %v2639 = vunpack.c.0.s8 %v2638
          %v2640 = vlaneseq
          %v2641 = vshrl.u32 %v2640, 7
          %v2642 = vsub.s32 %v2639, %v2641
          %v2643 = vrot.slane %v2635, %v2642
          %v2645 = vunpack.c.l.s4 1934713408
          %v2646 = vunpack.c.0.s8 %v2645
          %v2647 = vlaneseq
          %v2648 = vshrl.u32 %v2647, 7
          %v2649 = vsub.s32 %v2646, %v2648
          %v2650 = vrot.slane %v2636, %v2649
          %v2651 = vcombine.low %v2627, %v2643
          %v2652 = vcombine.high %v2627, %v2643
          %v2653 = vcombine.low %v2634, %v2650
          %v2654 = vcombine.high %v2634, %v2650
          %2655 = vst.msk [vmem:[#allocation3 + $0x8] sm:$0xff] %vm1421, %v2651
          %2656 = vst.msk [vmem:[#allocation3 + $0x18] sm:$0xff] %vm1421, %v2652
          %2657 = vst.msk [vmem:[#allocation3 + $0x28] sm:$0xff] %vm1421, %v2653
          %2658 = vst.msk [vmem:[#allocation3 + $0x38] sm:$0xff] %vm1421, %v2654
        $region84: #{tpu_custom_call.1} parent=79 // pred_fallthru
          _
        %s2659 = smul.u32 %s34, 8
        %s2660 = scalar_lea.vmem %s506, %s2659
        %v2661 = vld [vmem:[%s2660] sm:$0xff]
        %v2662 = vld [vmem:[%s1] sm:$0x1]
        %v2663 = vld [vmem:[%s2] sm:$0x1]
        %vm2664 = vcmask 261120
        %v2665 = vsel %vm2664, %v2661, 0.0
        %2666 = vadd.xlane.f32.xlu0 %v2665
        %v2667 = vpop.xlane.xlu0 %2666
        %v2668 = vrcp.pop 32.0
        %v2669 = vmul.f32 %v2667, %v2668
        %v2670 = vsub.f32 %v2661, %v2669
        %v2671 = vmul.f32 %v2670, %v2670
        %v2672 = vsel %vm2664, %v2671, 0.0
        %2673 = vadd.xlane.f32.xlu0 %v2672
        %v2674 = vpop.xlane.xlu0 %2673
        %v2675 = vmul.f32 %v2674, %v2668
        %v2676 = vadd.f32 %v2675, 1e-05
        %v2677 = vrsqrt.pop %v2676
        %v2678 = vmul.f32 %v2670, %v2677
        %v2680 = vlaneseq
        %v2681 = vshrl.u32 %v2680, 7
        %v2682 = vsub.s32 0, %v2681
        %v2683 = vrot.slane %v2662, %v2682
        %v2685 = vmul.f32 %v2678, %v2683
        %v2687 = vlaneseq
        %v2688 = vshrl.u32 %v2687, 7
        %v2689 = vsub.s32 0, %v2688
        %v2690 = vrot.slane %v2663, %v2689
        %v2692 = vadd.f32 %v2685, %v2690
        %v2693 = vld [vmem:[%s3] sm:$0xff]
        %v2694 = vld [vmem:[%s3 + $0x8] sm:$0xff]
        %v2695 = vld [vmem:[%s3 + $0x10] sm:$0xff]
        %v2696 = vld [vmem:[%s3 + $0x18] sm:$0xff]
        %v2697 = vld [vmem:[%s4] sm:$0x1]
        %v2699 = vlaneseq
        %v2700 = vshrl.u32 %v2699, 7
        %v2701 = vsub.s32 0, %v2700
        %v2702 = vrot.slane %v2697, %v2701
        %v2705 = vsel %vm2664, %v2692, 0
        %2707 = vmatprep.subr.mxu0 0.0
        %2708 = vmatpush1.msra.mxu0 %v2693
        %2709 = vmatprep.subr.mxu0 0.0
        %2710 = vmatpush1.msra.mxu0 %v2694
        %2711 = vmatprep.subr.mxu0 0.0
        %2712 = vmatpush1.msra.mxu0 %v2695
        %2713 = vmatprep.subr.mxu0 0.0
        %2714 = vmatpush1.msra.mxu0 %v2696
        %2715 = vmatprep.subr.mxu0 0.0
        %2716 = vmatpush1.msra.mxu0 0.0
        %2717 = vmatprep.subr.mxu0 0.0
        %2718 = vmatpush1.msra.mxu0 0.0
        %2719 = vmatprep.subr.mxu0 0.0
        %2720 = vmatpush1.msra.mxu0 0.0
        %2721 = vmatprep.subr.mxu0 0.0
        %2722 = vmatpush1.msra.mxu0 0.0
        %2723 = vmatprep.subr.mxu0 0.0
        %2724 = vmatpush1.msra.mxu0 0.0
        %2725 = vmatprep.subr.mxu0 0.0
        %2726 = vmatpush1.msra.mxu0 0.0
        %2727 = vmatprep.subr.mxu0 0.0
        %2728 = vmatpush1.msra.mxu0 0.0
        %2729 = vmatprep.subr.mxu0 0.0
        %2730 = vmatpush1.msra.mxu0 0.0
        %2731 = vmatprep.subr.mxu0 0.0
        %2732 = vmatpush1.msra.mxu0 0.0
        %2733 = vmatprep.subr.mxu0 0.0
        %2734 = vmatpush1.msra.mxu0 0.0
        %2735 = vmatprep.subr.mxu0 0.0
        %2736 = vmatpush1.msra.mxu0 0.0
        %2737 = vmatprep.subr.mxu0 0.0
        %2738 = vmatpush1.msra.mxu0 0.0
        %2739 = vmatprep.subr.mxu0 0.0
        %2740 = vmatpush1.msra.mxu0 0.0
        %2741 = vmatprep.subr.mxu0 0.0
        %2742 = vmatpush1.msra.mxu0 0.0
        %2743 = vmatprep.subr.mxu0 0.0
        %2744 = vmatpush1.msra.mxu0 0.0
        %2745 = vmatprep.subr.mxu0 0.0
        %2746 = vmatpush1.msra.mxu0 0.0
        %2747 = vmatprep.subr.mxu0 0.0
        %2748 = vmatpush1.msra.mxu0 0.0
        %2749 = vmatprep.subr.mxu0 0.0
        %2750 = vmatpush1.msra.mxu0 0.0
        %2751 = vmatprep.subr.mxu0 0.0
        %2752 = vmatpush1.msra.mxu0 0.0
        %2753 = vmatprep.subr.mxu0 0.0
        %2754 = vmatpush1.msra.mxu0 0.0
        %2755 = vmatprep.subr.mxu0 0.0
        %2756 = vmatpush1.msra.mxu0 0.0
        %2757 = vmatprep.subr.mxu0 0.0
        %2758 = vmatpush1.msra.mxu0 0.0
        %2759 = vmatprep.subr.mxu0 0.0
        %2760 = vmatpush1.msra.mxu0 0.0
        %2761 = vmatprep.subr.mxu0 0.0
        %2762 = vmatpush1.msra.mxu0 0.0
        %2763 = vmatprep.subr.mxu0 0.0
        %2764 = vmatpush1.msra.mxu0 0.0
        %2765 = vmatprep.subr.mxu0 0.0
        %2766 = vmatpush1.msra.mxu0 0.0
        %2767 = vmatprep.subr.mxu0 0.0
        %2768 = vmatpush1.msra.mxu0 0.0
        %2769 = vmatprep.subr.mxu0 0.0
        %2770 = vmatpush1.msra.mxu0 0.0
        %2771 = vmatprep.mubr.f32.mxu0 0.0
        %2772 = vmatmul.mubr.f32.gmra.mrb[0].mxu0 %v2705
        %v2773 = vpop.f32.mrb[0].mxu0
        %v2774 = vadd.f32 %v2702, %v2773
        %v2775 = vpop.f32.mrb[0].mxu0
        %2776 = vdwg.mxu0
        %v2777 = vmul.f32 %v2774, 0.35355338
        %2779 = vrot.lane.b32.xlu0 %v2777, 120
        %v2780 = vpop.permute.xlu0 %2779
        %2782 = vrot.lane.b32.xlu0 %v2777, 112
        %v2783 = vpop.permute.xlu0 %2782
        %2785 = vrot.lane.b32.xlu0 %v2777, 104
        %v2786 = vpop.permute.xlu0 %2785
        %v2788 = vcombine.low %v2777, %v2783
        %v2789 = vcombine.high %v2777, %v2783
        %v2791 = vunpack.c.l.s4 1983009808
        %v2792 = vunpack.c.0.s8 %v2791
        %v2793 = vlaneseq
        %v2794 = vshrl.u32 %v2793, 7
        %v2795 = vsub.s32 %v2792, %v2794
        %v2796 = vrot.slane %v2788, %v2795
        %v2798 = vunpack.c.l.s4 1983009808
        %v2799 = vunpack.c.0.s8 %v2798
        %v2800 = vlaneseq
        %v2801 = vshrl.u32 %v2800, 7
        %v2802 = vsub.s32 %v2799, %v2801
        %v2803 = vrot.slane %v2789, %v2802
        %v2804 = vcombine.low %v2780, %v2786
        %v2805 = vcombine.high %v2780, %v2786
        %v2807 = vunpack.c.l.s4 1983009808
        %v2808 = vunpack.c.0.s8 %v2807
        %v2809 = vlaneseq
        %v2810 = vshrl.u32 %v2809, 7
        %v2811 = vsub.s32 %v2808, %v2810
        %v2812 = vrot.slane %v2804, %v2811
        %v2814 = vunpack.c.l.s4 1983009808
        %v2815 = vunpack.c.0.s8 %v2814
        %v2816 = vlaneseq
        %v2817 = vshrl.u32 %v2816, 7
        %v2818 = vsub.s32 %v2815, %v2817
        %v2819 = vrot.slane %v2805, %v2818
        %v2820 = vcombine.low %v2796, %v2812
        %v2821 = vcombine.high %v2796, %v2812
        %v2823 = vunpack.c.l.s4 1934713408
        %v2824 = vunpack.c.0.s8 %v2823
        %v2825 = vlaneseq
        %v2826 = vshrl.u32 %v2825, 7
        %v2827 = vsub.s32 %v2824, %v2826
        %v2828 = vrot.slane %v2820, %v2827
        %v2830 = vunpack.c.l.s4 1934713408
        %v2831 = vunpack.c.0.s8 %v2830
        %v2832 = vlaneseq
        %v2833 = vshrl.u32 %v2832, 7
        %v2834 = vsub.s32 %v2831, %v2833
        %v2835 = vrot.slane %v2821, %v2834
        %v2836 = vcombine.low %v2803, %v2819
        %v2837 = vcombine.high %v2803, %v2819
        %v2839 = vunpack.c.l.s4 1934713408
        %v2840 = vunpack.c.0.s8 %v2839
        %v2841 = vlaneseq
        %v2842 = vshrl.u32 %v2841, 7
        %v2843 = vsub.s32 %v2840, %v2842
        %v2844 = vrot.slane %v2836, %v2843
        %v2846 = vunpack.c.l.s4 1934713408
        %v2847 = vunpack.c.0.s8 %v2846
        %v2848 = vlaneseq
        %v2849 = vshrl.u32 %v2848, 7
        %v2850 = vsub.s32 %v2847, %v2849
        %v2851 = vrot.slane %v2837, %v2850
        %v2852 = vcombine.high %v2828, 0.0
        %v2853 = vcombine.high %v2835, 0.0
        %v2854 = vcombine.high %v2844, 0.0
        %v2855 = vcombine.high %v2851, 0.0
        %v2856 = vcombine.low %v2828, %v2835
        %v2858 = vunpack.c.l.s4 1983009808
        %v2859 = vunpack.c.0.s8 %v2858
        %v2860 = vlaneseq
        %v2861 = vshrl.u32 %v2860, 7
        %v2862 = vsub.s32 %v2859, %v2861
        %v2863 = vrot.slane %v2856, %v2862
        %v2864 = vcombine.low %v2852, %v2853
        %v2866 = vunpack.c.l.s4 1983009808
        %v2867 = vunpack.c.0.s8 %v2866
        %v2868 = vlaneseq
        %v2869 = vshrl.u32 %v2868, 7
        %v2870 = vsub.s32 %v2867, %v2869
        %v2871 = vrot.slane %v2864, %v2870
        %v2872 = vcombine.low %v2844, %v2851
        %v2874 = vunpack.c.l.s4 1983009808
        %v2875 = vunpack.c.0.s8 %v2874
        %v2876 = vlaneseq
        %v2877 = vshrl.u32 %v2876, 7
        %v2878 = vsub.s32 %v2875, %v2877
        %v2879 = vrot.slane %v2872, %v2878
        %v2880 = vcombine.low %v2854, %v2855
        %v2882 = vunpack.c.l.s4 1983009808
        %v2883 = vunpack.c.0.s8 %v2882
        %v2884 = vlaneseq
        %v2885 = vshrl.u32 %v2884, 7
        %v2886 = vsub.s32 %v2883, %v2885
        %v2887 = vrot.slane %v2880, %v2886
        %v2888 = vcombine.low %v2863, %v2871
        %v2889 = vcombine.high %v2863, %v2871
        %v2891 = vunpack.c.l.s4 1934713408
        %v2892 = vunpack.c.0.s8 %v2891
        %v2893 = vlaneseq
        %v2894 = vshrl.u32 %v2893, 7
        %v2895 = vsub.s32 %v2892, %v2894
        %v2896 = vrot.slane %v2888, %v2895
        %v2898 = vunpack.c.l.s4 1934713408
        %v2899 = vunpack.c.0.s8 %v2898
        %v2900 = vlaneseq
        %v2901 = vshrl.u32 %v2900, 7
        %v2902 = vsub.s32 %v2899, %v2901
        %v2903 = vrot.slane %v2889, %v2902
        %v2904 = vcombine.low %v2879, %v2887
        %v2905 = vcombine.high %v2879, %v2887
        %v2907 = vunpack.c.l.s4 1934713408
        %v2908 = vunpack.c.0.s8 %v2907
        %v2909 = vlaneseq
        %v2910 = vshrl.u32 %v2909, 7
        %v2911 = vsub.s32 %v2908, %v2910
        %v2912 = vrot.slane %v2904, %v2911
        %v2914 = vunpack.c.l.s4 1934713408
        %v2915 = vunpack.c.0.s8 %v2914
        %v2916 = vlaneseq
        %v2917 = vshrl.u32 %v2916, 7
        %v2918 = vsub.s32 %v2915, %v2917
        %v2919 = vrot.slane %v2905, %v2918
        %v2920 = vcombine.low %v2896, %v2912
        %v2921 = vcombine.high %v2896, %v2912
        %v2922 = vcombine.low %v2903, %v2919
        %v2923 = vcombine.high %v2903, %v2919
        %v2924 = vld [vmem:[#allocation2] sm:$0xff]
        %v2925 = vld [vmem:[#allocation2 + $0x8] sm:$0xff]
        %v2926 = vld [vmem:[#allocation2 + $0x10] sm:$0xff]
        %v2927 = vld [vmem:[#allocation2 + $0x18] sm:$0xff]
        %vm2928 = vcmask 64512
        %v2930 = vsel %vm2928, %v2920, 0
        %2932 = vmatprep.subr.mxu0 0.0
        %2933 = vmatpush1.msra.mxu0 %v2924
        %2934 = vmatprep.subr.mxu0 0.0
        %2935 = vmatpush1.msra.mxu0 0.0
        %2936 = vmatprep.subr.mxu0 0.0
        %2937 = vmatpush1.msra.mxu0 0.0
        %2938 = vmatprep.subr.mxu0 0.0
        %2939 = vmatpush1.msra.mxu0 0.0
        %2940 = vmatprep.subr.mxu0 0.0
        %2941 = vmatpush1.msra.mxu0 0.0
        %2942 = vmatprep.subr.mxu0 0.0
        %2943 = vmatpush1.msra.mxu0 0.0
        %2944 = vmatprep.subr.mxu0 0.0
        %2945 = vmatpush1.msra.mxu0 0.0
        %2946 = vmatprep.subr.mxu0 0.0
        %2947 = vmatpush1.msra.mxu0 0.0
        %2948 = vmatprep.subr.mxu0 0.0
        %2949 = vmatpush1.msra.mxu0 0.0
        %2950 = vmatprep.subr.mxu0 0.0
        %2951 = vmatpush1.msra.mxu0 0.0
        %2952 = vmatprep.subr.mxu0 0.0
        %2953 = vmatpush1.msra.mxu0 0.0
        %2954 = vmatprep.subr.mxu0 0.0
        %2955 = vmatpush1.msra.mxu0 0.0
        %2956 = vmatprep.subr.mxu0 0.0
        %2957 = vmatpush1.msra.mxu0 0.0
        %2958 = vmatprep.subr.mxu0 0.0
        %2959 = vmatpush1.msra.mxu0 0.0
        %2960 = vmatprep.subr.mxu0 0.0
        %2961 = vmatpush1.msra.mxu0 0.0
        %2962 = vmatprep.subr.mxu0 0.0
        %2963 = vmatpush1.msra.mxu0 0.0
        %2964 = vmatprep.subr.mxu0 0.0
        %2965 = vmatpush1.msra.mxu0 0.0
        %2966 = vmatprep.subr.mxu0 0.0
        %2967 = vmatpush1.msra.mxu0 0.0
        %2968 = vmatprep.subr.mxu0 0.0
        %2969 = vmatpush1.msra.mxu0 0.0
        %2970 = vmatprep.subr.mxu0 0.0
        %2971 = vmatpush1.msra.mxu0 0.0
        %2972 = vmatprep.subr.mxu0 0.0
        %2973 = vmatpush1.msra.mxu0 0.0
        %2974 = vmatprep.subr.mxu0 0.0
        %2975 = vmatpush1.msra.mxu0 0.0
        %2976 = vmatprep.subr.mxu0 0.0
        %2977 = vmatpush1.msra.mxu0 0.0
        %2978 = vmatprep.subr.mxu0 0.0
        %2979 = vmatpush1.msra.mxu0 0.0
        %2980 = vmatprep.subr.mxu0 0.0
        %2981 = vmatpush1.msra.mxu0 0.0
        %2982 = vmatprep.subr.mxu0 0.0
        %2983 = vmatpush1.msra.mxu0 0.0
        %2984 = vmatprep.subr.mxu0 0.0
        %2985 = vmatpush1.msra.mxu0 0.0
        %2986 = vmatprep.subr.mxu0 0.0
        %2987 = vmatpush1.msra.mxu0 0.0
        %2988 = vmatprep.subr.mxu0 0.0
        %2989 = vmatpush1.msra.mxu0 0.0
        %2990 = vmatprep.subr.mxu0 0.0
        %2991 = vmatpush1.msra.mxu0 0.0
        %2992 = vmatprep.subr.mxu0 0.0
        %2993 = vmatpush1.msra.mxu0 0.0
        %2994 = vmatprep.subr.mxu0 0.0
        %2995 = vmatpush1.msra.mxu0 0.0
        %2996 = vmatprep.mubr.f32.mxu0 0.0
        %2997 = vmatmul.mubr.f32.gmra.mrb[0].mxu0 %v2930
        %v2998 = vpop.f32.mrb[0].mxu0
        %v2999 = vadd.f32 0.0, %v2998
        %v3000 = vpop.f32.mrb[0].mxu0
        %3001 = vdwg.mxu0
        %v3003 = vsel %vm2928, %v2921, 0
        %3005 = vmatprep.subr.mxu0 0.0
        %3006 = vmatpush1.msra.mxu0 %v2925
        %3007 = vmatprep.subr.mxu0 0.0
        %3008 = vmatpush1.msra.mxu0 0.0
        %3009 = vmatprep.subr.mxu0 0.0
        %3010 = vmatpush1.msra.mxu0 0.0
        %3011 = vmatprep.subr.mxu0 0.0
        %3012 = vmatpush1.msra.mxu0 0.0
        %3013 = vmatprep.subr.mxu0 0.0
        %3014 = vmatpush1.msra.mxu0 0.0
        %3015 = vmatprep.subr.mxu0 0.0
        %3016 = vmatpush1.msra.mxu0 0.0
        %3017 = vmatprep.subr.mxu0 0.0
        %3018 = vmatpush1.msra.mxu0 0.0
        %3019 = vmatprep.subr.mxu0 0.0
        %3020 = vmatpush1.msra.mxu0 0.0
        %3021 = vmatprep.subr.mxu0 0.0
        %3022 = vmatpush1.msra.mxu0 0.0
        %3023 = vmatprep.subr.mxu0 0.0
        %3024 = vmatpush1.msra.mxu0 0.0
        %3025 = vmatprep.subr.mxu0 0.0
        %3026 = vmatpush1.msra.mxu0 0.0
        %3027 = vmatprep.subr.mxu0 0.0
        %3028 = vmatpush1.msra.mxu0 0.0
        %3029 = vmatprep.subr.mxu0 0.0
        %3030 = vmatpush1.msra.mxu0 0.0
        %3031 = vmatprep.subr.mxu0 0.0
        %3032 = vmatpush1.msra.mxu0 0.0
        %3033 = vmatprep.subr.mxu0 0.0
        %3034 = vmatpush1.msra.mxu0 0.0
        %3035 = vmatprep.subr.mxu0 0.0
        %3036 = vmatpush1.msra.mxu0 0.0
        %3037 = vmatprep.subr.mxu0 0.0
        %3038 = vmatpush1.msra.mxu0 0.0
        %3039 = vmatprep.subr.mxu0 0.0
        %3040 = vmatpush1.msra.mxu0 0.0
        %3041 = vmatprep.subr.mxu0 0.0
        %3042 = vmatpush1.msra.mxu0 0.0
        %3043 = vmatprep.subr.mxu0 0.0
        %3044 = vmatpush1.msra.mxu0 0.0
        %3045 = vmatprep.subr.mxu0 0.0
        %3046 = vmatpush1.msra.mxu0 0.0
        %3047 = vmatprep.subr.mxu0 0.0
        %3048 = vmatpush1.msra.mxu0 0.0
        %3049 = vmatprep.subr.mxu0 0.0
        %3050 = vmatpush1.msra.mxu0 0.0
        %3051 = vmatprep.subr.mxu0 0.0
        %3052 = vmatpush1.msra.mxu0 0.0
        %3053 = vmatprep.subr.mxu0 0.0
        %3054 = vmatpush1.msra.mxu0 0.0
        %3055 = vmatprep.subr.mxu0 0.0
        %3056 = vmatpush1.msra.mxu0 0.0
        %3057 = vmatprep.subr.mxu0 0.0
        %3058 = vmatpush1.msra.mxu0 0.0
        %3059 = vmatprep.subr.mxu0 0.0
        %3060 = vmatpush1.msra.mxu0 0.0
        %3061 = vmatprep.subr.mxu0 0.0
        %3062 = vmatpush1.msra.mxu0 0.0
        %3063 = vmatprep.subr.mxu0 0.0
        %3064 = vmatpush1.msra.mxu0 0.0
        %3065 = vmatprep.subr.mxu0 0.0
        %3066 = vmatpush1.msra.mxu0 0.0
        %3067 = vmatprep.subr.mxu0 0.0
        %3068 = vmatpush1.msra.mxu0 0.0
        %3069 = vmatprep.mubr.f32.mxu0 0.0
        %3070 = vmatmul.mubr.f32.gmra.mrb[0].mxu0 %v3003
        %v3071 = vpop.f32.mrb[0].mxu0
        %v3072 = vadd.f32 0.0, %v3071
        %v3073 = vpop.f32.mrb[0].mxu0
        %3074 = vdwg.mxu0
        %v3076 = vsel %vm2928, %v2922, 0
        %3078 = vmatprep.subr.mxu0 0.0
        %3079 = vmatpush1.msra.mxu0 %v2926
        %3080 = vmatprep.subr.mxu0 0.0
        %3081 = vmatpush1.msra.mxu0 0.0
        %3082 = vmatprep.subr.mxu0 0.0
        %3083 = vmatpush1.msra.mxu0 0.0
        %3084 = vmatprep.subr.mxu0 0.0
        %3085 = vmatpush1.msra.mxu0 0.0
        %3086 = vmatprep.subr.mxu0 0.0
        %3087 = vmatpush1.msra.mxu0 0.0
        %3088 = vmatprep.subr.mxu0 0.0
        %3089 = vmatpush1.msra.mxu0 0.0
        %3090 = vmatprep.subr.mxu0 0.0
        %3091 = vmatpush1.msra.mxu0 0.0
        %3092 = vmatprep.subr.mxu0 0.0
        %3093 = vmatpush1.msra.mxu0 0.0
        %3094 = vmatprep.subr.mxu0 0.0
        %3095 = vmatpush1.msra.mxu0 0.0
        %3096 = vmatprep.subr.mxu0 0.0
        %3097 = vmatpush1.msra.mxu0 0.0
        %3098 = vmatprep.subr.mxu0 0.0
        %3099 = vmatpush1.msra.mxu0 0.0
        %3100 = vmatprep.subr.mxu0 0.0
        %3101 = vmatpush1.msra.mxu0 0.0
        %3102 = vmatprep.subr.mxu0 0.0
        %3103 = vmatpush1.msra.mxu0 0.0
        %3104 = vmatprep.subr.mxu0 0.0
        %3105 = vmatpush1.msra.mxu0 0.0
        %3106 = vmatprep.subr.mxu0 0.0
        %3107 = vmatpush1.msra.mxu0 0.0
        %3108 = vmatprep.subr.mxu0 0.0
        %3109 = vmatpush1.msra.mxu0 0.0
        %3110 = vmatprep.subr.mxu0 0.0
        %3111 = vmatpush1.msra.mxu0 0.0
        %3112 = vmatprep.subr.mxu0 0.0
        %3113 = vmatpush1.msra.mxu0 0.0
        %3114 = vmatprep.subr.mxu0 0.0
        %3115 = vmatpush1.msra.mxu0 0.0
        %3116 = vmatprep.subr.mxu0 0.0
        %3117 = vmatpush1.msra.mxu0 0.0
        %3118 = vmatprep.subr.mxu0 0.0
        %3119 = vmatpush1.msra.mxu0 0.0
        %3120 = vmatprep.subr.mxu0 0.0
        %3121 = vmatpush1.msra.mxu0 0.0
        %3122 = vmatprep.subr.mxu0 0.0
        %3123 = vmatpush1.msra.mxu0 0.0
        %3124 = vmatprep.subr.mxu0 0.0
        %3125 = vmatpush1.msra.mxu0 0.0
        %3126 = vmatprep.subr.mxu0 0.0
        %3127 = vmatpush1.msra.mxu0 0.0
        %3128 = vmatprep.subr.mxu0 0.0
        %3129 = vmatpush1.msra.mxu0 0.0
        %3130 = vmatprep.subr.mxu0 0.0
        %3131 = vmatpush1.msra.mxu0 0.0
        %3132 = vmatprep.subr.mxu0 0.0
        %3133 = vmatpush1.msra.mxu0 0.0
        %3134 = vmatprep.subr.mxu0 0.0
        %3135 = vmatpush1.msra.mxu0 0.0
        %3136 = vmatprep.subr.mxu0 0.0
        %3137 = vmatpush1.msra.mxu0 0.0
        %3138 = vmatprep.subr.mxu0 0.0
        %3139 = vmatpush1.msra.mxu0 0.0
        %3140 = vmatprep.subr.mxu0 0.0
        %3141 = vmatpush1.msra.mxu0 0.0
        %3142 = vmatprep.mubr.f32.mxu0 0.0
        %3143 = vmatmul.mubr.f32.gmra.mrb[0].mxu0 %v3076
        %v3144 = vpop.f32.mrb[0].mxu0
        %v3145 = vadd.f32 0.0, %v3144
        %v3146 = vpop.f32.mrb[0].mxu0
        %3147 = vdwg.mxu0
        %v3149 = vsel %vm2928, %v2923, 0
        %3151 = vmatprep.subr.mxu0 0.0
        %3152 = vmatpush1.msra.mxu0 %v2927
        %3153 = vmatprep.subr.mxu0 0.0
        %3154 = vmatpush1.msra.mxu0 0.0
        %3155 = vmatprep.subr.mxu0 0.0
        %3156 = vmatpush1.msra.mxu0 0.0
        %3157 = vmatprep.subr.mxu0 0.0
        %3158 = vmatpush1.msra.mxu0 0.0
        %3159 = vmatprep.subr.mxu0 0.0
        %3160 = vmatpush1.msra.mxu0 0.0
        %3161 = vmatprep.subr.mxu0 0.0
        %3162 = vmatpush1.msra.mxu0 0.0
        %3163 = vmatprep.subr.mxu0 0.0
        %3164 = vmatpush1.msra.mxu0 0.0
        %3165 = vmatprep.subr.mxu0 0.0
        %3166 = vmatpush1.msra.mxu0 0.0
        %3167 = vmatprep.subr.mxu0 0.0
        %3168 = vmatpush1.msra.mxu0 0.0
        %3169 = vmatprep.subr.mxu0 0.0
        %3170 = vmatpush1.msra.mxu0 0.0
        %3171 = vmatprep.subr.mxu0 0.0
        %3172 = vmatpush1.msra.mxu0 0.0
        %3173 = vmatprep.subr.mxu0 0.0
        %3174 = vmatpush1.msra.mxu0 0.0
        %3175 = vmatprep.subr.mxu0 0.0
        %3176 = vmatpush1.msra.mxu0 0.0
        %3177 = vmatprep.subr.mxu0 0.0
        %3178 = vmatpush1.msra.mxu0 0.0
        %3179 = vmatprep.subr.mxu0 0.0
        %3180 = vmatpush1.msra.mxu0 0.0
        %3181 = vmatprep.subr.mxu0 0.0
        %3182 = vmatpush1.msra.mxu0 0.0
        %3183 = vmatprep.subr.mxu0 0.0
        %3184 = vmatpush1.msra.mxu0 0.0
        %3185 = vmatprep.subr.mxu0 0.0
        %3186 = vmatpush1.msra.mxu0 0.0
        %3187 = vmatprep.subr.mxu0 0.0
        %3188 = vmatpush1.msra.mxu0 0.0
        %3189 = vmatprep.subr.mxu0 0.0
        %3190 = vmatpush1.msra.mxu0 0.0
        %3191 = vmatprep.subr.mxu0 0.0
        %3192 = vmatpush1.msra.mxu0 0.0
        %3193 = vmatprep.subr.mxu0 0.0
        %3194 = vmatpush1.msra.mxu0 0.0
        %3195 = vmatprep.subr.mxu0 0.0
        %3196 = vmatpush1.msra.mxu0 0.0
        %3197 = vmatprep.subr.mxu0 0.0
        %3198 = vmatpush1.msra.mxu0 0.0
        %3199 = vmatprep.subr.mxu0 0.0
        %3200 = vmatpush1.msra.mxu0 0.0
        %3201 = vmatprep.subr.mxu0 0.0
        %3202 = vmatpush1.msra.mxu0 0.0
        %3203 = vmatprep.subr.mxu0 0.0
        %3204 = vmatpush1.msra.mxu0 0.0
        %3205 = vmatprep.subr.mxu0 0.0
        %3206 = vmatpush1.msra.mxu0 0.0
        %3207 = vmatprep.subr.mxu0 0.0
        %3208 = vmatpush1.msra.mxu0 0.0
        %3209 = vmatprep.subr.mxu0 0.0
        %3210 = vmatpush1.msra.mxu0 0.0
        %3211 = vmatprep.subr.mxu0 0.0
        %3212 = vmatpush1.msra.mxu0 0.0
        %3213 = vmatprep.subr.mxu0 0.0
        %3214 = vmatpush1.msra.mxu0 0.0
        %3215 = vmatprep.mubr.f32.mxu0 0.0
        %3216 = vmatmul.mubr.f32.gmra.mrb[0].mxu0 %v3149
        %v3217 = vpop.f32.mrb[0].mxu0
        %v3218 = vadd.f32 0.0, %v3217
        %v3219 = vpop.f32.mrb[0].mxu0
        %3220 = vdwg.mxu0
        %vm3221 = vcmask 130048
        %v3222 = vsel %vm3221, %v2999, -inf
        %3223 = vmax.xlane.f32.xlu0 %v3222
        %v3224 = vpop.xlane.xlu0 %3223
        %v3225 = vsel %vm3221, %v3072, -inf
        %3226 = vmax.xlane.f32.xlu0 %v3225
        %v3227 = vpop.xlane.xlu0 %3226
        %v3228 = vsel %vm3221, %v3145, -inf
        %3229 = vmax.xlane.f32.xlu0 %v3228
        %v3230 = vpop.xlane.xlu0 %3229
        %v3231 = vsel %vm3221, %v3218, -inf
        %3232 = vmax.xlane.f32.xlu0 %v3231
        %v3233 = vpop.xlane.xlu0 %3232
        %v3234 = vsub.f32 %v2999, %v3224
        %v3235 = vsub.f32 %v3072, %v3227
        %v3236 = vsub.f32 %v3145, %v3230
        %v3237 = vsub.f32 %v3218, %v3233
        %v3238 = vmul.f32 %v3234, 1.442695
        %v3239 = vpow.pop %v3238
        %v3240 = vmul.f32 %v3235, 1.442695
        %v3241 = vpow.pop %v3240
        %v3242 = vmul.f32 %v3236, 1.442695
        %v3243 = vpow.pop %v3242
        %v3244 = vmul.f32 %v3237, 1.442695
        %v3245 = vpow.pop %v3244
        %v3246 = vsel %vm3221, %v3239, 0.0
        %3247 = vadd.xlane.f32.xlu0 %v3246
        %v3248 = vpop.xlane.xlu0 %3247
        %v3249 = vsel %vm3221, %v3241, 0.0
        %3250 = vadd.xlane.f32.xlu0 %v3249
        %v3251 = vpop.xlane.xlu0 %3250
        %v3252 = vsel %vm3221, %v3243, 0.0
        %3253 = vadd.xlane.f32.xlu0 %v3252
        %v3254 = vpop.xlane.xlu0 %3253
        %v3255 = vsel %vm3221, %v3245, 0.0
        %3256 = vadd.xlane.f32.xlu0 %v3255
        %v3257 = vpop.xlane.xlu0 %3256
        %v3258 = vld [vmem:[#allocation3] sm:$0xff]
        %v3259 = vld [vmem:[#allocation3 + $0x8] sm:$0xff]
        %v3260 = vld [vmem:[#allocation3 + $0x10] sm:$0xff]
        %v3261 = vld [vmem:[#allocation3 + $0x18] sm:$0xff]
        %v3262 = vld [vmem:[#allocation3 + $0x20] sm:$0xff]
        %v3263 = vld [vmem:[#allocation3 + $0x28] sm:$0xff]
        %v3264 = vld [vmem:[#allocation3 + $0x30] sm:$0xff]
        %v3265 = vld [vmem:[#allocation3 + $0x38] sm:$0xff]
        %v3267 = vsel %vm3221, %v3239, 0
        %3269 = vmatprep.subr.mxu0 0.0
        %3270 = vmatpush1.msra.mxu0 %v3258
        %3271 = vmatprep.subr.mxu0 0.0
        %3272 = vmatpush1.msra.mxu0 %v3259
        %3273 = vmatprep.subr.mxu0 0.0
        %3274 = vmatpush1.msra.mxu0 0.0
        %3275 = vmatprep.subr.mxu0 0.0
        %3276 = vmatpush1.msra.mxu0 0.0
        %3277 = vmatprep.subr.mxu0 0.0
        %3278 = vmatpush1.msra.mxu0 0.0
        %3279 = vmatprep.subr.mxu0 0.0
        %3280 = vmatpush1.msra.mxu0 0.0
        %3281 = vmatprep.subr.mxu0 0.0
        %3282 = vmatpush1.msra.mxu0 0.0
        %3283 = vmatprep.subr.mxu0 0.0
        %3284 = vmatpush1.msra.mxu0 0.0
        %3285 = vmatprep.subr.mxu0 0.0
        %3286 = vmatpush1.msra.mxu0 0.0
        %3287 = vmatprep.subr.mxu0 0.0
        %3288 = vmatpush1.msra.mxu0 0.0
        %3289 = vmatprep.subr.mxu0 0.0
        %3290 = vmatpush1.msra.mxu0 0.0
        %3291 = vmatprep.subr.mxu0 0.0
        %3292 = vmatpush1.msra.mxu0 0.0
        %3293 = vmatprep.subr.mxu0 0.0
        %3294 = vmatpush1.msra.mxu0 0.0
        %3295 = vmatprep.subr.mxu0 0.0
        %3296 = vmatpush1.msra.mxu0 0.0
        %3297 = vmatprep.subr.mxu0 0.0
        %3298 = vmatpush1.msra.mxu0 0.0
        %3299 = vmatprep.subr.mxu0 0.0
        %3300 = vmatpush1.msra.mxu0 0.0
        %3301 = vmatprep.subr.mxu0 0.0
        %3302 = vmatpush1.msra.mxu0 0.0
        %3303 = vmatprep.subr.mxu0 0.0
        %3304 = vmatpush1.msra.mxu0 0.0
        %3305 = vmatprep.subr.mxu0 0.0
        %3306 = vmatpush1.msra.mxu0 0.0
        %3307 = vmatprep.subr.mxu0 0.0
        %3308 = vmatpush1.msra.mxu0 0.0
        %3309 = vmatprep.subr.mxu0 0.0
        %3310 = vmatpush1.msra.mxu0 0.0
        %3311 = vmatprep.subr.mxu0 0.0
        %3312 = vmatpush1.msra.mxu0 0.0
        %3313 = vmatprep.subr.mxu0 0.0
        %3314 = vmatpush1.msra.mxu0 0.0
        %3315 = vmatprep.subr.mxu0 0.0
        %3316 = vmatpush1.msra.mxu0 0.0
        %3317 = vmatprep.subr.mxu0 0.0
        %3318 = vmatpush1.msra.mxu0 0.0
        %3319 = vmatprep.subr.mxu0 0.0
        %3320 = vmatpush1.msra.mxu0 0.0
        %3321 = vmatprep.subr.mxu0 0.0
        %3322 = vmatpush1.msra.mxu0 0.0
        %3323 = vmatprep.subr.mxu0 0.0
        %3324 = vmatpush1.msra.mxu0 0.0
        %3325 = vmatprep.subr.mxu0 0.0
        %3326 = vmatpush1.msra.mxu0 0.0
        %3327 = vmatprep.subr.mxu0 0.0
        %3328 = vmatpush1.msra.mxu0 0.0
        %3329 = vmatprep.subr.mxu0 0.0
        %3330 = vmatpush1.msra.mxu0 0.0
        %3331 = vmatprep.subr.mxu0 0.0
        %3332 = vmatpush1.msra.mxu0 0.0
        %3333 = vmatprep.mubr.f32.mxu0 0.0
        %3334 = vmatmul.mubr.f32.gmra.mrb[0].mxu0 %v3267
        %v3335 = vpop.f32.mrb[0].mxu0
        %v3336 = vadd.f32 0.0, %v3335
        %v3337 = vpop.f32.mrb[0].mxu0
        %3338 = vdwg.mxu0
        %v3340 = vsel %vm3221, %v3241, 0
        %3342 = vmatprep.subr.mxu0 0.0
        %3343 = vmatpush1.msra.mxu0 %v3260
        %3344 = vmatprep.subr.mxu0 0.0
        %3345 = vmatpush1.msra.mxu0 %v3261
        %3346 = vmatprep.subr.mxu0 0.0
        %3347 = vmatpush1.msra.mxu0 0.0
        %3348 = vmatprep.subr.mxu0 0.0
        %3349 = vmatpush1.msra.mxu0 0.0
        %3350 = vmatprep.subr.mxu0 0.0
        %3351 = vmatpush1.msra.mxu0 0.0
        %3352 = vmatprep.subr.mxu0 0.0
        %3353 = vmatpush1.msra.mxu0 0.0
        %3354 = vmatprep.subr.mxu0 0.0
        %3355 = vmatpush1.msra.mxu0 0.0
        %3356 = vmatprep.subr.mxu0 0.0
        %3357 = vmatpush1.msra.mxu0 0.0
        %3358 = vmatprep.subr.mxu0 0.0
        %3359 = vmatpush1.msra.mxu0 0.0
        %3360 = vmatprep.subr.mxu0 0.0
        %3361 = vmatpush1.msra.mxu0 0.0
        %3362 = vmatprep.subr.mxu0 0.0
        %3363 = vmatpush1.msra.mxu0 0.0
        %3364 = vmatprep.subr.mxu0 0.0
        %3365 = vmatpush1.msra.mxu0 0.0
        %3366 = vmatprep.subr.mxu0 0.0
        %3367 = vmatpush1.msra.mxu0 0.0
        %3368 = vmatprep.subr.mxu0 0.0
        %3369 = vmatpush1.msra.mxu0 0.0
        %3370 = vmatprep.subr.mxu0 0.0
        %3371 = vmatpush1.msra.mxu0 0.0
        %3372 = vmatprep.subr.mxu0 0.0
        %3373 = vmatpush1.msra.mxu0 0.0
        %3374 = vmatprep.subr.mxu0 0.0
        %3375 = vmatpush1.msra.mxu0 0.0
        %3376 = vmatprep.subr.mxu0 0.0
        %3377 = vmatpush1.msra.mxu0 0.0
        %3378 = vmatprep.subr.mxu0 0.0
        %3379 = vmatpush1.msra.mxu0 0.0
        %3380 = vmatprep.subr.mxu0 0.0
        %3381 = vmatpush1.msra.mxu0 0.0
        %3382 = vmatprep.subr.mxu0 0.0
        %3383 = vmatpush1.msra.mxu0 0.0
        %3384 = vmatprep.subr.mxu0 0.0
        %3385 = vmatpush1.msra.mxu0 0.0
        %3386 = vmatprep.subr.mxu0 0.0
        %3387 = vmatpush1.msra.mxu0 0.0
        %3388 = vmatprep.subr.mxu0 0.0
        %3389 = vmatpush1.msra.mxu0 0.0
        %3390 = vmatprep.subr.mxu0 0.0
        %3391 = vmatpush1.msra.mxu0 0.0
        %3392 = vmatprep.subr.mxu0 0.0
        %3393 = vmatpush1.msra.mxu0 0.0
        %3394 = vmatprep.subr.mxu0 0.0
        %3395 = vmatpush1.msra.mxu0 0.0
        %3396 = vmatprep.subr.mxu0 0.0
        %3397 = vmatpush1.msra.mxu0 0.0
        %3398 = vmatprep.subr.mxu0 0.0
        %3399 = vmatpush1.msra.mxu0 0.0
        %3400 = vmatprep.subr.mxu0 0.0
        %3401 = vmatpush1.msra.mxu0 0.0
        %3402 = vmatprep.subr.mxu0 0.0
        %3403 = vmatpush1.msra.mxu0 0.0
        %3404 = vmatprep.subr.mxu0 0.0
        %3405 = vmatpush1.msra.mxu0 0.0
        %3406 = vmatprep.mubr.f32.mxu0 0.0
        %3407 = vmatmul.mubr.f32.gmra.mrb[0].mxu0 %v3340
        %v3408 = vpop.f32.mrb[0].mxu0
        %v3409 = vadd.f32 0.0, %v3408
        %v3410 = vpop.f32.mrb[0].mxu0
        %3411 = vdwg.mxu0
        %v3413 = vsel %vm3221, %v3243, 0
        %3415 = vmatprep.subr.mxu0 0.0
        %3416 = vmatpush1.msra.mxu0 %v3262
        %3417 = vmatprep.subr.mxu0 0.0
        %3418 = vmatpush1.msra.mxu0 %v3263
        %3419 = vmatprep.subr.mxu0 0.0
        %3420 = vmatpush1.msra.mxu0 0.0
        %3421 = vmatprep.subr.mxu0 0.0
        %3422 = vmatpush1.msra.mxu0 0.0
        %3423 = vmatprep.subr.mxu0 0.0
        %3424 = vmatpush1.msra.mxu0 0.0
        %3425 = vmatprep.subr.mxu0 0.0
        %3426 = vmatpush1.msra.mxu0 0.0
        %3427 = vmatprep.subr.mxu0 0.0
        %3428 = vmatpush1.msra.mxu0 0.0
        %3429 = vmatprep.subr.mxu0 0.0
        %3430 = vmatpush1.msra.mxu0 0.0
        %3431 = vmatprep.subr.mxu0 0.0
        %3432 = vmatpush1.msra.mxu0 0.0
        %3433 = vmatprep.subr.mxu0 0.0
        %3434 = vmatpush1.msra.mxu0 0.0
        %3435 = vmatprep.subr.mxu0 0.0
        %3436 = vmatpush1.msra.mxu0 0.0
        %3437 = vmatprep.subr.mxu0 0.0
        %3438 = vmatpush1.msra.mxu0 0.0
        %3439 = vmatprep.subr.mxu0 0.0
        %3440 = vmatpush1.msra.mxu0 0.0
        %3441 = vmatprep.subr.mxu0 0.0
        %3442 = vmatpush1.msra.mxu0 0.0
        %3443 = vmatprep.subr.mxu0 0.0
        %3444 = vmatpush1.msra.mxu0 0.0
        %3445 = vmatprep.subr.mxu0 0.0
        %3446 = vmatpush1.msra.mxu0 0.0
        %3447 = vmatprep.subr.mxu0 0.0
        %3448 = vmatpush1.msra.mxu0 0.0
        %3449 = vmatprep.subr.mxu0 0.0
        %3450 = vmatpush1.msra.mxu0 0.0
        %3451 = vmatprep.subr.mxu0 0.0
        %3452 = vmatpush1.msra.mxu0 0.0
        %3453 = vmatprep.subr.mxu0 0.0
        %3454 = vmatpush1.msra.mxu0 0.0
        %3455 = vmatprep.subr.mxu0 0.0
        %3456 = vmatpush1.msra.mxu0 0.0
        %3457 = vmatprep.subr.mxu0 0.0
        %3458 = vmatpush1.msra.mxu0 0.0
        %3459 = vmatprep.subr.mxu0 0.0
        %3460 = vmatpush1.msra.mxu0 0.0
        %3461 = vmatprep.subr.mxu0 0.0
        %3462 = vmatpush1.msra.mxu0 0.0
        %3463 = vmatprep.subr.mxu0 0.0
        %3464 = vmatpush1.msra.mxu0 0.0
        %3465 = vmatprep.subr.mxu0 0.0
        %3466 = vmatpush1.msra.mxu0 0.0
        %3467 = vmatprep.subr.mxu0 0.0
        %3468 = vmatpush1.msra.mxu0 0.0
        %3469 = vmatprep.subr.mxu0 0.0
        %3470 = vmatpush1.msra.mxu0 0.0
        %3471 = vmatprep.subr.mxu0 0.0
        %3472 = vmatpush1.msra.mxu0 0.0
        %3473 = vmatprep.subr.mxu0 0.0
        %3474 = vmatpush1.msra.mxu0 0.0
        %3475 = vmatprep.subr.mxu0 0.0
        %3476 = vmatpush1.msra.mxu0 0.0
        %3477 = vmatprep.subr.mxu0 0.0
        %3478 = vmatpush1.msra.mxu0 0.0
        %3479 = vmatprep.mubr.f32.mxu0 0.0
        %3480 = vmatmul.mubr.f32.gmra.mrb[0].mxu0 %v3413
        %v3481 = vpop.f32.mrb[0].mxu0
        %v3482 = vadd.f32 0.0, %v3481
        %v3483 = vpop.f32.mrb[0].mxu0
        %3484 = vdwg.mxu0
        %v3486 = vsel %vm3221, %v3245, 0
        %3488 = vmatprep.subr.mxu0 0.0
        %3489 = vmatpush1.msra.mxu0 %v3264
        %3490 = vmatprep.subr.mxu0 0.0
        %3491 = vmatpush1.msra.mxu0 %v3265
        %3492 = vmatprep.subr.mxu0 0.0
        %3493 = vmatpush1.msra.mxu0 0.0
        %3494 = vmatprep.subr.mxu0 0.0
        %3495 = vmatpush1.msra.mxu0 0.0
        %3496 = vmatprep.subr.mxu0 0.0
        %3497 = vmatpush1.msra.mxu0 0.0
        %3498 = vmatprep.subr.mxu0 0.0
        %3499 = vmatpush1.msra.mxu0 0.0
        %3500 = vmatprep.subr.mxu0 0.0
        %3501 = vmatpush1.msra.mxu0 0.0
        %3502 = vmatprep.subr.mxu0 0.0
        %3503 = vmatpush1.msra.mxu0 0.0
        %3504 = vmatprep.subr.mxu0 0.0
        %3505 = vmatpush1.msra.mxu0 0.0
        %3506 = vmatprep.subr.mxu0 0.0
        %3507 = vmatpush1.msra.mxu0 0.0
        %3508 = vmatprep.subr.mxu0 0.0
        %3509 = vmatpush1.msra.mxu0 0.0
        %3510 = vmatprep.subr.mxu0 0.0
        %3511 = vmatpush1.msra.mxu0 0.0
        %3512 = vmatprep.subr.mxu0 0.0
        %3513 = vmatpush1.msra.mxu0 0.0
        %3514 = vmatprep.subr.mxu0 0.0
        %3515 = vmatpush1.msra.mxu0 0.0
        %3516 = vmatprep.subr.mxu0 0.0
        %3517 = vmatpush1.msra.mxu0 0.0
        %3518 = vmatprep.subr.mxu0 0.0
        %3519 = vmatpush1.msra.mxu0 0.0
        %3520 = vmatprep.subr.mxu0 0.0
        %3521 = vmatpush1.msra.mxu0 0.0
        %3522 = vmatprep.subr.mxu0 0.0
        %3523 = vmatpush1.msra.mxu0 0.0
        %3524 = vmatprep.subr.mxu0 0.0
        %3525 = vmatpush1.msra.mxu0 0.0
        %3526 = vmatprep.subr.mxu0 0.0
        %3527 = vmatpush1.msra.mxu0 0.0
        %3528 = vmatprep.subr.mxu0 0.0
        %3529 = vmatpush1.msra.mxu0 0.0
        %3530 = vmatprep.subr.mxu0 0.0
        %3531 = vmatpush1.msra.mxu0 0.0
        %3532 = vmatprep.subr.mxu0 0.0
        %3533 = vmatpush1.msra.mxu0 0.0
        %3534 = vmatprep.subr.mxu0 0.0
        %3535 = vmatpush1.msra.mxu0 0.0
        %3536 = vmatprep.subr.mxu0 0.0
        %3537 = vmatpush1.msra.mxu0 0.0
        %3538 = vmatprep.subr.mxu0 0.0
        %3539 = vmatpush1.msra.mxu0 0.0
        %3540 = vmatprep.subr.mxu0 0.0
        %3541 = vmatpush1.msra.mxu0 0.0
        %3542 = vmatprep.subr.mxu0 0.0
        %3543 = vmatpush1.msra.mxu0 0.0
        %3544 = vmatprep.subr.mxu0 0.0
        %3545 = vmatpush1.msra.mxu0 0.0
        %3546 = vmatprep.subr.mxu0 0.0
        %3547 = vmatpush1.msra.mxu0 0.0
        %3548 = vmatprep.subr.mxu0 0.0
        %3549 = vmatpush1.msra.mxu0 0.0
        %3550 = vmatprep.subr.mxu0 0.0
        %3551 = vmatpush1.msra.mxu0 0.0
        %3552 = vmatprep.mubr.f32.mxu0 0.0
        %3553 = vmatmul.mubr.f32.gmra.mrb[0].mxu0 %v3486
        %v3554 = vpop.f32.mrb[0].mxu0
        %v3555 = vadd.f32 0.0, %v3554
        %v3556 = vpop.f32.mrb[0].mxu0
        %3557 = vdwg.mxu0
        %v3558 = vrcp.pop %v3248
        %v3559 = vrcp.pop %v3251
        %v3560 = vrcp.pop %v3254
        %v3561 = vrcp.pop %v3257
        %v3562 = vmul.f32 %v3336, %v3558
        %v3563 = vmul.f32 %v3409, %v3559
        %v3564 = vmul.f32 %v3482, %v3560
        %v3565 = vmul.f32 %v3555, %v3561
        %v3566 = vcombine.low %v3562, %v3564
        %v3567 = vcombine.high %v3562, %v3564
        %v3569 = vunpack.c.l.s4 1983009808
        %v3570 = vunpack.c.0.s8 %v3569
        %v3571 = vlaneseq
        %v3572 = vshrl.u32 %v3571, 7
        %v3573 = vsub.s32 %v3570, %v3572
        %v3574 = vrot.slane %v3566, %v3573
        %v3576 = vunpack.c.l.s4 1983009808
        %v3577 = vunpack.c.0.s8 %v3576
        %v3578 = vlaneseq
        %v3579 = vshrl.u32 %v3578, 7
        %v3580 = vsub.s32 %v3577, %v3579
        %v3581 = vrot.slane %v3567, %v3580
        %v3582 = vcombine.low %v3563, %v3565
        %v3583 = vcombine.high %v3563, %v3565
        %v3585 = vunpack.c.l.s4 1983009808
        %v3586 = vunpack.c.0.s8 %v3585
        %v3587 = vlaneseq
        %v3588 = vshrl.u32 %v3587, 7
        %v3589 = vsub.s32 %v3586, %v3588
        %v3590 = vrot.slane %v3582, %v3589
        %v3592 = vunpack.c.l.s4 1983009808
        %v3593 = vunpack.c.0.s8 %v3592
        %v3594 = vlaneseq
        %v3595 = vshrl.u32 %v3594, 7
        %v3596 = vsub.s32 %v3593, %v3595
        %v3597 = vrot.slane %v3583, %v3596
        %v3598 = vcombine.low %v3574, %v3590
        %v3599 = vcombine.high %v3574, %v3590
        %v3601 = vunpack.c.l.s4 1934713408
        %v3602 = vunpack.c.0.s8 %v3601
        %v3603 = vlaneseq
        %v3604 = vshrl.u32 %v3603, 7
        %v3605 = vsub.s32 %v3602, %v3604
        %v3606 = vrot.slane %v3598, %v3605
        %v3608 = vunpack.c.l.s4 1934713408
        %v3609 = vunpack.c.0.s8 %v3608
        %v3610 = vlaneseq
        %v3611 = vshrl.u32 %v3610, 7
        %v3612 = vsub.s32 %v3609, %v3611
        %v3613 = vrot.slane %v3599, %v3612
        %v3614 = vcombine.low %v3581, %v3597
        %v3615 = vcombine.high %v3581, %v3597
        %v3617 = vunpack.c.l.s4 1934713408
        %v3618 = vunpack.c.0.s8 %v3617
        %v3619 = vlaneseq
        %v3620 = vshrl.u32 %v3619, 7
        %v3621 = vsub.s32 %v3618, %v3620
        %v3622 = vrot.slane %v3614, %v3621
        %v3624 = vunpack.c.l.s4 1934713408
        %v3625 = vunpack.c.0.s8 %v3624
        %v3626 = vlaneseq
        %v3627 = vshrl.u32 %v3626, 7
        %v3628 = vsub.s32 %v3625, %v3627
        %v3629 = vrot.slane %v3615, %v3628
        %v3630 = vcombine.high %v3606, 0.0
        %v3631 = vcombine.high %v3613, 0.0
        %v3632 = vcombine.high %v3622, 0.0
        %v3633 = vcombine.high %v3629, 0.0
        %v3634 = vcombine.low %v3606, %v3613
        %v3636 = vunpack.c.l.s4 1983009808
        %v3637 = vunpack.c.0.s8 %v3636
        %v3638 = vlaneseq
        %v3639 = vshrl.u32 %v3638, 7
        %v3640 = vsub.s32 %v3637, %v3639
        %v3641 = vrot.slane %v3634, %v3640
        %v3642 = vcombine.low %v3630, %v3631
        %v3644 = vunpack.c.l.s4 1983009808
        %v3645 = vunpack.c.0.s8 %v3644
        %v3646 = vlaneseq
        %v3647 = vshrl.u32 %v3646, 7
        %v3648 = vsub.s32 %v3645, %v3647
        %v3649 = vrot.slane %v3642, %v3648
        %v3650 = vcombine.low %v3622, %v3629
        %v3652 = vunpack.c.l.s4 1983009808
        %v3653 = vunpack.c.0.s8 %v3652
        %v3654 = vlaneseq
        %v3655 = vshrl.u32 %v3654, 7
        %v3656 = vsub.s32 %v3653, %v3655
        %v3657 = vrot.slane %v3650, %v3656
        %v3658 = vcombine.low %v3632, %v3633
        %v3660 = vunpack.c.l.s4 1983009808
        %v3661 = vunpack.c.0.s8 %v3660
        %v3662 = vlaneseq
        %v3663 = vshrl.u32 %v3662, 7
        %v3664 = vsub.s32 %v3661, %v3663
        %v3665 = vrot.slane %v3658, %v3664
        %v3666 = vcombine.low %v3641, %v3649
        %v3667 = vcombine.high %v3641, %v3649
        %v3669 = vunpack.c.l.s4 1934713408
        %v3670 = vunpack.c.0.s8 %v3669
        %v3671 = vlaneseq
        %v3672 = vshrl.u32 %v3671, 7
        %v3673 = vsub.s32 %v3670, %v3672
        %v3674 = vrot.slane %v3666, %v3673
        %v3676 = vunpack.c.l.s4 1934713408
        %v3677 = vunpack.c.0.s8 %v3676
        %v3678 = vlaneseq
        %v3679 = vshrl.u32 %v3678, 7
        %v3680 = vsub.s32 %v3677, %v3679
        %v3681 = vrot.slane %v3667, %v3680
        %v3682 = vcombine.low %v3657, %v3665
        %v3683 = vcombine.high %v3657, %v3665
        %v3685 = vunpack.c.l.s4 1934713408
        %v3686 = vunpack.c.0.s8 %v3685
        %v3687 = vlaneseq
        %v3688 = vshrl.u32 %v3687, 7
        %v3689 = vsub.s32 %v3686, %v3688
        %v3690 = vrot.slane %v3682, %v3689
        %v3692 = vunpack.c.l.s4 1934713408
        %v3693 = vunpack.c.0.s8 %v3692
        %v3694 = vlaneseq
        %v3695 = vshrl.u32 %v3694, 7
        %v3696 = vsub.s32 %v3693, %v3695
        %v3697 = vrot.slane %v3683, %v3696
        %v3698 = vcombine.low %v3674, %v3690
        %v3699 = vcombine.high %v3674, %v3690
        %v3700 = vcombine.low %v3681, %v3697
        %v3701 = vcombine.high %v3681, %v3697
        %3703 = vrot.lane.b32.xlu0 %v3699, 8
        %v3704 = vpop.permute.xlu0 %3703
        %3707 = vrot.lane.b32.xlu0 %v3700, 16
        %v3708 = vpop.permute.xlu0 %3707
        %3711 = vrot.lane.b32.xlu0 %v3701, 24
        %v3712 = vpop.permute.xlu0 %3711
        %v3714 = vsel %vm2928, %v3698, %v3704
        %v3715 = vsel %vm3221, %v3714, %v3708
        %vm3716 = vcmask 195584
        %v3717 = vsel %vm3716, %v3715, %v3712
        %v3718 = vld [vmem:[%s7] sm:$0xff]
        %v3719 = vld [vmem:[%s7 + $0x8] sm:$0xff]
        %v3720 = vld [vmem:[%s7 + $0x10] sm:$0xff]
        %v3721 = vld [vmem:[%s7 + $0x18] sm:$0xff]
        %v3722 = vld [vmem:[%s8] sm:$0x1]
        %v3724 = vlaneseq
        %v3725 = vshrl.u32 %v3724, 7
        %v3726 = vsub.s32 0, %v3725
        %v3727 = vrot.slane %v3722, %v3726
        %v3730 = vsel %vm2664, %v3717, 0
        %3732 = vmatprep.subr.mxu0 0.0
        %3733 = vmatpush1.msra.mxu0 %v3718
        %3734 = vmatprep.subr.mxu0 0.0
        %3735 = vmatpush1.msra.mxu0 %v3719
        %3736 = vmatprep.subr.mxu0 0.0
        %3737 = vmatpush1.msra.mxu0 %v3720
        %3738 = vmatprep.subr.mxu0 0.0
        %3739 = vmatpush1.msra.mxu0 %v3721
        %3740 = vmatprep.subr.mxu0 0.0
        %3741 = vmatpush1.msra.mxu0 0.0
        %3742 = vmatprep.subr.mxu0 0.0
        %3743 = vmatpush1.msra.mxu0 0.0
        %3744 = vmatprep.subr.mxu0 0.0
        %3745 = vmatpush1.msra.mxu0 0.0
        %3746 = vmatprep.subr.mxu0 0.0
        %3747 = vmatpush1.msra.mxu0 0.0
        %3748 = vmatprep.subr.mxu0 0.0
        %3749 = vmatpush1.msra.mxu0 0.0
        %3750 = vmatprep.subr.mxu0 0.0
        %3751 = vmatpush1.msra.mxu0 0.0
        %3752 = vmatprep.subr.mxu0 0.0
        %3753 = vmatpush1.msra.mxu0 0.0
        %3754 = vmatprep.subr.mxu0 0.0
        %3755 = vmatpush1.msra.mxu0 0.0
        %3756 = vmatprep.subr.mxu0 0.0
        %3757 = vmatpush1.msra.mxu0 0.0
        %3758 = vmatprep.subr.mxu0 0.0
        %3759 = vmatpush1.msra.mxu0 0.0
        %3760 = vmatprep.subr.mxu0 0.0
        %3761 = vmatpush1.msra.mxu0 0.0
        %3762 = vmatprep.subr.mxu0 0.0
        %3763 = vmatpush1.msra.mxu0 0.0
        %3764 = vmatprep.subr.mxu0 0.0
        %3765 = vmatpush1.msra.mxu0 0.0
        %3766 = vmatprep.subr.mxu0 0.0
        %3767 = vmatpush1.msra.mxu0 0.0
        %3768 = vmatprep.subr.mxu0 0.0
        %3769 = vmatpush1.msra.mxu0 0.0
        %3770 = vmatprep.subr.mxu0 0.0
        %3771 = vmatpush1.msra.mxu0 0.0
        %3772 = vmatprep.subr.mxu0 0.0
        %3773 = vmatpush1.msra.mxu0 0.0
        %3774 = vmatprep.subr.mxu0 0.0
        %3775 = vmatpush1.msra.mxu0 0.0
        %3776 = vmatprep.subr.mxu0 0.0
        %3777 = vmatpush1.msra.mxu0 0.0
        %3778 = vmatprep.subr.mxu0 0.0
        %3779 = vmatpush1.msra.mxu0 0.0
        %3780 = vmatprep.subr.mxu0 0.0
        %3781 = vmatpush1.msra.mxu0 0.0
        %3782 = vmatprep.subr.mxu0 0.0
        %3783 = vmatpush1.msra.mxu0 0.0
        %3784 = vmatprep.subr.mxu0 0.0
        %3785 = vmatpush1.msra.mxu0 0.0
        %3786 = vmatprep.subr.mxu0 0.0
        %3787 = vmatpush1.msra.mxu0 0.0
        %3788 = vmatprep.subr.mxu0 0.0
        %3789 = vmatpush1.msra.mxu0 0.0
        %3790 = vmatprep.subr.mxu0 0.0
        %3791 = vmatpush1.msra.mxu0 0.0
        %3792 = vmatprep.subr.mxu0 0.0
        %3793 = vmatpush1.msra.mxu0 0.0
        %3794 = vmatprep.subr.mxu0 0.0
        %3795 = vmatpush1.msra.mxu0 0.0
        %3796 = vmatprep.mubr.f32.mxu0 0.0
        %3797 = vmatmul.mubr.f32.gmra.mrb[0].mxu0 %v3730
        %v3798 = vpop.f32.mrb[0].mxu0
        %v3799 = vadd.f32 %v3727, %v3798
        %v3800 = vpop.f32.mrb[0].mxu0
        %3801 = vdwg.mxu0
        %v3802 = vadd.f32 %v2661, %v3799
        %v3803 = vld [vmem:[%s9] sm:$0x1]
        %v3804 = vld [vmem:[%s10] sm:$0x1]
        %v3805 = vsel %vm2664, %v3802, 0.0
        %3806 = vadd.xlane.f32.xlu0 %v3805
        %v3807 = vpop.xlane.xlu0 %3806
        %v3808 = vmul.f32 %v3807, %v2668
        %v3809 = vsub.f32 %v3802, %v3808
        %v3810 = vmul.f32 %v3809, %v3809
        %v3811 = vsel %vm2664, %v3810, 0.0
        %3812 = vadd.xlane.f32.xlu0 %v3811
        %v3813 = vpop.xlane.xlu0 %3812
        %v3814 = vmul.f32 %v3813, %v2668
        %v3815 = vadd.f32 %v3814, 1e-05
        %v3816 = vrsqrt.pop %v3815
        %v3817 = vmul.f32 %v3809, %v3816
        %v3819 = vlaneseq
        %v3820 = vshrl.u32 %v3819, 7
        %v3821 = vsub.s32 0, %v3820
        %v3822 = vrot.slane %v3803, %v3821
        %v3824 = vmul.f32 %v3817, %v3822
        %v3826 = vlaneseq
        %v3827 = vshrl.u32 %v3826, 7
        %v3828 = vsub.s32 0, %v3827
        %v3829 = vrot.slane %v3804, %v3828
        %v3831 = vadd.f32 %v3824, %v3829
        %v3832 = vld [vmem:[%s11] sm:$0xff]
        %v3833 = vld [vmem:[%s11 + $0x8] sm:$0xff]
        %v3834 = vld [vmem:[%s11 + $0x10] sm:$0xff]
        %v3835 = vld [vmem:[%s11 + $0x18] sm:$0xff]
        %v3836 = vld [vmem:[%s12] sm:$0x1]
        %v3838 = vlaneseq
        %v3839 = vshrl.u32 %v3838, 7
        %v3840 = vsub.s32 0, %v3839
        %v3841 = vrot.slane %v3836, %v3840
        %v3844 = vsel %vm2664, %v3831, 0
        %3846 = vmatprep.subr.mxu0 0.0
        %3847 = vmatpush1.msra.mxu0 %v3832
        %3848 = vmatprep.subr.mxu0 0.0
        %3849 = vmatpush1.msra.mxu0 %v3833
        %3850 = vmatprep.subr.mxu0 0.0
        %3851 = vmatpush1.msra.mxu0 %v3834
        %3852 = vmatprep.subr.mxu0 0.0
        %3853 = vmatpush1.msra.mxu0 %v3835
        %3854 = vmatprep.subr.mxu0 0.0
        %3855 = vmatpush1.msra.mxu0 0.0
        %3856 = vmatprep.subr.mxu0 0.0
        %3857 = vmatpush1.msra.mxu0 0.0
        %3858 = vmatprep.subr.mxu0 0.0
        %3859 = vmatpush1.msra.mxu0 0.0
        %3860 = vmatprep.subr.mxu0 0.0
        %3861 = vmatpush1.msra.mxu0 0.0
        %3862 = vmatprep.subr.mxu0 0.0
        %3863 = vmatpush1.msra.mxu0 0.0
        %3864 = vmatprep.subr.mxu0 0.0
        %3865 = vmatpush1.msra.mxu0 0.0
        %3866 = vmatprep.subr.mxu0 0.0
        %3867 = vmatpush1.msra.mxu0 0.0
        %3868 = vmatprep.subr.mxu0 0.0
        %3869 = vmatpush1.msra.mxu0 0.0
        %3870 = vmatprep.subr.mxu0 0.0
        %3871 = vmatpush1.msra.mxu0 0.0
        %3872 = vmatprep.subr.mxu0 0.0
        %3873 = vmatpush1.msra.mxu0 0.0
        %3874 = vmatprep.subr.mxu0 0.0
        %3875 = vmatpush1.msra.mxu0 0.0
        %3876 = vmatprep.subr.mxu0 0.0
        %3877 = vmatpush1.msra.mxu0 0.0
        %3878 = vmatprep.subr.mxu0 0.0
        %3879 = vmatpush1.msra.mxu0 0.0
        %3880 = vmatprep.subr.mxu0 0.0
        %3881 = vmatpush1.msra.mxu0 0.0
        %3882 = vmatprep.subr.mxu0 0.0
        %3883 = vmatpush1.msra.mxu0 0.0
        %3884 = vmatprep.subr.mxu0 0.0
        %3885 = vmatpush1.msra.mxu0 0.0
        %3886 = vmatprep.subr.mxu0 0.0
        %3887 = vmatpush1.msra.mxu0 0.0
        %3888 = vmatprep.subr.mxu0 0.0
        %3889 = vmatpush1.msra.mxu0 0.0
        %3890 = vmatprep.subr.mxu0 0.0
        %3891 = vmatpush1.msra.mxu0 0.0
        %3892 = vmatprep.subr.mxu0 0.0
        %3893 = vmatpush1.msra.mxu0 0.0
        %3894 = vmatprep.subr.mxu0 0.0
        %3895 = vmatpush1.msra.mxu0 0.0
        %3896 = vmatprep.subr.mxu0 0.0
        %3897 = vmatpush1.msra.mxu0 0.0
        %3898 = vmatprep.subr.mxu0 0.0
        %3899 = vmatpush1.msra.mxu0 0.0
        %3900 = vmatprep.subr.mxu0 0.0
        %3901 = vmatpush1.msra.mxu0 0.0
        %3902 = vmatprep.subr.mxu0 0.0
        %3903 = vmatpush1.msra.mxu0 0.0
        %3904 = vmatprep.subr.mxu0 0.0
        %3905 = vmatpush1.msra.mxu0 0.0
        %3906 = vmatprep.subr.mxu0 0.0
        %3907 = vmatpush1.msra.mxu0 0.0
        %3908 = vmatprep.subr.mxu0 0.0
        %3909 = vmatpush1.msra.mxu0 0.0
        %3910 = vmatprep.mubr.f32.mxu0 0.0
        %3911 = vmatmul.mubr.f32.gmra.mrb[0].mxu0 %v3844
        %v3912 = vpop.f32.mrb[0].mxu0
        %v3913 = vadd.f32 %v3841, %v3912
        %v3914 = vpop.f32.mrb[0].mxu0
        %3915 = vdwg.mxu0
        %v3916 = vmul.f32 %v3913, 0.5
        %v3917 = vmul.f32 %v3913, 0.70710677
        %vm3918 = vcmp.ge.f32.partialorder %v3917, 0.0
        %v3919 = vsel %vm3918, 1.0, -1.0
        %v3920 = vand.u32 2147483647, %v3917
        %v3921 = vmul.f32 %v3920, 0.3275911
        %v3922 = vadd.f32 %v3921, 1.0
        %v3923 = vrcp.pop %v3922
        %v3924 = vmul.f32 1.0, %v3923
        %v3925 = vmul.f32 %v3924, 1.0614054
        %v3926 = vadd.f32 %v3925, -1.4531521
        %v3927 = vmul.f32 %v3926, %v3924
        %v3928 = vadd.f32 %v3927, 1.4214138
        %v3929 = vmul.f32 %v3928, %v3924
        %v3930 = vadd.f32 %v3929, -0.28449672
        %v3931 = vmul.f32 %v3930, %v3924
        %v3932 = vadd.f32 %v3931, 0.2548296
        %v3933 = vmul.f32 %v3932, %v3924
        %v3934 = vsub.f32 0.0, %v3920
        %v3935 = vmul.f32 %v3934, %v3920
        %v3936 = vmul.f32 %v3935, 1.442695
        %v3937 = vpow.pop %v3936
        %v3938 = vmul.f32 %v3933, %v3937
        %v3939 = vsub.f32 1.0, %v3938
        %v3940 = vmul.f32 %v3919, %v3939
        %v3941 = vadd.f32 %v3940, 1.0
        %v3942 = vmul.f32 %v3916, %v3941
        %v3943 = vld [vmem:[%s13] sm:$0xff]
        %v3944 = vld [vmem:[%s13 + $0x8] sm:$0xff]
        %v3945 = vld [vmem:[%s13 + $0x10] sm:$0xff]
        %v3946 = vld [vmem:[%s13 + $0x18] sm:$0xff]
        %v3947 = vld [vmem:[%s13 + $0x20] sm:$0xff]
        %v3948 = vld [vmem:[%s13 + $0x28] sm:$0xff]
        %v3949 = vld [vmem:[%s13 + $0x30] sm:$0xff]
        %v3950 = vld [vmem:[%s13 + $0x38] sm:$0xff]
        %v3951 = vld [vmem:[%s13 + $0x40] sm:$0xff]
        %v3952 = vld [vmem:[%s13 + $0x48] sm:$0xff]
        %v3953 = vld [vmem:[%s13 + $0x50] sm:$0xff]
        %v3954 = vld [vmem:[%s13 + $0x58] sm:$0xff]
        %v3955 = vld [vmem:[%s13 + $0x60] sm:$0xff]
        %v3956 = vld [vmem:[%s13 + $0x68] sm:$0xff]
        %v3957 = vld [vmem:[%s13 + $0x70] sm:$0xff]
        %v3958 = vld [vmem:[%s13 + $0x78] sm:$0xff]
        %v3959 = vld [vmem:[%s14] sm:$0x1]
        %v3961 = vlaneseq
        %v3962 = vshrl.u32 %v3961, 7
        %v3963 = vsub.s32 0, %v3962
        %v3964 = vrot.slane %v3959, %v3963
        %3966 = vmatprep.subr.mxu0 0.0
        %3967 = vmatpush1.msra.mxu0 %v3943
        %3968 = vmatprep.subr.mxu0 0.0
        %3969 = vmatpush1.msra.mxu0 %v3944
        %3970 = vmatprep.subr.mxu0 0.0
        %3971 = vmatpush1.msra.mxu0 %v3945
        %3972 = vmatprep.subr.mxu0 0.0
        %3973 = vmatpush1.msra.mxu0 %v3946
        %3974 = vmatprep.subr.mxu0 0.0
        %3975 = vmatpush1.msra.mxu0 %v3947
        %3976 = vmatprep.subr.mxu0 0.0
        %3977 = vmatpush1.msra.mxu0 %v3948
        %3978 = vmatprep.subr.mxu0 0.0
        %3979 = vmatpush1.msra.mxu0 %v3949
        %3980 = vmatprep.subr.mxu0 0.0
        %3981 = vmatpush1.msra.mxu0 %v3950
        %3982 = vmatprep.subr.mxu0 0.0
        %3983 = vmatpush1.msra.mxu0 %v3951
        %3984 = vmatprep.subr.mxu0 0.0
        %3985 = vmatpush1.msra.mxu0 %v3952
        %3986 = vmatprep.subr.mxu0 0.0
        %3987 = vmatpush1.msra.mxu0 %v3953
        %3988 = vmatprep.subr.mxu0 0.0
        %3989 = vmatpush1.msra.mxu0 %v3954
        %3990 = vmatprep.subr.mxu0 0.0
        %3991 = vmatpush1.msra.mxu0 %v3955
        %3992 = vmatprep.subr.mxu0 0.0
        %3993 = vmatpush1.msra.mxu0 %v3956
        %3994 = vmatprep.subr.mxu0 0.0
        %3995 = vmatpush1.msra.mxu0 %v3957
        %3996 = vmatprep.subr.mxu0 0.0
        %3997 = vmatpush1.msra.mxu0 %v3958
        %3998 = vmatprep.subr.mxu0 0.0
        %3999 = vmatpush1.msra.mxu0 0.0
        %4000 = vmatprep.subr.mxu0 0.0
        %4001 = vmatpush1.msra.mxu0 0.0
        %4002 = vmatprep.subr.mxu0 0.0
        %4003 = vmatpush1.msra.mxu0 0.0
        %4004 = vmatprep.subr.mxu0 0.0
        %4005 = vmatpush1.msra.mxu0 0.0
        %4006 = vmatprep.subr.mxu0 0.0
        %4007 = vmatpush1.msra.mxu0 0.0
        %4008 = vmatprep.subr.mxu0 0.0
        %4009 = vmatpush1.msra.mxu0 0.0
        %4010 = vmatprep.subr.mxu0 0.0
        %4011 = vmatpush1.msra.mxu0 0.0
        %4012 = vmatprep.subr.mxu0 0.0
        %4013 = vmatpush1.msra.mxu0 0.0
        %4014 = vmatprep.subr.mxu0 0.0
        %4015 = vmatpush1.msra.mxu0 0.0
        %4016 = vmatprep.subr.mxu0 0.0
        %4017 = vmatpush1.msra.mxu0 0.0
        %4018 = vmatprep.subr.mxu0 0.0
        %4019 = vmatpush1.msra.mxu0 0.0
        %4020 = vmatprep.subr.mxu0 0.0
        %4021 = vmatpush1.msra.mxu0 0.0
        %4022 = vmatprep.subr.mxu0 0.0
        %4023 = vmatpush1.msra.mxu0 0.0
        %4024 = vmatprep.subr.mxu0 0.0
        %4025 = vmatpush1.msra.mxu0 0.0
        %4026 = vmatprep.subr.mxu0 0.0
        %4027 = vmatpush1.msra.mxu0 0.0
        %4028 = vmatprep.subr.mxu0 0.0
        %4029 = vmatpush1.msra.mxu0 0.0
        %4030 = vmatprep.mubr.f32.mxu0 0.0
        %4031 = vmatmul.mubr.f32.gmra.mrb[0].mxu0 %v3942
        %v4032 = vpop.f32.mrb[0].mxu0
        %v4033 = vadd.f32 %v3964, %v4032
        %v4034 = vpop.f32.mrb[0].mxu0
        %4035 = vdwg.mxu0
        %v4036 = vadd.f32 %v3802, %v4033
        %4037 = vst.msk [vmem:[%s501] sm:$0xff] %vm2664, %v4036
        %s4038 = sand.u32 %s371, 1
        %s4039 = scalar_lea.sflag [#allocation5], %s4038
        %s4040 = sand.u32 %s371, 1
        %s4041 = smul.addr %s4040, 8
        %s4042 = scalar_lea.vmem [#allocation4], %s4041
        // Predicated region
        $region85: #{tpu_custom_call.1} parent=79 // pred_check
          %p4043 = pneg %p381
        $region86: #{tpu_custom_call.1} parent=79 // pred_check_branch
          %4045 = sbr.rel (%p4043) target = $region88
        $region87: #{tpu_custom_call.1} parent=79 // pred_region
          %s4047 = ssub.s32 128, 128
          %4048 = vsyncadd %s4039, %s4047
          %s4049 = smul.addr %s33, 2
          %s4050 = sadd.s32 %s34, %s4049
          %s4051 = smul.addr %s4050, 128
          %s4052 = scalar_lea.hbm %s15, %s4051
          %s4054 = sshll.u32 %s4042, 4
          %s4055 = int_to_ptr.vmem [resolvable:$true] %s4054
          %4057 = dma.vmem_to_hbm [thread:$0]  %s4055, 128, %s4052, %s4039
        $region88: #{tpu_custom_call.1} parent=79 // pred_fallthru
          _
      $region80: #{tpu_custom_call.1} parent=5 // pred_fallthru
        _
      %p4058 = scmp.le.s32.totalorder 2, %s24
      // Predicated region
      $region89: #{tpu_custom_call.1} parent=5 // pred_check
        %p4059 = pneg %p4058
      $region90: #{tpu_custom_call.1} parent=5 // pred_check_branch
        %4061 = sbr.rel (%p4059) target = $region92
      $region91: #{tpu_custom_call.1} parent=5 // pred_region
        %s4062 = ssub.s32 %s24, 2
        // Predicated region
        $region93: #{tpu_custom_call.1} parent=91 // pred_check
          %p4063 = pneg %p387
        $region94: #{tpu_custom_call.1} parent=91 // pred_check_branch
          %4065 = sbr.rel (%p4063) target = $region96
        $region95: #{tpu_custom_call.1} parent=91 // pred_region
          %s4066 = sand.u32 %s372, 1
          %s4067 = scalar_lea.sflag [#allocation5], %s4066
          %s4068 = sand.u32 %s372, 1
          %s4069 = smul.addr %s4068, 8
          %s4070 = scalar_lea.vmem [#allocation4], %s4069
          %4071 = dma.done %s4067, 128
        $region96: #{tpu_custom_call.1} parent=91 // pred_fallthru
          _
      $region92: #{tpu_custom_call.1} parent=5 // pred_fallthru
        _
    $region6: #{tpu_custom_call.1} parent=1 // loop_footer
      %s28 = sadd.s32 1, %s24
    $region7: #{tpu_custom_call.1} parent=1 // loop_footer_branch
      %23 = sbr.rel target = $region3
    $region8: #{tpu_custom_call.1} parent=1 // loop_exit
      _
    %4072 = vsyncpa [#allocation5], 1
    %s4073 = scalar_lea.sflag [#allocation5], 1
    %4074 = vsyncpa %s4073, 1

</llo_original>
